<compile_context>
chip_gen: v7x
topology: tpu7x:2x2x1
jax: 0.10.0
libtpu: 0.0.40
codegen_flags: <defaults>
</compile_context>

<pallas_src>
import functools

import jax
import jax.numpy as jnp
from jax.experimental import pallas as pl
from jax.experimental.pallas import tpu as pltpu


def _round_up(x, m):
    return ((x + m - 1) // m) * m


# --------------------------------------------------------------------------
# Pallas kernels
# --------------------------------------------------------------------------

def _matmul_bias_kernel(*refs, relu, has_residual):
    """acc += A @ B over K grid axis; epilogue: + shift (+residual) (+ReLU)."""
    if has_residual:
        a_ref, b_ref, shift_ref, res_ref, o_ref, acc_ref = refs
    else:
        a_ref, b_ref, shift_ref, o_ref, acc_ref = refs
        res_ref = None

    k = pl.program_id(2)

    @pl.when(k == 0)
    def _():
        acc_ref[...] = jnp.zeros_like(acc_ref)

    acc_ref[...] += jnp.dot(a_ref[...], b_ref[...],
                            preferred_element_type=jnp.float32)

    @pl.when(k == pl.num_programs(2) - 1)
    def _():
        out = acc_ref[...] + shift_ref[...]
        if res_ref is not None:
            out = out + res_ref[...].astype(jnp.float32)
        if relu:
            out = jnp.maximum(out, 0.0)
        o_ref[...] = out.astype(o_ref.dtype)


def _conv_row_kernel(*refs, kh, n_src, col_offs, wo, relu):
    """Implicit-GEMM conv for one output row: sum_{i,j} win_ij @ W[i,j] + bias (+ReLU)."""
    n_x = kh * n_src
    x_refs = refs[:n_x]
    w_ref, shift_ref, o_ref = refs[n_x:]
    c_out = o_ref.shape[-1]

    acc = jnp.zeros((wo, c_out), jnp.float32)
    for i in range(kh):
        for j, (src, off) in enumerate(col_offs):
            win = x_refs[i * n_src + src][0, 0, off:off + wo, :]        # (wo, Cin)
            acc = acc + jnp.dot(win, w_ref[i, j],
                                preferred_element_type=jnp.float32)
    out = acc + shift_ref[...]
    if relu:
        out = jnp.maximum(out, 0.0)
    o_ref[0, 0] = out.astype(o_ref.dtype)


def _maxpool_row_kernel(*refs, kh, n_src, col_offs, wo):
    """3x3/s2 max-pool for one output row (running max over the 9 window taps)."""
    n_x = kh * n_src
    x_refs = refs[:n_x]
    o_ref = refs[n_x]
    res = None
    for i in range(kh):
        for (src, off) in col_offs:
            win = x_refs[i * n_src + src][0, 0, off:off + wo, :]
            res = win if res is None else jnp.maximum(res, win)
    o_ref[0, 0] = res.astype(o_ref.dtype)


# --------------------------------------------------------------------------
# Wrappers
# --------------------------------------------------------------------------

def _row_index_map(stride, i):
    def index_map(n, h):
        return (n, h * stride + i, 0, 0)
    return index_map


def fused_matmul(a, b, shift, *, residual=None, relu, out_dtype=jnp.bfloat16):
    """out = act((a @ b) + shift [+ residual]).

    a: (M, K) bf16, b: (K, N) bf16, shift: (1, N) f32, residual: (M, N) bf16.
    K and N are never padded (tiles chosen to divide them exactly); M is padded
    so the chosen tm always divides it exactly (no partial blocks).
    """
    M, K = a.shape
    K2, Nc = b.shape
    assert K == K2

    Mp8 = _round_up(M, 8)
    tm = min(256, Mp8)
    Mp = _round_up(M, tm)
    if Mp != M:
        a = jnp.pad(a, ((0, Mp - M), (0, 0)))
        if residual is not None:
            residual = jnp.pad(residual, ((0, Mp - M), (0, 0)))

    tn = 256 if Nc % 256 == 0 else (128 if Nc % 128 == 0 else Nc)
    tk = 512 if K % 512 == 0 else (256 if K % 256 == 0 else (128 if K % 128 == 0 else K))

    has_residual = residual is not None
    in_specs = [
        pl.BlockSpec((tm, tk), lambda i, j, k: (i, k)),
        pl.BlockSpec((tk, tn), lambda i, j, k: (k, j)),
        pl.BlockSpec((1, tn), lambda i, j, k: (0, j)),
    ]
    operands = [a, b, shift]
    if has_residual:
        in_specs.append(pl.BlockSpec((tm, tn), lambda i, j, k: (i, j)))
        operands.append(residual)

    out = pl.pallas_call(
        functools.partial(_matmul_bias_kernel, relu=relu,
                          has_residual=has_residual),
        out_shape=jax.ShapeDtypeStruct((Mp, Nc), out_dtype),
        grid_spec=pltpu.PrefetchScalarGridSpec(
            num_scalar_prefetch=0,
            grid=(Mp // tm, pl.cdiv(Nc, tn), K // tk),
            in_specs=in_specs,
            out_specs=pl.BlockSpec((tm, tn), lambda i, j, k: (i, j)),
            scratch_shapes=[pltpu.VMEM((tm, tn), jnp.float32)],
        ),
        compiler_params=pltpu.CompilerParams(
            dimension_semantics=("parallel", "parallel", "arbitrary")),
    )(*operands)
    if Mp != M:
        out = out[:M]
    return out


def conv1x1_bn(x, w, shift, *, stride=1, relu, residual=None):
    """1x1 Conv2d (bias=False) + folded BN + optional fused residual/ReLU.  x: NHWC bf16."""
    if stride > 1:
        x = x[:, ::stride, ::stride, :]
    N, H, W, C = x.shape
    O = w.shape[1]
    a = x.reshape(N * H * W, C)
    res = residual.reshape(N * H * W, O) if residual is not None else None
    out = fused_matmul(a, w, shift, residual=res, relu=relu)
    return out.reshape(N, H, W, O)


def conv_bn_spatial(x, w, shift, *, stride, pad, relu):
    """kh x kw Conv2d (bias=False) + folded BN + optional ReLU via implicit GEMM.

    x: NHWC bf16, w: (kh, kw, Cin, Cout) bf16 (BN scale pre-folded).  No im2col
    is materialized; the kernel reads padded input rows directly through
    BlockSpec index_maps.
    """
    N, H, W, C = x.shape
    kh, kw, _, O = w.shape
    Ho = (H + 2 * pad - kh) // stride + 1
    Wo = (W + 2 * pad - kw) // stride + 1

    xp = jnp.pad(x, ((0, 0), (pad, pad), (pad, pad), (0, 0)))
    if stride == 1:
        srcs = [xp]
    else:
        # Even/odd column split so in-kernel window reads stay contiguous.
        srcs = [xp[:, :, r::stride, :] for r in range(stride)]
    n_src = len(srcs)
    col_offs = tuple((j % stride, j // stride) for j in range(kw))

    x_specs = [
        pl.BlockSpec((1, 1, srcs[s_idx].shape[2], C), _row_index_map(stride, i))
        for i in range(kh) for s_idx in range(n_src)
    ]
    x_operands = [srcs[s_idx] for i in range(kh) for s_idx in range(n_src)]

    kernel = functools.partial(_conv_row_kernel, kh=kh, n_src=n_src,
                               col_offs=col_offs, wo=Wo, relu=relu)
    out = pl.pallas_call(
        kernel,
        out_shape=jax.ShapeDtypeStruct((N, Ho, Wo, O), jnp.bfloat16),
        grid_spec=pltpu.PrefetchScalarGridSpec(
            num_scalar_prefetch=0,
            grid=(N, Ho),
            in_specs=x_specs + [
                pl.BlockSpec((kh, kw, C, O), lambda n, h: (0, 0, 0, 0)),
                pl.BlockSpec((1, O), lambda n, h: (0, 0)),
            ],
            out_specs=pl.BlockSpec((1, 1, Wo, O), lambda n, h: (n, h, 0, 0)),
        ),
        compiler_params=pltpu.CompilerParams(
            dimension_semantics=("parallel", "parallel")),
    )(*x_operands, w, shift)
    return out


def maxpool_3x3_s2_p1(x):
    """MaxPool2d(kernel_size=3, stride=2, padding=1) on NHWC bf16."""
    N, H, W, C = x.shape
    Ho = (H + 2 - 3) // 2 + 1
    Wo = (W + 2 - 3) // 2 + 1
    # Zero padding == -inf padding here: the input is post-ReLU (>= 0).
    xp = jnp.pad(x, ((0, 0), (1, 1), (1, 1), (0, 0)))
    srcs = [xp[:, :, r::2, :] for r in range(2)]
    col_offs = tuple((j % 2, j // 2) for j in range(3))

    x_specs = [
        pl.BlockSpec((1, 1, srcs[s_idx].shape[2], C), _row_index_map(2, i))
        for i in range(3) for s_idx in range(2)
    ]
    x_operands = [srcs[s_idx] for i in range(3) for s_idx in range(2)]

    kernel = functools.partial(_maxpool_row_kernel, kh=3, n_src=2,
                               col_offs=col_offs, wo=Wo)
    out = pl.pallas_call(
        kernel,
        out_shape=jax.ShapeDtypeStruct((N, Ho, Wo, C), x.dtype),
        grid_spec=pltpu.PrefetchScalarGridSpec(
            num_scalar_prefetch=0,
            grid=(N, Ho),
            in_specs=x_specs,
            out_specs=pl.BlockSpec((1, 1, Wo, C), lambda n, h: (n, h, 0, 0)),
        ),
        compiler_params=pltpu.CompilerParams(
            dimension_semantics=("parallel", "parallel")),
    )(*x_operands)
    return out


# --------------------------------------------------------------------------
# ResNet-50 parameters (deterministic synthetic init, exact resnet50 shapes).
# BN is folded at build time: the per-channel scale is folded into the conv
# weights (f32 math, then cast to bf16); only the f32 shift (1,C) is kept.
# Spatial convs are stored (kh,kw,Cin,Cout) bf16, 1x1 convs (Cin,Cout) bf16.
# --------------------------------------------------------------------------

def _bn_fold_params(key, c):
    """Returns (scale, shift) of the inference BatchNorm, both f32 (c,)."""
    k1, k2, k3, k4 = jax.random.split(key, 4)
    gamma = 1.0 + 0.1 * jax.random.normal(k1, (c,), jnp.float32)
    beta = 0.1 * jax.random.normal(k2, (c,), jnp.float32)
    running_mean = 0.1 * jax.random.normal(k3, (c,), jnp.float32)
    running_var = 1.0 + 0.1 * jnp.abs(jax.random.normal(k4, (c,), jnp.float32))
    scale = gamma * jax.lax.rsqrt(running_var + 1e-5)
    shift = beta - running_mean * scale
    return scale, shift


def _conv_spatial_bn_init(kw_key, bn_key, cin, cout, k):
    fan_in = cin * k * k
    w = jax.random.normal(kw_key, (k, k, cin, cout), jnp.float32) * (fan_in ** -0.5)
    scale, shift = _bn_fold_params(bn_key, cout)
    w = (w * scale[None, None, None, :]).astype(jnp.bfloat16)
    return w, shift.reshape(1, -1)


def _conv_1x1_bn_init(kw_key, bn_key, cin, cout):
    w = jax.random.normal(kw_key, (cin, cout), jnp.float32) * (cin ** -0.5)
    scale, shift = _bn_fold_params(bn_key, cout)
    w = (w * scale[None, :]).astype(jnp.bfloat16)
    return w, shift.reshape(1, -1)


def build_resnet50_params(key, num_classes):
    keys = iter(jax.random.split(key, 512))
    nk = lambda: next(keys)
    params = {}
    params["conv1_w"], params["conv1_b"] = _conv_spatial_bn_init(nk(), nk(), 3, 64, 7)

    inplanes = 64
    stages = []
    # (planes, num_blocks, stride) for layer1..layer4 of resnet50
    for planes, nblocks, stride in [(64, 3, 1), (128, 4, 2), (256, 6, 2), (512, 3, 2)]:
        blocks = []
        for bi in range(nblocks):
            s = stride if bi == 0 else 1
            blk = {"stride": s}
            blk["w1"], blk["b1"] = _conv_1x1_bn_init(nk(), nk(), inplanes, planes)
            blk["w2"], blk["b2"] = _conv_spatial_bn_init(nk(), nk(), planes, planes, 3)
            blk["w3"], blk["b3"] = _conv_1x1_bn_init(nk(), nk(), planes, planes * 4)
            if s != 1 or inplanes != planes * 4:
                blk["wd"], blk["bd"] = _conv_1x1_bn_init(nk(), nk(), inplanes, planes * 4)
            blocks.append(blk)
            inplanes = planes * 4
        stages.append(blocks)
    params["stages"] = stages

    params["fc_w"] = (jax.random.normal(nk(), (2048, num_classes), jnp.float32)
                      * (2048 ** -0.5)).astype(jnp.bfloat16)
    params["fc_b"] = 0.01 * jax.random.normal(nk(), (1, num_classes), jnp.float32)
    return params


# --------------------------------------------------------------------------
# Forward pass
# --------------------------------------------------------------------------

def bottleneck(x, blk):
    s = blk["stride"]
    out = conv1x1_bn(x, blk["w1"], blk["b1"], relu=True)
    out = conv_bn_spatial(out, blk["w2"], blk["b2"], stride=s, pad=1, relu=True)
    if "wd" in blk:
        identity = conv1x1_bn(x, blk["wd"], blk["bd"], stride=s, relu=False)
    else:
        identity = x
    # 3rd conv (1x1) with folded BN + fused residual add + ReLU in one epilogue.
    out = conv1x1_bn(out, blk["w3"], blk["b3"], relu=True, residual=identity)
    return out


def resnet50_forward(params, x_nchw):
    # Input NCHW (PyTorch) -> NHWC bf16 internally.
    x = jnp.transpose(x_nchw, (0, 2, 3, 1)).astype(jnp.bfloat16)

    x = conv_bn_spatial(x, params["conv1_w"], params["conv1_b"],
                        stride=2, pad=3, relu=True)
    x = maxpool_3x3_s2_p1(x)

    for blocks in params["stages"]:
        for blk in blocks:
            x = bottleneck(x, blk)

    feats = jnp.mean(x.astype(jnp.float32), axis=(1, 2))            # (N, 2048)
    logits = fused_matmul(
        feats.astype(jnp.bfloat16),
        params["fc_w"],
        params["fc_b"],
        relu=False,
        out_dtype=jnp.float32,
    )
    return logits


# --------------------------------------------------------------------------

if __name__ == "__main__":
    key = jax.random.PRNGKey(0)
    pkey, xkey = jax.random.split(key)

    num_classes = 10
    params = build_resnet50_params(pkey, num_classes)

    # Smallest spatial size that survives the /32 downsampling of resnet50.
    x = jax.random.normal(xkey, (2, 3, 32, 32), jnp.float32)   # NCHW, like PyTorch

    logits = resnet50_forward(params, x)
    logits = jax.block_until_ready(logits)
    assert logits.shape == (2, num_classes)
    assert bool(jnp.all(jnp.isfinite(logits)))
    print("KERNEL_OK")
</pallas_src>

<mosaic_0001>
module attributes {stable_mosaic.version = 11 : i64} {
  func.func @_conv_row_kernel(%arg0: i32, %arg1: i32, %arg2: memref<1x1x19x3xbf16, #tpu.memory_space<vmem>>, %arg3: memref<1x1x19x3xbf16, #tpu.memory_space<vmem>>, %arg4: memref<1x1x19x3xbf16, #tpu.memory_space<vmem>>, %arg5: memref<1x1x19x3xbf16, #tpu.memory_space<vmem>>, %arg6: memref<1x1x19x3xbf16, #tpu.memory_space<vmem>>, %arg7: memref<1x1x19x3xbf16, #tpu.memory_space<vmem>>, %arg8: memref<1x1x19x3xbf16, #tpu.memory_space<vmem>>, %arg9: memref<1x1x19x3xbf16, #tpu.memory_space<vmem>>, %arg10: memref<1x1x19x3xbf16, #tpu.memory_space<vmem>>, %arg11: memref<1x1x19x3xbf16, #tpu.memory_space<vmem>>, %arg12: memref<1x1x19x3xbf16, #tpu.memory_space<vmem>>, %arg13: memref<1x1x19x3xbf16, #tpu.memory_space<vmem>>, %arg14: memref<1x1x19x3xbf16, #tpu.memory_space<vmem>>, %arg15: memref<1x1x19x3xbf16, #tpu.memory_space<vmem>>, %arg16: memref<7x7x3x64xbf16, #tpu.memory_space<vmem>>, %arg17: memref<1x64xf32, #tpu.memory_space<vmem>>, %arg18: memref<1x1x16x64xbf16, #tpu.memory_space<vmem>>) attributes {dimension_semantics = [#tpu.dimension_semantics<parallel>, #tpu.dimension_semantics<parallel>], iteration_bounds = array<i64: 2, 16>, scalar_prefetch = 0 : i64, scratch_operands = 0 : i64, tpu.core_type = #tpu.core_type<tc>, window_params = [{transform_indices = @transform_0, window_bounds = array<i64: 1, 1, 19, 3>}, {transform_indices = @transform_1, window_bounds = array<i64: 1, 1, 19, 3>}, {transform_indices = @transform_2, window_bounds = array<i64: 1, 1, 19, 3>}, {transform_indices = @transform_3, window_bounds = array<i64: 1, 1, 19, 3>}, {transform_indices = @transform_4, window_bounds = array<i64: 1, 1, 19, 3>}, {transform_indices = @transform_5, window_bounds = array<i64: 1, 1, 19, 3>}, {transform_indices = @transform_6, window_bounds = array<i64: 1, 1, 19, 3>}, {transform_indices = @transform_7, window_bounds = array<i64: 1, 1, 19, 3>}, {transform_indices = @transform_8, window_bounds = array<i64: 1, 1, 19, 3>}, {transform_indices = @transform_9, window_bounds = array<i64: 1, 1, 19, 3>}, {transform_indices = @transform_10, window_bounds = array<i64: 1, 1, 19, 3>}, {transform_indices = @transform_11, window_bounds = array<i64: 1, 1, 19, 3>}, {transform_indices = @transform_12, window_bounds = array<i64: 1, 1, 19, 3>}, {transform_indices = @transform_13, window_bounds = array<i64: 1, 1, 19, 3>}, {pipeline_mode = #tpu.pipeline_mode<synchronous>, transform_indices = @transform_14, window_bounds = array<i64: 7, 7, 3, 64>}, {pipeline_mode = #tpu.pipeline_mode<synchronous>, transform_indices = @transform_15, window_bounds = array<i64: 1, 64>}, {transform_indices = @transform_16, window_bounds = array<i64: 1, 1, 16, 64>}]} {
    %cst = arith.constant 0.000000e+00 : f32
    %0 = vector.broadcast %cst : f32 to vector<16x64xf32>
    %c0 = arith.constant 0 : index
    %c0_0 = arith.constant 0 : index
    %c0_1 = arith.constant 0 : index
    %c0_2 = arith.constant 0 : index
    %1 = vector.load %arg2[%c0, %c0_0, %c0_1, %c0_2] : memref<1x1x19x3xbf16, #tpu.memory_space<vmem>>, vector<1x1x16x3xbf16>
    %2 = vector.shape_cast %1 : vector<1x1x16x3xbf16> to vector<16x3xbf16>
    %c0_3 = arith.constant 0 : index
    %c0_4 = arith.constant 0 : index
    %c0_5 = arith.constant 0 : index
    %c0_6 = arith.constant 0 : index
    %3 = vector.load %arg16[%c0_3, %c0_4, %c0_5, %c0_6] : memref<7x7x3x64xbf16, #tpu.memory_space<vmem>>, vector<1x1x3x64xbf16>
    %4 = vector.shape_cast %3 : vector<1x1x3x64xbf16> to vector<3x64xbf16>
    %cst_7 = arith.constant dense<0.000000e+00> : vector<16x64xf32>
    %5 = tpu.matmul %2, %4, %cst_7 {dimension_numbers = #tpu.dot_dimension_numbers<[1], [0], [0], [1], [0, 0, 1, 1], [], []>} : vector<16x3xbf16>, vector<3x64xbf16>, vector<16x64xf32> -> vector<16x64xf32>
    %6 = arith.addf %0, %5 : vector<16x64xf32>
    %c0_8 = arith.constant 0 : index
    %c0_9 = arith.constant 0 : index
    %c0_10 = arith.constant 0 : index
    %c0_11 = arith.constant 0 : index
    %7 = vector.load %arg3[%c0_8, %c0_9, %c0_10, %c0_11] : memref<1x1x19x3xbf16, #tpu.memory_space<vmem>>, vector<1x1x16x3xbf16>
    %8 = vector.shape_cast %7 : vector<1x1x16x3xbf16> to vector<16x3xbf16>
    %c0_12 = arith.constant 0 : index
    %c1 = arith.constant 1 : index
    %c0_13 = arith.constant 0 : index
    %c0_14 = arith.constant 0 : index
    %9 = vector.load %arg16[%c0_12, %c1, %c0_13, %c0_14] : memref<7x7x3x64xbf16, #tpu.memory_space<vmem>>, vector<1x1x3x64xbf16>
    %10 = vector.shape_cast %9 : vector<1x1x3x64xbf16> to vector<3x64xbf16>
    %cst_15 = arith.constant dense<0.000000e+00> : vector<16x64xf32>
    %11 = tpu.matmul %8, %10, %cst_15 {dimension_numbers = #tpu.dot_dimension_numbers<[1], [0], [0], [1], [0, 0, 1, 1], [], []>} : vector<16x3xbf16>, vector<3x64xbf16>, vector<16x64xf32> -> vector<16x64xf32>
    %12 = arith.addf %6, %11 : vector<16x64xf32>
    %c0_16 = arith.constant 0 : index
    %c0_17 = arith.constant 0 : index
    %c1_18 = arith.constant 1 : index
    %c0_19 = arith.constant 0 : index
    %13 = vector.load %arg2[%c0_16, %c0_17, %c1_18, %c0_19] : memref<1x1x19x3xbf16, #tpu.memory_space<vmem>>, vector<1x1x16x3xbf16>
    %14 = vector.shape_cast %13 : vector<1x1x16x3xbf16> to vector<16x3xbf16>
    %c0_20 = arith.constant 0 : index
    %c2 = arith.constant 2 : index
    %c0_21 = arith.constant 0 : index
    %c0_22 = arith.constant 0 : index
    %15 = vector.load %arg16[%c0_20, %c2, %c0_21, %c0_22] : memref<7x7x3x64xbf16, #tpu.memory_space<vmem>>, vector<1x1x3x64xbf16>
    %16 = vector.shape_cast %15 : vector<1x1x3x64xbf16> to vector<3x64xbf16>
    %cst_23 = arith.constant dense<0.000000e+00> : vector<16x64xf32>
    %17 = tpu.matmul %14, %16, %cst_23 {dimension_numbers = #tpu.dot_dimension_numbers<[1], [0], [0], [1], [0, 0, 1, 1], [], []>} : vector<16x3xbf16>, vector<3x64xbf16>, vector<16x64xf32> -> vector<16x64xf32>
    %18 = arith.addf %12, %17 : vector<16x64xf32>
    %c0_24 = arith.constant 0 : index
    %c0_25 = arith.constant 0 : index
    %c1_26 = arith.constant 1 : index
    %c0_27 = arith.constant 0 : index
    %19 = vector.load %arg3[%c0_24, %c0_25, %c1_26, %c0_27] : memref<1x1x19x3xbf16, #tpu.memory_space<vmem>>, vector<1x1x16x3xbf16>
    %20 = vector.shape_cast %19 : vector<1x1x16x3xbf16> to vector<16x3xbf16>
    %c0_28 = arith.constant 0 : index
    %c3 = arith.constant 3 : index
    %c0_29 = arith.constant 0 : index
    %c0_30 = arith.constant 0 : index
    %21 = vector.load %arg16[%c0_28, %c3, %c0_29, %c0_30] : memref<7x7x3x64xbf16, #tpu.memory_space<vmem>>, vector<1x1x3x64xbf16>
    %22 = vector.shape_cast %21 : vector<1x1x3x64xbf16> to vector<3x64xbf16>
    %cst_31 = arith.constant dense<0.000000e+00> : vector<16x64xf32>
    %23 = tpu.matmul %20, %22, %cst_31 {dimension_numbers = #tpu.dot_dimension_numbers<[1], [0], [0], [1], [0, 0, 1, 1], [], []>} : vector<16x3xbf16>, vector<3x64xbf16>, vector<16x64xf32> -> vector<16x64xf32>
    %24 = arith.addf %18, %23 : vector<16x64xf32>
    %c0_32 = arith.constant 0 : index
    %c0_33 = arith.constant 0 : index
    %c2_34 = arith.constant 2 : index
    %c0_35 = arith.constant 0 : index
    %25 = vector.load %arg2[%c0_32, %c0_33, %c2_34, %c0_35] : memref<1x1x19x3xbf16, #tpu.memory_space<vmem>>, vector<1x1x16x3xbf16>
    %26 = vector.shape_cast %25 : vector<1x1x16x3xbf16> to vector<16x3xbf16>
    %c0_36 = arith.constant 0 : index
    %c4 = arith.constant 4 : index
    %c0_37 = arith.constant 0 : index
    %c0_38 = arith.constant 0 : index
    %27 = vector.load %arg16[%c0_36, %c4, %c0_37, %c0_38] : memref<7x7x3x64xbf16, #tpu.memory_space<vmem>>, vector<1x1x3x64xbf16>
    %28 = vector.shape_cast %27 : vector<1x1x3x64xbf16> to vector<3x64xbf16>
    %cst_39 = arith.constant dense<0.000000e+00> : vector<16x64xf32>
    %29 = tpu.matmul %26, %28, %cst_39 {dimension_numbers = #tpu.dot_dimension_numbers<[1], [0], [0], [1], [0, 0, 1, 1], [], []>} : vector<16x3xbf16>, vector<3x64xbf16>, vector<16x64xf32> -> vector<16x64xf32>
    %30 = arith.addf %24, %29 : vector<16x64xf32>
    %c0_40 = arith.constant 0 : index
    %c0_41 = arith.constant 0 : index
    %c2_42 = arith.constant 2 : index
    %c0_43 = arith.constant 0 : index
    %31 = vector.load %arg3[%c0_40, %c0_41, %c2_42, %c0_43] : memref<1x1x19x3xbf16, #tpu.memory_space<vmem>>, vector<1x1x16x3xbf16>
    %32 = vector.shape_cast %31 : vector<1x1x16x3xbf16> to vector<16x3xbf16>
    %c0_44 = arith.constant 0 : index
    %c5 = arith.constant 5 : index
    %c0_45 = arith.constant 0 : index
    %c0_46 = arith.constant 0 : index
    %33 = vector.load %arg16[%c0_44, %c5, %c0_45, %c0_46] : memref<7x7x3x64xbf16, #tpu.memory_space<vmem>>, vector<1x1x3x64xbf16>
    %34 = vector.shape_cast %33 : vector<1x1x3x64xbf16> to vector<3x64xbf16>
    %cst_47 = arith.constant dense<0.000000e+00> : vector<16x64xf32>
    %35 = tpu.matmul %32, %34, %cst_47 {dimension_numbers = #tpu.dot_dimension_numbers<[1], [0], [0], [1], [0, 0, 1, 1], [], []>} : vector<16x3xbf16>, vector<3x64xbf16>, vector<16x64xf32> -> vector<16x64xf32>
    %36 = arith.addf %30, %35 : vector<16x64xf32>
    %c0_48 = arith.constant 0 : index
    %c0_49 = arith.constant 0 : index
    %c3_50 = arith.constant 3 : index
    %c0_51 = arith.constant 0 : index
    %37 = vector.load %arg2[%c0_48, %c0_49, %c3_50, %c0_51] : memref<1x1x19x3xbf16, #tpu.memory_space<vmem>>, vector<1x1x16x3xbf16>
    %38 = vector.shape_cast %37 : vector<1x1x16x3xbf16> to vector<16x3xbf16>
    %c0_52 = arith.constant 0 : index
    %c6 = arith.constant 6 : index
    %c0_53 = arith.constant 0 : index
    %c0_54 = arith.constant 0 : index
    %39 = vector.load %arg16[%c0_52, %c6, %c0_53, %c0_54] : memref<7x7x3x64xbf16, #tpu.memory_space<vmem>>, vector<1x1x3x64xbf16>
    %40 = vector.shape_cast %39 : vector<1x1x3x64xbf16> to vector<3x64xbf16>
    %cst_55 = arith.constant dense<0.000000e+00> : vector<16x64xf32>
    %41 = tpu.matmul %38, %40, %cst_55 {dimension_numbers = #tpu.dot_dimension_numbers<[1], [0], [0], [1], [0, 0, 1, 1], [], []>} : vector<16x3xbf16>, vector<3x64xbf16>, vector<16x64xf32> -> vector<16x64xf32>
    %42 = arith.addf %36, %41 : vector<16x64xf32>
    %c0_56 = arith.constant 0 : index
    %c0_57 = arith.constant 0 : index
    %c0_58 = arith.constant 0 : index
    %c0_59 = arith.constant 0 : index
    %43 = vector.load %arg4[%c0_56, %c0_57, %c0_58, %c0_59] : memref<1x1x19x3xbf16, #tpu.memory_space<vmem>>, vector<1x1x16x3xbf16>
    %44 = vector.shape_cast %43 : vector<1x1x16x3xbf16> to vector<16x3xbf16>
    %c1_60 = arith.constant 1 : index
    %c0_61 = arith.constant 0 : index
    %c0_62 = arith.constant 0 : index
    %c0_63 = arith.constant 0 : index
    %45 = vector.load %arg16[%c1_60, %c0_61, %c0_62, %c0_63] : memref<7x7x3x64xbf16, #tpu.memory_space<vmem>>, vector<1x1x3x64xbf16>
    %46 = vector.shape_cast %45 : vector<1x1x3x64xbf16> to vector<3x64xbf16>
    %cst_64 = arith.constant dense<0.000000e+00> : vector<16x64xf32>
    %47 = tpu.matmul %44, %46, %cst_64 {dimension_numbers = #tpu.dot_dimension_numbers<[1], [0], [0], [1], [0, 0, 1, 1], [], []>} : vector<16x3xbf16>, vector<3x64xbf16>, vector<16x64xf32> -> vector<16x64xf32>
    %48 = arith.addf %42, %47 : vector<16x64xf32>
    %c0_65 = arith.constant 0 : index
    %c0_66 = arith.constant 0 : index
    %c0_67 = arith.constant 0 : index
    %c0_68 = arith.constant 0 : index
    %49 = vector.load %arg5[%c0_65, %c0_66, %c0_67, %c0_68] : memref<1x1x19x3xbf16, #tpu.memory_space<vmem>>, vector<1x1x16x3xbf16>
    %50 = vector.shape_cast %49 : vector<1x1x16x3xbf16> to vector<16x3xbf16>
    %c1_69 = arith.constant 1 : index
    %c1_70 = arith.constant 1 : index
    %c0_71 = arith.constant 0 : index
    %c0_72 = arith.constant 0 : index
    %51 = vector.load %arg16[%c1_69, %c1_70, %c0_71, %c0_72] : memref<7x7x3x64xbf16, #tpu.memory_space<vmem>>, vector<1x1x3x64xbf16>
    %52 = vector.shape_cast %51 : vector<1x1x3x64xbf16> to vector<3x64xbf16>
    %cst_73 = arith.constant dense<0.000000e+00> : vector<16x64xf32>
    %53 = tpu.matmul %50, %52, %cst_73 {dimension_numbers = #tpu.dot_dimension_numbers<[1], [0], [0], [1], [0, 0, 1, 1], [], []>} : vector<16x3xbf16>, vector<3x64xbf16>, vector<16x64xf32> -> vector<16x64xf32>
    %54 = arith.addf %48, %53 : vector<16x64xf32>
    %c0_74 = arith.constant 0 : index
    %c0_75 = arith.constant 0 : index
    %c1_76 = arith.constant 1 : index
    %c0_77 = arith.constant 0 : index
    %55 = vector.load %arg4[%c0_74, %c0_75, %c1_76, %c0_77] : memref<1x1x19x3xbf16, #tpu.memory_space<vmem>>, vector<1x1x16x3xbf16>
    %56 = vector.shape_cast %55 : vector<1x1x16x3xbf16> to vector<16x3xbf16>
    %c1_78 = arith.constant 1 : index
    %c2_79 = arith.constant 2 : index
    %c0_80 = arith.constant 0 : index
    %c0_81 = arith.constant 0 : index
    %57 = vector.load %arg16[%c1_78, %c2_79, %c0_80, %c0_81] : memref<7x7x3x64xbf16, #tpu.memory_space<vmem>>, vector<1x1x3x64xbf16>
    %58 = vector.shape_cast %57 : vector<1x1x3x64xbf16> to vector<3x64xbf16>
    %cst_82 = arith.constant dense<0.000000e+00> : vector<16x64xf32>
    %59 = tpu.matmul %56, %58, %cst_82 {dimension_numbers = #tpu.dot_dimension_numbers<[1], [0], [0], [1], [0, 0, 1, 1], [], []>} : vector<16x3xbf16>, vector<3x64xbf16>, vector<16x64xf32> -> vector<16x64xf32>
    %60 = arith.addf %54, %59 : vector<16x64xf32>
    %c0_83 = arith.constant 0 : index
    %c0_84 = arith.constant 0 : index
    %c1_85 = arith.constant 1 : index
    %c0_86 = arith.constant 0 : index
    %61 = vector.load %arg5[%c0_83, %c0_84, %c1_85, %c0_86] : memref<1x1x19x3xbf16, #tpu.memory_space<vmem>>, vector<1x1x16x3xbf16>
    %62 = vector.shape_cast %61 : vector<1x1x16x3xbf16> to vector<16x3xbf16>
    %c1_87 = arith.constant 1 : index
    %c3_88 = arith.constant 3 : index
    %c0_89 = arith.constant 0 : index
    %c0_90 = arith.constant 0 : index
    %63 = vector.load %arg16[%c1_87, %c3_88, %c0_89, %c0_90] : memref<7x7x3x64xbf16, #tpu.memory_space<vmem>>, vector<1x1x3x64xbf16>
    %64 = vector.shape_cast %63 : vector<1x1x3x64xbf16> to vector<3x64xbf16>
    %cst_91 = arith.constant dense<0.000000e+00> : vector<16x64xf32>
    %65 = tpu.matmul %62, %64, %cst_91 {dimension_numbers = #tpu.dot_dimension_numbers<[1], [0], [0], [1], [0, 0, 1, 1], [], []>} : vector<16x3xbf16>, vector<3x64xbf16>, vector<16x64xf32> -> vector<16x64xf32>
    %66 = arith.addf %60, %65 : vector<16x64xf32>
    %c0_92 = arith.constant 0 : index
    %c0_93 = arith.constant 0 : index
    %c2_94 = arith.constant 2 : index
    %c0_95 = arith.constant 0 : index
    %67 = vector.load %arg4[%c0_92, %c0_93, %c2_94, %c0_95] : memref<1x1x19x3xbf16, #tpu.memory_space<vmem>>, vector<1x1x16x3xbf16>
    %68 = vector.shape_cast %67 : vector<1x1x16x3xbf16> to vector<16x3xbf16>
    %c1_96 = arith.constant 1 : index
    %c4_97 = arith.constant 4 : index
    %c0_98 = arith.constant 0 : index
    %c0_99 = arith.constant 0 : index
    %69 = vector.load %arg16[%c1_96, %c4_97, %c0_98, %c0_99] : memref<7x7x3x64xbf16, #tpu.memory_space<vmem>>, vector<1x1x3x64xbf16>
    %70 = vector.shape_cast %69 : vector<1x1x3x64xbf16> to vector<3x64xbf16>
    %cst_100 = arith.constant dense<0.000000e+00> : vector<16x64xf32>
    %71 = tpu.matmul %68, %70, %cst_100 {dimension_numbers = #tpu.dot_dimension_numbers<[1], [0], [0], [1], [0, 0, 1, 1], [], []>} : vector<16x3xbf16>, vector<3x64xbf16>, vector<16x64xf32> -> vector<16x64xf32>
    %72 = arith.addf %66, %71 : vector<16x64xf32>
    %c0_101 = arith.constant 0 : index
    %c0_102 = arith.constant 0 : index
    %c2_103 = arith.constant 2 : index
    %c0_104 = arith.constant 0 : index
    %73 = vector.load %arg5[%c0_101, %c0_102, %c2_103, %c0_104] : memref<1x1x19x3xbf16, #tpu.memory_space<vmem>>, vector<1x1x16x3xbf16>
    %74 = vector.shape_cast %73 : vector<1x1x16x3xbf16> to vector<16x3xbf16>
    %c1_105 = arith.constant 1 : index
    %c5_106 = arith.constant 5 : index
    %c0_107 = arith.constant 0 : index
    %c0_108 = arith.constant 0 : index
    %75 = vector.load %arg16[%c1_105, %c5_106, %c0_107, %c0_108] : memref<7x7x3x64xbf16, #tpu.memory_space<vmem>>, vector<1x1x3x64xbf16>
    %76 = vector.shape_cast %75 : vector<1x1x3x64xbf16> to vector<3x64xbf16>
    %cst_109 = arith.constant dense<0.000000e+00> : vector<16x64xf32>
    %77 = tpu.matmul %74, %76, %cst_109 {dimension_numbers = #tpu.dot_dimension_numbers<[1], [0], [0], [1], [0, 0, 1, 1], [], []>} : vector<16x3xbf16>, vector<3x64xbf16>, vector<16x64xf32> -> vector<16x64xf32>
    %78 = arith.addf %72, %77 : vector<16x64xf32>
    %c0_110 = arith.constant 0 : index
    %c0_111 = arith.constant 0 : index
    %c3_112 = arith.constant 3 : index
    %c0_113 = arith.constant 0 : index
    %79 = vector.load %arg4[%c0_110, %c0_111, %c3_112, %c0_113] : memref<1x1x19x3xbf16, #tpu.memory_space<vmem>>, vector<1x1x16x3xbf16>
    %80 = vector.shape_cast %79 : vector<1x1x16x3xbf16> to vector<16x3xbf16>
    %c1_114 = arith.constant 1 : index
    %c6_115 = arith.constant 6 : index
    %c0_116 = arith.constant 0 : index
    %c0_117 = arith.constant 0 : index
    %81 = vector.load %arg16[%c1_114, %c6_115, %c0_116, %c0_117] : memref<7x7x3x64xbf16, #tpu.memory_space<vmem>>, vector<1x1x3x64xbf16>
    %82 = vector.shape_cast %81 : vector<1x1x3x64xbf16> to vector<3x64xbf16>
    %cst_118 = arith.constant dense<0.000000e+00> : vector<16x64xf32>
    %83 = tpu.matmul %80, %82, %cst_118 {dimension_numbers = #tpu.dot_dimension_numbers<[1], [0], [0], [1], [0, 0, 1, 1], [], []>} : vector<16x3xbf16>, vector<3x64xbf16>, vector<16x64xf32> -> vector<16x64xf32>
    %84 = arith.addf %78, %83 : vector<16x64xf32>
    %c0_119 = arith.constant 0 : index
    %c0_120 = arith.constant 0 : index
    %c0_121 = arith.constant 0 : index
    %c0_122 = arith.constant 0 : index
    %85 = vector.load %arg6[%c0_119, %c0_120, %c0_121, %c0_122] : memref<1x1x19x3xbf16, #tpu.memory_space<vmem>>, vector<1x1x16x3xbf16>
    %86 = vector.shape_cast %85 : vector<1x1x16x3xbf16> to vector<16x3xbf16>
    %c2_123 = arith.constant 2 : index
    %c0_124 = arith.constant 0 : index
    %c0_125 = arith.constant 0 : index
    %c0_126 = arith.constant 0 : index
    %87 = vector.load %arg16[%c2_123, %c0_124, %c0_125, %c0_126] : memref<7x7x3x64xbf16, #tpu.memory_space<vmem>>, vector<1x1x3x64xbf16>
    %88 = vector.shape_cast %87 : vector<1x1x3x64xbf16> to vector<3x64xbf16>
    %cst_127 = arith.constant dense<0.000000e+00> : vector<16x64xf32>
    %89 = tpu.matmul %86, %88, %cst_127 {dimension_numbers = #tpu.dot_dimension_numbers<[1], [0], [0], [1], [0, 0, 1, 1], [], []>} : vector<16x3xbf16>, vector<3x64xbf16>, vector<16x64xf32> -> vector<16x64xf32>
    %90 = arith.addf %84, %89 : vector<16x64xf32>
    %c0_128 = arith.constant 0 : index
    %c0_129 = arith.constant 0 : index
    %c0_130 = arith.constant 0 : index
    %c0_131 = arith.constant 0 : index
    %91 = vector.load %arg7[%c0_128, %c0_129, %c0_130, %c0_131] : memref<1x1x19x3xbf16, #tpu.memory_space<vmem>>, vector<1x1x16x3xbf16>
    %92 = vector.shape_cast %91 : vector<1x1x16x3xbf16> to vector<16x3xbf16>
    %c2_132 = arith.constant 2 : index
    %c1_133 = arith.constant 1 : index
    %c0_134 = arith.constant 0 : index
    %c0_135 = arith.constant 0 : index
    %93 = vector.load %arg16[%c2_132, %c1_133, %c0_134, %c0_135] : memref<7x7x3x64xbf16, #tpu.memory_space<vmem>>, vector<1x1x3x64xbf16>
    %94 = vector.shape_cast %93 : vector<1x1x3x64xbf16> to vector<3x64xbf16>
    %cst_136 = arith.constant dense<0.000000e+00> : vector<16x64xf32>
    %95 = tpu.matmul %92, %94, %cst_136 {dimension_numbers = #tpu.dot_dimension_numbers<[1], [0], [0], [1], [0, 0, 1, 1], [], []>} : vector<16x3xbf16>, vector<3x64xbf16>, vector<16x64xf32> -> vector<16x64xf32>
    %96 = arith.addf %90, %95 : vector<16x64xf32>
    %c0_137 = arith.constant 0 : index
    %c0_138 = arith.constant 0 : index
    %c1_139 = arith.constant 1 : index
    %c0_140 = arith.constant 0 : index
    %97 = vector.load %arg6[%c0_137, %c0_138, %c1_139, %c0_140] : memref<1x1x19x3xbf16, #tpu.memory_space<vmem>>, vector<1x1x16x3xbf16>
    %98 = vector.shape_cast %97 : vector<1x1x16x3xbf16> to vector<16x3xbf16>
    %c2_141 = arith.constant 2 : index
    %c2_142 = arith.constant 2 : index
    %c0_143 = arith.constant 0 : index
    %c0_144 = arith.constant 0 : index
    %99 = vector.load %arg16[%c2_141, %c2_142, %c0_143, %c0_144] : memref<7x7x3x64xbf16, #tpu.memory_space<vmem>>, vector<1x1x3x64xbf16>
    %100 = vector.shape_cast %99 : vector<1x1x3x64xbf16> to vector<3x64xbf16>
    %cst_145 = arith.constant dense<0.000000e+00> : vector<16x64xf32>
    %101 = tpu.matmul %98, %100, %cst_145 {dimension_numbers = #tpu.dot_dimension_numbers<[1], [0], [0], [1], [0, 0, 1, 1], [], []>} : vector<16x3xbf16>, vector<3x64xbf16>, vector<16x64xf32> -> vector<16x64xf32>
    %102 = arith.addf %96, %101 : vector<16x64xf32>
    %c0_146 = arith.constant 0 : index
    %c0_147 = arith.constant 0 : index
    %c1_148 = arith.constant 1 : index
    %c0_149 = arith.constant 0 : index
    %103 = vector.load %arg7[%c0_146, %c0_147, %c1_148, %c0_149] : memref<1x1x19x3xbf16, #tpu.memory_space<vmem>>, vector<1x1x16x3xbf16>
    %104 = vector.shape_cast %103 : vector<1x1x16x3xbf16> to vector<16x3xbf16>
    %c2_150 = arith.constant 2 : index
    %c3_151 = arith.constant 3 : index
    %c0_152 = arith.constant 0 : index
    %c0_153 = arith.constant 0 : index
    %105 = vector.load %arg16[%c2_150, %c3_151, %c0_152, %c0_153] : memref<7x7x3x64xbf16, #tpu.memory_space<vmem>>, vector<1x1x3x64xbf16>
    %106 = vector.shape_cast %105 : vector<1x1x3x64xbf16> to vector<3x64xbf16>
    %cst_154 = arith.constant dense<0.000000e+00> : vector<16x64xf32>
    %107 = tpu.matmul %104, %106, %cst_154 {dimension_numbers = #tpu.dot_dimension_numbers<[1], [0], [0], [1], [0, 0, 1, 1], [], []>} : vector<16x3xbf16>, vector<3x64xbf16>, vector<16x64xf32> -> vector<16x64xf32>
    %108 = arith.addf %102, %107 : vector<16x64xf32>
    %c0_155 = arith.constant 0 : index
    %c0_156 = arith.constant 0 : index
    %c2_157 = arith.constant 2 : index
    %c0_158 = arith.constant 0 : index
    %109 = vector.load %arg6[%c0_155, %c0_156, %c2_157, %c0_158] : memref<1x1x19x3xbf16, #tpu.memory_space<vmem>>, vector<1x1x16x3xbf16>
    %110 = vector.shape_cast %109 : vector<1x1x16x3xbf16> to vector<16x3xbf16>
    %c2_159 = arith.constant 2 : index
    %c4_160 = arith.constant 4 : index
    %c0_161 = arith.constant 0 : index
    %c0_162 = arith.constant 0 : index
    %111 = vector.load %arg16[%c2_159, %c4_160, %c0_161, %c0_162] : memref<7x7x3x64xbf16, #tpu.memory_space<vmem>>, vector<1x1x3x64xbf16>
    %112 = vector.shape_cast %111 : vector<1x1x3x64xbf16> to vector<3x64xbf16>
    %cst_163 = arith.constant dense<0.000000e+00> : vector<16x64xf32>
    %113 = tpu.matmul %110, %112, %cst_163 {dimension_numbers = #tpu.dot_dimension_numbers<[1], [0], [0], [1], [0, 0, 1, 1], [], []>} : vector<16x3xbf16>, vector<3x64xbf16>, vector<16x64xf32> -> vector<16x64xf32>
    %114 = arith.addf %108, %113 : vector<16x64xf32>
    %c0_164 = arith.constant 0 : index
    %c0_165 = arith.constant 0 : index
    %c2_166 = arith.constant 2 : index
    %c0_167 = arith.constant 0 : index
    %115 = vector.load %arg7[%c0_164, %c0_165, %c2_166, %c0_167] : memref<1x1x19x3xbf16, #tpu.memory_space<vmem>>, vector<1x1x16x3xbf16>
    %116 = vector.shape_cast %115 : vector<1x1x16x3xbf16> to vector<16x3xbf16>
    %c2_168 = arith.constant 2 : index
    %c5_169 = arith.constant 5 : index
    %c0_170 = arith.constant 0 : index
    %c0_171 = arith.constant 0 : index
    %117 = vector.load %arg16[%c2_168, %c5_169, %c0_170, %c0_171] : memref<7x7x3x64xbf16, #tpu.memory_space<vmem>>, vector<1x1x3x64xbf16>
    %118 = vector.shape_cast %117 : vector<1x1x3x64xbf16> to vector<3x64xbf16>
    %cst_172 = arith.constant dense<0.000000e+00> : vector<16x64xf32>
    %119 = tpu.matmul %116, %118, %cst_172 {dimension_numbers = #tpu.dot_dimension_numbers<[1], [0], [0], [1], [0, 0, 1, 1], [], []>} : vector<16x3xbf16>, vector<3x64xbf16>, vector<16x64xf32> -> vector<16x64xf32>
    %120 = arith.addf %114, %119 : vector<16x64xf32>
    %c0_173 = arith.constant 0 : index
    %c0_174 = arith.constant 0 : index
    %c3_175 = arith.constant 3 : index
    %c0_176 = arith.constant 0 : index
    %121 = vector.load %arg6[%c0_173, %c0_174, %c3_175, %c0_176] : memref<1x1x19x3xbf16, #tpu.memory_space<vmem>>, vector<1x1x16x3xbf16>
    %122 = vector.shape_cast %121 : vector<1x1x16x3xbf16> to vector<16x3xbf16>
    %c2_177 = arith.constant 2 : index
    %c6_178 = arith.constant 6 : index
    %c0_179 = arith.constant 0 : index
    %c0_180 = arith.constant 0 : index
    %123 = vector.load %arg16[%c2_177, %c6_178, %c0_179, %c0_180] : memref<7x7x3x64xbf16, #tpu.memory_space<vmem>>, vector<1x1x3x64xbf16>
    %124 = vector.shape_cast %123 : vector<1x1x3x64xbf16> to vector<3x64xbf16>
    %cst_181 = arith.constant dense<0.000000e+00> : vector<16x64xf32>
    %125 = tpu.matmul %122, %124, %cst_181 {dimension_numbers = #tpu.dot_dimension_numbers<[1], [0], [0], [1], [0, 0, 1, 1], [], []>} : vector<16x3xbf16>, vector<3x64xbf16>, vector<16x64xf32> -> vector<16x64xf32>
    %126 = arith.addf %120, %125 : vector<16x64xf32>
    %c0_182 = arith.constant 0 : index
    %c0_183 = arith.constant 0 : index
    %c0_184 = arith.constant 0 : index
    %c0_185 = arith.constant 0 : index
    %127 = vector.load %arg8[%c0_182, %c0_183, %c0_184, %c0_185] : memref<1x1x19x3xbf16, #tpu.memory_space<vmem>>, vector<1x1x16x3xbf16>
    %128 = vector.shape_cast %127 : vector<1x1x16x3xbf16> to vector<16x3xbf16>
    %c3_186 = arith.constant 3 : index
    %c0_187 = arith.constant 0 : index
    %c0_188 = arith.constant 0 : index
    %c0_189 = arith.constant 0 : index
    %129 = vector.load %arg16[%c3_186, %c0_187, %c0_188, %c0_189] : memref<7x7x3x64xbf16, #tpu.memory_space<vmem>>, vector<1x1x3x64xbf16>
    %130 = vector.shape_cast %129 : vector<1x1x3x64xbf16> to vector<3x64xbf16>
    %cst_190 = arith.constant dense<0.000000e+00> : vector<16x64xf32>
    %131 = tpu.matmul %128, %130, %cst_190 {dimension_numbers = #tpu.dot_dimension_numbers<[1], [0], [0], [1], [0, 0, 1, 1], [], []>} : vector<16x3xbf16>, vector<3x64xbf16>, vector<16x64xf32> -> vector<16x64xf32>
    %132 = arith.addf %126, %131 : vector<16x64xf32>
    %c0_191 = arith.constant 0 : index
    %c0_192 = arith.constant 0 : index
    %c0_193 = arith.constant 0 : index
    %c0_194 = arith.constant 0 : index
    %133 = vector.load %arg9[%c0_191, %c0_192, %c0_193, %c0_194] : memref<1x1x19x3xbf16, #tpu.memory_space<vmem>>, vector<1x1x16x3xbf16>
    %134 = vector.shape_cast %133 : vector<1x1x16x3xbf16> to vector<16x3xbf16>
    %c3_195 = arith.constant 3 : index
    %c1_196 = arith.constant 1 : index
    %c0_197 = arith.constant 0 : index
    %c0_198 = arith.constant 0 : index
    %135 = vector.load %arg16[%c3_195, %c1_196, %c0_197, %c0_198] : memref<7x7x3x64xbf16, #tpu.memory_space<vmem>>, vector<1x1x3x64xbf16>
    %136 = vector.shape_cast %135 : vector<1x1x3x64xbf16> to vector<3x64xbf16>
    %cst_199 = arith.constant dense<0.000000e+00> : vector<16x64xf32>
    %137 = tpu.matmul %134, %136, %cst_199 {dimension_numbers = #tpu.dot_dimension_numbers<[1], [0], [0], [1], [0, 0, 1, 1], [], []>} : vector<16x3xbf16>, vector<3x64xbf16>, vector<16x64xf32> -> vector<16x64xf32>
    %138 = arith.addf %132, %137 : vector<16x64xf32>
    %c0_200 = arith.constant 0 : index
    %c0_201 = arith.constant 0 : index
    %c1_202 = arith.constant 1 : index
    %c0_203 = arith.constant 0 : index
    %139 = vector.load %arg8[%c0_200, %c0_201, %c1_202, %c0_203] : memref<1x1x19x3xbf16, #tpu.memory_space<vmem>>, vector<1x1x16x3xbf16>
    %140 = vector.shape_cast %139 : vector<1x1x16x3xbf16> to vector<16x3xbf16>
    %c3_204 = arith.constant 3 : index
    %c2_205 = arith.constant 2 : index
    %c0_206 = arith.constant 0 : index
    %c0_207 = arith.constant 0 : index
    %141 = vector.load %arg16[%c3_204, %c2_205, %c0_206, %c0_207] : memref<7x7x3x64xbf16, #tpu.memory_space<vmem>>, vector<1x1x3x64xbf16>
    %142 = vector.shape_cast %141 : vector<1x1x3x64xbf16> to vector<3x64xbf16>
    %cst_208 = arith.constant dense<0.000000e+00> : vector<16x64xf32>
    %143 = tpu.matmul %140, %142, %cst_208 {dimension_numbers = #tpu.dot_dimension_numbers<[1], [0], [0], [1], [0, 0, 1, 1], [], []>} : vector<16x3xbf16>, vector<3x64xbf16>, vector<16x64xf32> -> vector<16x64xf32>
    %144 = arith.addf %138, %143 : vector<16x64xf32>
    %c0_209 = arith.constant 0 : index
    %c0_210 = arith.constant 0 : index
    %c1_211 = arith.constant 1 : index
    %c0_212 = arith.constant 0 : index
    %145 = vector.load %arg9[%c0_209, %c0_210, %c1_211, %c0_212] : memref<1x1x19x3xbf16, #tpu.memory_space<vmem>>, vector<1x1x16x3xbf16>
    %146 = vector.shape_cast %145 : vector<1x1x16x3xbf16> to vector<16x3xbf16>
    %c3_213 = arith.constant 3 : index
    %c3_214 = arith.constant 3 : index
    %c0_215 = arith.constant 0 : index
    %c0_216 = arith.constant 0 : index
    %147 = vector.load %arg16[%c3_213, %c3_214, %c0_215, %c0_216] : memref<7x7x3x64xbf16, #tpu.memory_space<vmem>>, vector<1x1x3x64xbf16>
    %148 = vector.shape_cast %147 : vector<1x1x3x64xbf16> to vector<3x64xbf16>
    %cst_217 = arith.constant dense<0.000000e+00> : vector<16x64xf32>
    %149 = tpu.matmul %146, %148, %cst_217 {dimension_numbers = #tpu.dot_dimension_numbers<[1], [0], [0], [1], [0, 0, 1, 1], [], []>} : vector<16x3xbf16>, vector<3x64xbf16>, vector<16x64xf32> -> vector<16x64xf32>
    %150 = arith.addf %144, %149 : vector<16x64xf32>
    %c0_218 = arith.constant 0 : index
    %c0_219 = arith.constant 0 : index
    %c2_220 = arith.constant 2 : index
    %c0_221 = arith.constant 0 : index
    %151 = vector.load %arg8[%c0_218, %c0_219, %c2_220, %c0_221] : memref<1x1x19x3xbf16, #tpu.memory_space<vmem>>, vector<1x1x16x3xbf16>
    %152 = vector.shape_cast %151 : vector<1x1x16x3xbf16> to vector<16x3xbf16>
    %c3_222 = arith.constant 3 : index
    %c4_223 = arith.constant 4 : index
    %c0_224 = arith.constant 0 : index
    %c0_225 = arith.constant 0 : index
    %153 = vector.load %arg16[%c3_222, %c4_223, %c0_224, %c0_225] : memref<7x7x3x64xbf16, #tpu.memory_space<vmem>>, vector<1x1x3x64xbf16>
    %154 = vector.shape_cast %153 : vector<1x1x3x64xbf16> to vector<3x64xbf16>
    %cst_226 = arith.constant dense<0.000000e+00> : vector<16x64xf32>
    %155 = tpu.matmul %152, %154, %cst_226 {dimension_numbers = #tpu.dot_dimension_numbers<[1], [0], [0], [1], [0, 0, 1, 1], [], []>} : vector<16x3xbf16>, vector<3x64xbf16>, vector<16x64xf32> -> vector<16x64xf32>
    %156 = arith.addf %150, %155 : vector<16x64xf32>
    %c0_227 = arith.constant 0 : index
    %c0_228 = arith.constant 0 : index
    %c2_229 = arith.constant 2 : index
    %c0_230 = arith.constant 0 : index
    %157 = vector.load %arg9[%c0_227, %c0_228, %c2_229, %c0_230] : memref<1x1x19x3xbf16, #tpu.memory_space<vmem>>, vector<1x1x16x3xbf16>
    %158 = vector.shape_cast %157 : vector<1x1x16x3xbf16> to vector<16x3xbf16>
    %c3_231 = arith.constant 3 : index
    %c5_232 = arith.constant 5 : index
    %c0_233 = arith.constant 0 : index
    %c0_234 = arith.constant 0 : index
    %159 = vector.load %arg16[%c3_231, %c5_232, %c0_233, %c0_234] : memref<7x7x3x64xbf16, #tpu.memory_space<vmem>>, vector<1x1x3x64xbf16>
    %160 = vector.shape_cast %159 : vector<1x1x3x64xbf16> to vector<3x64xbf16>
    %cst_235 = arith.constant dense<0.000000e+00> : vector<16x64xf32>
    %161 = tpu.matmul %158, %160, %cst_235 {dimension_numbers = #tpu.dot_dimension_numbers<[1], [0], [0], [1], [0, 0, 1, 1], [], []>} : vector<16x3xbf16>, vector<3x64xbf16>, vector<16x64xf32> -> vector<16x64xf32>
    %162 = arith.addf %156, %161 : vector<16x64xf32>
    %c0_236 = arith.constant 0 : index
    %c0_237 = arith.constant 0 : index
    %c3_238 = arith.constant 3 : index
    %c0_239 = arith.constant 0 : index
    %163 = vector.load %arg8[%c0_236, %c0_237, %c3_238, %c0_239] : memref<1x1x19x3xbf16, #tpu.memory_space<vmem>>, vector<1x1x16x3xbf16>
    %164 = vector.shape_cast %163 : vector<1x1x16x3xbf16> to vector<16x3xbf16>
    %c3_240 = arith.constant 3 : index
    %c6_241 = arith.constant 6 : index
    %c0_242 = arith.constant 0 : index
    %c0_243 = arith.constant 0 : index
    %165 = vector.load %arg16[%c3_240, %c6_241, %c0_242, %c0_243] : memref<7x7x3x64xbf16, #tpu.memory_space<vmem>>, vector<1x1x3x64xbf16>
    %166 = vector.shape_cast %165 : vector<1x1x3x64xbf16> to vector<3x64xbf16>
    %cst_244 = arith.constant dense<0.000000e+00> : vector<16x64xf32>
    %167 = tpu.matmul %164, %166, %cst_244 {dimension_numbers = #tpu.dot_dimension_numbers<[1], [0], [0], [1], [0, 0, 1, 1], [], []>} : vector<16x3xbf16>, vector<3x64xbf16>, vector<16x64xf32> -> vector<16x64xf32>
    %168 = arith.addf %162, %167 : vector<16x64xf32>
    %c0_245 = arith.constant 0 : index
    %c0_246 = arith.constant 0 : index
    %c0_247 = arith.constant 0 : index
    %c0_248 = arith.constant 0 : index
    %169 = vector.load %arg10[%c0_245, %c0_246, %c0_247, %c0_248] : memref<1x1x19x3xbf16, #tpu.memory_space<vmem>>, vector<1x1x16x3xbf16>
    %170 = vector.shape_cast %169 : vector<1x1x16x3xbf16> to vector<16x3xbf16>
    %c4_249 = arith.constant 4 : index
    %c0_250 = arith.constant 0 : index
    %c0_251 = arith.constant 0 : index
    %c0_252 = arith.constant 0 : index
    %171 = vector.load %arg16[%c4_249, %c0_250, %c0_251, %c0_252] : memref<7x7x3x64xbf16, #tpu.memory_space<vmem>>, vector<1x1x3x64xbf16>
    %172 = vector.shape_cast %171 : vector<1x1x3x64xbf16> to vector<3x64xbf16>
    %cst_253 = arith.constant dense<0.000000e+00> : vector<16x64xf32>
    %173 = tpu.matmul %170, %172, %cst_253 {dimension_numbers = #tpu.dot_dimension_numbers<[1], [0], [0], [1], [0, 0, 1, 1], [], []>} : vector<16x3xbf16>, vector<3x64xbf16>, vector<16x64xf32> -> vector<16x64xf32>
    %174 = arith.addf %168, %173 : vector<16x64xf32>
    %c0_254 = arith.constant 0 : index
    %c0_255 = arith.constant 0 : index
    %c0_256 = arith.constant 0 : index
    %c0_257 = arith.constant 0 : index
    %175 = vector.load %arg11[%c0_254, %c0_255, %c0_256, %c0_257] : memref<1x1x19x3xbf16, #tpu.memory_space<vmem>>, vector<1x1x16x3xbf16>
    %176 = vector.shape_cast %175 : vector<1x1x16x3xbf16> to vector<16x3xbf16>
    %c4_258 = arith.constant 4 : index
    %c1_259 = arith.constant 1 : index
    %c0_260 = arith.constant 0 : index
    %c0_261 = arith.constant 0 : index
    %177 = vector.load %arg16[%c4_258, %c1_259, %c0_260, %c0_261] : memref<7x7x3x64xbf16, #tpu.memory_space<vmem>>, vector<1x1x3x64xbf16>
    %178 = vector.shape_cast %177 : vector<1x1x3x64xbf16> to vector<3x64xbf16>
    %cst_262 = arith.constant dense<0.000000e+00> : vector<16x64xf32>
    %179 = tpu.matmul %176, %178, %cst_262 {dimension_numbers = #tpu.dot_dimension_numbers<[1], [0], [0], [1], [0, 0, 1, 1], [], []>} : vector<16x3xbf16>, vector<3x64xbf16>, vector<16x64xf32> -> vector<16x64xf32>
    %180 = arith.addf %174, %179 : vector<16x64xf32>
    %c0_263 = arith.constant 0 : index
    %c0_264 = arith.constant 0 : index
    %c1_265 = arith.constant 1 : index
    %c0_266 = arith.constant 0 : index
    %181 = vector.load %arg10[%c0_263, %c0_264, %c1_265, %c0_266] : memref<1x1x19x3xbf16, #tpu.memory_space<vmem>>, vector<1x1x16x3xbf16>
    %182 = vector.shape_cast %181 : vector<1x1x16x3xbf16> to vector<16x3xbf16>
    %c4_267 = arith.constant 4 : index
    %c2_268 = arith.constant 2 : index
    %c0_269 = arith.constant 0 : index
    %c0_270 = arith.constant 0 : index
    %183 = vector.load %arg16[%c4_267, %c2_268, %c0_269, %c0_270] : memref<7x7x3x64xbf16, #tpu.memory_space<vmem>>, vector<1x1x3x64xbf16>
    %184 = vector.shape_cast %183 : vector<1x1x3x64xbf16> to vector<3x64xbf16>
    %cst_271 = arith.constant dense<0.000000e+00> : vector<16x64xf32>
    %185 = tpu.matmul %182, %184, %cst_271 {dimension_numbers = #tpu.dot_dimension_numbers<[1], [0], [0], [1], [0, 0, 1, 1], [], []>} : vector<16x3xbf16>, vector<3x64xbf16>, vector<16x64xf32> -> vector<16x64xf32>
    %186 = arith.addf %180, %185 : vector<16x64xf32>
    %c0_272 = arith.constant 0 : index
    %c0_273 = arith.constant 0 : index
    %c1_274 = arith.constant 1 : index
    %c0_275 = arith.constant 0 : index
    %187 = vector.load %arg11[%c0_272, %c0_273, %c1_274, %c0_275] : memref<1x1x19x3xbf16, #tpu.memory_space<vmem>>, vector<1x1x16x3xbf16>
    %188 = vector.shape_cast %187 : vector<1x1x16x3xbf16> to vector<16x3xbf16>
    %c4_276 = arith.constant 4 : index
    %c3_277 = arith.constant 3 : index
    %c0_278 = arith.constant 0 : index
    %c0_279 = arith.constant 0 : index
    %189 = vector.load %arg16[%c4_276, %c3_277, %c0_278, %c0_279] : memref<7x7x3x64xbf16, #tpu.memory_space<vmem>>, vector<1x1x3x64xbf16>
    %190 = vector.shape_cast %189 : vector<1x1x3x64xbf16> to vector<3x64xbf16>
    %cst_280 = arith.constant dense<0.000000e+00> : vector<16x64xf32>
    %191 = tpu.matmul %188, %190, %cst_280 {dimension_numbers = #tpu.dot_dimension_numbers<[1], [0], [0], [1], [0, 0, 1, 1], [], []>} : vector<16x3xbf16>, vector<3x64xbf16>, vector<16x64xf32> -> vector<16x64xf32>
    %192 = arith.addf %186, %191 : vector<16x64xf32>
    %c0_281 = arith.constant 0 : index
    %c0_282 = arith.constant 0 : index
    %c2_283 = arith.constant 2 : index
    %c0_284 = arith.constant 0 : index
    %193 = vector.load %arg10[%c0_281, %c0_282, %c2_283, %c0_284] : memref<1x1x19x3xbf16, #tpu.memory_space<vmem>>, vector<1x1x16x3xbf16>
    %194 = vector.shape_cast %193 : vector<1x1x16x3xbf16> to vector<16x3xbf16>
    %c4_285 = arith.constant 4 : index
    %c4_286 = arith.constant 4 : index
    %c0_287 = arith.constant 0 : index
    %c0_288 = arith.constant 0 : index
    %195 = vector.load %arg16[%c4_285, %c4_286, %c0_287, %c0_288] : memref<7x7x3x64xbf16, #tpu.memory_space<vmem>>, vector<1x1x3x64xbf16>
    %196 = vector.shape_cast %195 : vector<1x1x3x64xbf16> to vector<3x64xbf16>
    %cst_289 = arith.constant dense<0.000000e+00> : vector<16x64xf32>
    %197 = tpu.matmul %194, %196, %cst_289 {dimension_numbers = #tpu.dot_dimension_numbers<[1], [0], [0], [1], [0, 0, 1, 1], [], []>} : vector<16x3xbf16>, vector<3x64xbf16>, vector<16x64xf32> -> vector<16x64xf32>
    %198 = arith.addf %192, %197 : vector<16x64xf32>
    %c0_290 = arith.constant 0 : index
    %c0_291 = arith.constant 0 : index
    %c2_292 = arith.constant 2 : index
    %c0_293 = arith.constant 0 : index
    %199 = vector.load %arg11[%c0_290, %c0_291, %c2_292, %c0_293] : memref<1x1x19x3xbf16, #tpu.memory_space<vmem>>, vector<1x1x16x3xbf16>
    %200 = vector.shape_cast %199 : vector<1x1x16x3xbf16> to vector<16x3xbf16>
    %c4_294 = arith.constant 4 : index
    %c5_295 = arith.constant 5 : index
    %c0_296 = arith.constant 0 : index
    %c0_297 = arith.constant 0 : index
    %201 = vector.load %arg16[%c4_294, %c5_295, %c0_296, %c0_297] : memref<7x7x3x64xbf16, #tpu.memory_space<vmem>>, vector<1x1x3x64xbf16>
    %202 = vector.shape_cast %201 : vector<1x1x3x64xbf16> to vector<3x64xbf16>
    %cst_298 = arith.constant dense<0.000000e+00> : vector<16x64xf32>
    %203 = tpu.matmul %200, %202, %cst_298 {dimension_numbers = #tpu.dot_dimension_numbers<[1], [0], [0], [1], [0, 0, 1, 1], [], []>} : vector<16x3xbf16>, vector<3x64xbf16>, vector<16x64xf32> -> vector<16x64xf32>
    %204 = arith.addf %198, %203 : vector<16x64xf32>
    %c0_299 = arith.constant 0 : index
    %c0_300 = arith.constant 0 : index
    %c3_301 = arith.constant 3 : index
    %c0_302 = arith.constant 0 : index
    %205 = vector.load %arg10[%c0_299, %c0_300, %c3_301, %c0_302] : memref<1x1x19x3xbf16, #tpu.memory_space<vmem>>, vector<1x1x16x3xbf16>
    %206 = vector.shape_cast %205 : vector<1x1x16x3xbf16> to vector<16x3xbf16>
    %c4_303 = arith.constant 4 : index
    %c6_304 = arith.constant 6 : index
    %c0_305 = arith.constant 0 : index
    %c0_306 = arith.constant 0 : index
    %207 = vector.load %arg16[%c4_303, %c6_304, %c0_305, %c0_306] : memref<7x7x3x64xbf16, #tpu.memory_space<vmem>>, vector<1x1x3x64xbf16>
    %208 = vector.shape_cast %207 : vector<1x1x3x64xbf16> to vector<3x64xbf16>
    %cst_307 = arith.constant dense<0.000000e+00> : vector<16x64xf32>
    %209 = tpu.matmul %206, %208, %cst_307 {dimension_numbers = #tpu.dot_dimension_numbers<[1], [0], [0], [1], [0, 0, 1, 1], [], []>} : vector<16x3xbf16>, vector<3x64xbf16>, vector<16x64xf32> -> vector<16x64xf32>
    %210 = arith.addf %204, %209 : vector<16x64xf32>
    %c0_308 = arith.constant 0 : index
    %c0_309 = arith.constant 0 : index
    %c0_310 = arith.constant 0 : index
    %c0_311 = arith.constant 0 : index
    %211 = vector.load %arg12[%c0_308, %c0_309, %c0_310, %c0_311] : memref<1x1x19x3xbf16, #tpu.memory_space<vmem>>, vector<1x1x16x3xbf16>
    %212 = vector.shape_cast %211 : vector<1x1x16x3xbf16> to vector<16x3xbf16>
    %c5_312 = arith.constant 5 : index
    %c0_313 = arith.constant 0 : index
    %c0_314 = arith.constant 0 : index
    %c0_315 = arith.constant 0 : index
    %213 = vector.load %arg16[%c5_312, %c0_313, %c0_314, %c0_315] : memref<7x7x3x64xbf16, #tpu.memory_space<vmem>>, vector<1x1x3x64xbf16>
    %214 = vector.shape_cast %213 : vector<1x1x3x64xbf16> to vector<3x64xbf16>
    %cst_316 = arith.constant dense<0.000000e+00> : vector<16x64xf32>
    %215 = tpu.matmul %212, %214, %cst_316 {dimension_numbers = #tpu.dot_dimension_numbers<[1], [0], [0], [1], [0, 0, 1, 1], [], []>} : vector<16x3xbf16>, vector<3x64xbf16>, vector<16x64xf32> -> vector<16x64xf32>
    %216 = arith.addf %210, %215 : vector<16x64xf32>
    %c0_317 = arith.constant 0 : index
    %c0_318 = arith.constant 0 : index
    %c0_319 = arith.constant 0 : index
    %c0_320 = arith.constant 0 : index
    %217 = vector.load %arg13[%c0_317, %c0_318, %c0_319, %c0_320] : memref<1x1x19x3xbf16, #tpu.memory_space<vmem>>, vector<1x1x16x3xbf16>
    %218 = vector.shape_cast %217 : vector<1x1x16x3xbf16> to vector<16x3xbf16>
    %c5_321 = arith.constant 5 : index
    %c1_322 = arith.constant 1 : index
    %c0_323 = arith.constant 0 : index
    %c0_324 = arith.constant 0 : index
    %219 = vector.load %arg16[%c5_321, %c1_322, %c0_323, %c0_324] : memref<7x7x3x64xbf16, #tpu.memory_space<vmem>>, vector<1x1x3x64xbf16>
    %220 = vector.shape_cast %219 : vector<1x1x3x64xbf16> to vector<3x64xbf16>
    %cst_325 = arith.constant dense<0.000000e+00> : vector<16x64xf32>
    %221 = tpu.matmul %218, %220, %cst_325 {dimension_numbers = #tpu.dot_dimension_numbers<[1], [0], [0], [1], [0, 0, 1, 1], [], []>} : vector<16x3xbf16>, vector<3x64xbf16>, vector<16x64xf32> -> vector<16x64xf32>
    %222 = arith.addf %216, %221 : vector<16x64xf32>
    %c0_326 = arith.constant 0 : index
    %c0_327 = arith.constant 0 : index
    %c1_328 = arith.constant 1 : index
    %c0_329 = arith.constant 0 : index
    %223 = vector.load %arg12[%c0_326, %c0_327, %c1_328, %c0_329] : memref<1x1x19x3xbf16, #tpu.memory_space<vmem>>, vector<1x1x16x3xbf16>
    %224 = vector.shape_cast %223 : vector<1x1x16x3xbf16> to vector<16x3xbf16>
    %c5_330 = arith.constant 5 : index
    %c2_331 = arith.constant 2 : index
    %c0_332 = arith.constant 0 : index
    %c0_333 = arith.constant 0 : index
    %225 = vector.load %arg16[%c5_330, %c2_331, %c0_332, %c0_333] : memref<7x7x3x64xbf16, #tpu.memory_space<vmem>>, vector<1x1x3x64xbf16>
    %226 = vector.shape_cast %225 : vector<1x1x3x64xbf16> to vector<3x64xbf16>
    %cst_334 = arith.constant dense<0.000000e+00> : vector<16x64xf32>
    %227 = tpu.matmul %224, %226, %cst_334 {dimension_numbers = #tpu.dot_dimension_numbers<[1], [0], [0], [1], [0, 0, 1, 1], [], []>} : vector<16x3xbf16>, vector<3x64xbf16>, vector<16x64xf32> -> vector<16x64xf32>
    %228 = arith.addf %222, %227 : vector<16x64xf32>
    %c0_335 = arith.constant 0 : index
    %c0_336 = arith.constant 0 : index
    %c1_337 = arith.constant 1 : index
    %c0_338 = arith.constant 0 : index
    %229 = vector.load %arg13[%c0_335, %c0_336, %c1_337, %c0_338] : memref<1x1x19x3xbf16, #tpu.memory_space<vmem>>, vector<1x1x16x3xbf16>
    %230 = vector.shape_cast %229 : vector<1x1x16x3xbf16> to vector<16x3xbf16>
    %c5_339 = arith.constant 5 : index
    %c3_340 = arith.constant 3 : index
    %c0_341 = arith.constant 0 : index
    %c0_342 = arith.constant 0 : index
    %231 = vector.load %arg16[%c5_339, %c3_340, %c0_341, %c0_342] : memref<7x7x3x64xbf16, #tpu.memory_space<vmem>>, vector<1x1x3x64xbf16>
    %232 = vector.shape_cast %231 : vector<1x1x3x64xbf16> to vector<3x64xbf16>
    %cst_343 = arith.constant dense<0.000000e+00> : vector<16x64xf32>
    %233 = tpu.matmul %230, %232, %cst_343 {dimension_numbers = #tpu.dot_dimension_numbers<[1], [0], [0], [1], [0, 0, 1, 1], [], []>} : vector<16x3xbf16>, vector<3x64xbf16>, vector<16x64xf32> -> vector<16x64xf32>
    %234 = arith.addf %228, %233 : vector<16x64xf32>
    %c0_344 = arith.constant 0 : index
    %c0_345 = arith.constant 0 : index
    %c2_346 = arith.constant 2 : index
    %c0_347 = arith.constant 0 : index
    %235 = vector.load %arg12[%c0_344, %c0_345, %c2_346, %c0_347] : memref<1x1x19x3xbf16, #tpu.memory_space<vmem>>, vector<1x1x16x3xbf16>
    %236 = vector.shape_cast %235 : vector<1x1x16x3xbf16> to vector<16x3xbf16>
    %c5_348 = arith.constant 5 : index
    %c4_349 = arith.constant 4 : index
    %c0_350 = arith.constant 0 : index
    %c0_351 = arith.constant 0 : index
    %237 = vector.load %arg16[%c5_348, %c4_349, %c0_350, %c0_351] : memref<7x7x3x64xbf16, #tpu.memory_space<vmem>>, vector<1x1x3x64xbf16>
    %238 = vector.shape_cast %237 : vector<1x1x3x64xbf16> to vector<3x64xbf16>
    %cst_352 = arith.constant dense<0.000000e+00> : vector<16x64xf32>
    %239 = tpu.matmul %236, %238, %cst_352 {dimension_numbers = #tpu.dot_dimension_numbers<[1], [0], [0], [1], [0, 0, 1, 1], [], []>} : vector<16x3xbf16>, vector<3x64xbf16>, vector<16x64xf32> -> vector<16x64xf32>
    %240 = arith.addf %234, %239 : vector<16x64xf32>
    %c0_353 = arith.constant 0 : index
    %c0_354 = arith.constant 0 : index
    %c2_355 = arith.constant 2 : index
    %c0_356 = arith.constant 0 : index
    %241 = vector.load %arg13[%c0_353, %c0_354, %c2_355, %c0_356] : memref<1x1x19x3xbf16, #tpu.memory_space<vmem>>, vector<1x1x16x3xbf16>
    %242 = vector.shape_cast %241 : vector<1x1x16x3xbf16> to vector<16x3xbf16>
    %c5_357 = arith.constant 5 : index
    %c5_358 = arith.constant 5 : index
    %c0_359 = arith.constant 0 : index
    %c0_360 = arith.constant 0 : index
    %243 = vector.load %arg16[%c5_357, %c5_358, %c0_359, %c0_360] : memref<7x7x3x64xbf16, #tpu.memory_space<vmem>>, vector<1x1x3x64xbf16>
    %244 = vector.shape_cast %243 : vector<1x1x3x64xbf16> to vector<3x64xbf16>
    %cst_361 = arith.constant dense<0.000000e+00> : vector<16x64xf32>
    %245 = tpu.matmul %242, %244, %cst_361 {dimension_numbers = #tpu.dot_dimension_numbers<[1], [0], [0], [1], [0, 0, 1, 1], [], []>} : vector<16x3xbf16>, vector<3x64xbf16>, vector<16x64xf32> -> vector<16x64xf32>
    %246 = arith.addf %240, %245 : vector<16x64xf32>
    %c0_362 = arith.constant 0 : index
    %c0_363 = arith.constant 0 : index
    %c3_364 = arith.constant 3 : index
    %c0_365 = arith.constant 0 : index
    %247 = vector.load %arg12[%c0_362, %c0_363, %c3_364, %c0_365] : memref<1x1x19x3xbf16, #tpu.memory_space<vmem>>, vector<1x1x16x3xbf16>
    %248 = vector.shape_cast %247 : vector<1x1x16x3xbf16> to vector<16x3xbf16>
    %c5_366 = arith.constant 5 : index
    %c6_367 = arith.constant 6 : index
    %c0_368 = arith.constant 0 : index
    %c0_369 = arith.constant 0 : index
    %249 = vector.load %arg16[%c5_366, %c6_367, %c0_368, %c0_369] : memref<7x7x3x64xbf16, #tpu.memory_space<vmem>>, vector<1x1x3x64xbf16>
    %250 = vector.shape_cast %249 : vector<1x1x3x64xbf16> to vector<3x64xbf16>
    %cst_370 = arith.constant dense<0.000000e+00> : vector<16x64xf32>
    %251 = tpu.matmul %248, %250, %cst_370 {dimension_numbers = #tpu.dot_dimension_numbers<[1], [0], [0], [1], [0, 0, 1, 1], [], []>} : vector<16x3xbf16>, vector<3x64xbf16>, vector<16x64xf32> -> vector<16x64xf32>
    %252 = arith.addf %246, %251 : vector<16x64xf32>
    %c0_371 = arith.constant 0 : index
    %c0_372 = arith.constant 0 : index
    %c0_373 = arith.constant 0 : index
    %c0_374 = arith.constant 0 : index
    %253 = vector.load %arg14[%c0_371, %c0_372, %c0_373, %c0_374] : memref<1x1x19x3xbf16, #tpu.memory_space<vmem>>, vector<1x1x16x3xbf16>
    %254 = vector.shape_cast %253 : vector<1x1x16x3xbf16> to vector<16x3xbf16>
    %c6_375 = arith.constant 6 : index
    %c0_376 = arith.constant 0 : index
    %c0_377 = arith.constant 0 : index
    %c0_378 = arith.constant 0 : index
    %255 = vector.load %arg16[%c6_375, %c0_376, %c0_377, %c0_378] : memref<7x7x3x64xbf16, #tpu.memory_space<vmem>>, vector<1x1x3x64xbf16>
    %256 = vector.shape_cast %255 : vector<1x1x3x64xbf16> to vector<3x64xbf16>
    %cst_379 = arith.constant dense<0.000000e+00> : vector<16x64xf32>
    %257 = tpu.matmul %254, %256, %cst_379 {dimension_numbers = #tpu.dot_dimension_numbers<[1], [0], [0], [1], [0, 0, 1, 1], [], []>} : vector<16x3xbf16>, vector<3x64xbf16>, vector<16x64xf32> -> vector<16x64xf32>
    %258 = arith.addf %252, %257 : vector<16x64xf32>
    %c0_380 = arith.constant 0 : index
    %c0_381 = arith.constant 0 : index
    %c0_382 = arith.constant 0 : index
    %c0_383 = arith.constant 0 : index
    %259 = vector.load %arg15[%c0_380, %c0_381, %c0_382, %c0_383] : memref<1x1x19x3xbf16, #tpu.memory_space<vmem>>, vector<1x1x16x3xbf16>
    %260 = vector.shape_cast %259 : vector<1x1x16x3xbf16> to vector<16x3xbf16>
    %c6_384 = arith.constant 6 : index
    %c1_385 = arith.constant 1 : index
    %c0_386 = arith.constant 0 : index
    %c0_387 = arith.constant 0 : index
    %261 = vector.load %arg16[%c6_384, %c1_385, %c0_386, %c0_387] : memref<7x7x3x64xbf16, #tpu.memory_space<vmem>>, vector<1x1x3x64xbf16>
    %262 = vector.shape_cast %261 : vector<1x1x3x64xbf16> to vector<3x64xbf16>
    %cst_388 = arith.constant dense<0.000000e+00> : vector<16x64xf32>
    %263 = tpu.matmul %260, %262, %cst_388 {dimension_numbers = #tpu.dot_dimension_numbers<[1], [0], [0], [1], [0, 0, 1, 1], [], []>} : vector<16x3xbf16>, vector<3x64xbf16>, vector<16x64xf32> -> vector<16x64xf32>
    %264 = arith.addf %258, %263 : vector<16x64xf32>
    %c0_389 = arith.constant 0 : index
    %c0_390 = arith.constant 0 : index
    %c1_391 = arith.constant 1 : index
    %c0_392 = arith.constant 0 : index
    %265 = vector.load %arg14[%c0_389, %c0_390, %c1_391, %c0_392] : memref<1x1x19x3xbf16, #tpu.memory_space<vmem>>, vector<1x1x16x3xbf16>
    %266 = vector.shape_cast %265 : vector<1x1x16x3xbf16> to vector<16x3xbf16>
    %c6_393 = arith.constant 6 : index
    %c2_394 = arith.constant 2 : index
    %c0_395 = arith.constant 0 : index
    %c0_396 = arith.constant 0 : index
    %267 = vector.load %arg16[%c6_393, %c2_394, %c0_395, %c0_396] : memref<7x7x3x64xbf16, #tpu.memory_space<vmem>>, vector<1x1x3x64xbf16>
    %268 = vector.shape_cast %267 : vector<1x1x3x64xbf16> to vector<3x64xbf16>
    %cst_397 = arith.constant dense<0.000000e+00> : vector<16x64xf32>
    %269 = tpu.matmul %266, %268, %cst_397 {dimension_numbers = #tpu.dot_dimension_numbers<[1], [0], [0], [1], [0, 0, 1, 1], [], []>} : vector<16x3xbf16>, vector<3x64xbf16>, vector<16x64xf32> -> vector<16x64xf32>
    %270 = arith.addf %264, %269 : vector<16x64xf32>
    %c0_398 = arith.constant 0 : index
    %c0_399 = arith.constant 0 : index
    %c1_400 = arith.constant 1 : index
    %c0_401 = arith.constant 0 : index
    %271 = vector.load %arg15[%c0_398, %c0_399, %c1_400, %c0_401] : memref<1x1x19x3xbf16, #tpu.memory_space<vmem>>, vector<1x1x16x3xbf16>
    %272 = vector.shape_cast %271 : vector<1x1x16x3xbf16> to vector<16x3xbf16>
    %c6_402 = arith.constant 6 : index
    %c3_403 = arith.constant 3 : index
    %c0_404 = arith.constant 0 : index
    %c0_405 = arith.constant 0 : index
    %273 = vector.load %arg16[%c6_402, %c3_403, %c0_404, %c0_405] : memref<7x7x3x64xbf16, #tpu.memory_space<vmem>>, vector<1x1x3x64xbf16>
    %274 = vector.shape_cast %273 : vector<1x1x3x64xbf16> to vector<3x64xbf16>
    %cst_406 = arith.constant dense<0.000000e+00> : vector<16x64xf32>
    %275 = tpu.matmul %272, %274, %cst_406 {dimension_numbers = #tpu.dot_dimension_numbers<[1], [0], [0], [1], [0, 0, 1, 1], [], []>} : vector<16x3xbf16>, vector<3x64xbf16>, vector<16x64xf32> -> vector<16x64xf32>
    %276 = arith.addf %270, %275 : vector<16x64xf32>
    %c0_407 = arith.constant 0 : index
    %c0_408 = arith.constant 0 : index
    %c2_409 = arith.constant 2 : index
    %c0_410 = arith.constant 0 : index
    %277 = vector.load %arg14[%c0_407, %c0_408, %c2_409, %c0_410] : memref<1x1x19x3xbf16, #tpu.memory_space<vmem>>, vector<1x1x16x3xbf16>
    %278 = vector.shape_cast %277 : vector<1x1x16x3xbf16> to vector<16x3xbf16>
    %c6_411 = arith.constant 6 : index
    %c4_412 = arith.constant 4 : index
    %c0_413 = arith.constant 0 : index
    %c0_414 = arith.constant 0 : index
    %279 = vector.load %arg16[%c6_411, %c4_412, %c0_413, %c0_414] : memref<7x7x3x64xbf16, #tpu.memory_space<vmem>>, vector<1x1x3x64xbf16>
    %280 = vector.shape_cast %279 : vector<1x1x3x64xbf16> to vector<3x64xbf16>
    %cst_415 = arith.constant dense<0.000000e+00> : vector<16x64xf32>
    %281 = tpu.matmul %278, %280, %cst_415 {dimension_numbers = #tpu.dot_dimension_numbers<[1], [0], [0], [1], [0, 0, 1, 1], [], []>} : vector<16x3xbf16>, vector<3x64xbf16>, vector<16x64xf32> -> vector<16x64xf32>
    %282 = arith.addf %276, %281 : vector<16x64xf32>
    %c0_416 = arith.constant 0 : index
    %c0_417 = arith.constant 0 : index
    %c2_418 = arith.constant 2 : index
    %c0_419 = arith.constant 0 : index
    %283 = vector.load %arg15[%c0_416, %c0_417, %c2_418, %c0_419] : memref<1x1x19x3xbf16, #tpu.memory_space<vmem>>, vector<1x1x16x3xbf16>
    %284 = vector.shape_cast %283 : vector<1x1x16x3xbf16> to vector<16x3xbf16>
    %c6_420 = arith.constant 6 : index
    %c5_421 = arith.constant 5 : index
    %c0_422 = arith.constant 0 : index
    %c0_423 = arith.constant 0 : index
    %285 = vector.load %arg16[%c6_420, %c5_421, %c0_422, %c0_423] : memref<7x7x3x64xbf16, #tpu.memory_space<vmem>>, vector<1x1x3x64xbf16>
    %286 = vector.shape_cast %285 : vector<1x1x3x64xbf16> to vector<3x64xbf16>
    %cst_424 = arith.constant dense<0.000000e+00> : vector<16x64xf32>
    %287 = tpu.matmul %284, %286, %cst_424 {dimension_numbers = #tpu.dot_dimension_numbers<[1], [0], [0], [1], [0, 0, 1, 1], [], []>} : vector<16x3xbf16>, vector<3x64xbf16>, vector<16x64xf32> -> vector<16x64xf32>
    %288 = arith.addf %282, %287 : vector<16x64xf32>
    %c0_425 = arith.constant 0 : index
    %c0_426 = arith.constant 0 : index
    %c3_427 = arith.constant 3 : index
    %c0_428 = arith.constant 0 : index
    %289 = vector.load %arg14[%c0_425, %c0_426, %c3_427, %c0_428] : memref<1x1x19x3xbf16, #tpu.memory_space<vmem>>, vector<1x1x16x3xbf16>
    %290 = vector.shape_cast %289 : vector<1x1x16x3xbf16> to vector<16x3xbf16>
    %c6_429 = arith.constant 6 : index
    %c6_430 = arith.constant 6 : index
    %c0_431 = arith.constant 0 : index
    %c0_432 = arith.constant 0 : index
    %291 = vector.load %arg16[%c6_429, %c6_430, %c0_431, %c0_432] : memref<7x7x3x64xbf16, #tpu.memory_space<vmem>>, vector<1x1x3x64xbf16>
    %292 = vector.shape_cast %291 : vector<1x1x3x64xbf16> to vector<3x64xbf16>
    %cst_433 = arith.constant dense<0.000000e+00> : vector<16x64xf32>
    %293 = tpu.matmul %290, %292, %cst_433 {dimension_numbers = #tpu.dot_dimension_numbers<[1], [0], [0], [1], [0, 0, 1, 1], [], []>} : vector<16x3xbf16>, vector<3x64xbf16>, vector<16x64xf32> -> vector<16x64xf32>
    %294 = arith.addf %288, %293 : vector<16x64xf32>
    %c0_434 = arith.constant 0 : index
    %c0_435 = arith.constant 0 : index
    %295 = vector.load %arg17[%c0_434, %c0_435] : memref<1x64xf32, #tpu.memory_space<vmem>>, vector<1x64xf32>
    %296 = vector.broadcast %295 : vector<1x64xf32> to vector<16x64xf32>
    %297 = arith.addf %294, %296 : vector<16x64xf32>
    %cst_436 = arith.constant 0.000000e+00 : f32
    %298 = vector.broadcast %cst_436 : f32 to vector<16x64xf32>
    %299 = arith.maximumf %297, %298 : vector<16x64xf32>
    %300 = arith.truncf %299 : vector<16x64xf32> to vector<16x64xbf16>
    %c0_437 = arith.constant 0 : index
    %c0_438 = arith.constant 0 : index
    %c0_439 = arith.constant 0 : index
    %c0_440 = arith.constant 0 : index
    %301 = vector.load %arg18[%c0_437, %c0_438, %c0_439, %c0_440] : memref<1x1x16x64xbf16, #tpu.memory_space<vmem>>, vector<1x1x16x64xbf16>
    %302 = vector.shape_cast %301 : vector<1x1x16x64xbf16> to vector<16x64xbf16>
    %303 = vector.shape_cast %300 : vector<16x64xbf16> to vector<1x1x16x64xbf16>
    tpu.vector_store %arg18[%c0_437, %c0_438, %c0_439, %c0_440], %303 {strides = array<i32>} : memref<1x1x16x64xbf16, #tpu.memory_space<vmem>>, vector<1x1x16x64xbf16>,
    return
  }
  func.func @transform_0(%arg0: i32, %arg1: i32) -> (i32, i32, i32, i32) {
    %c2_i32 = arith.constant 2 : i32
    %0 = arith.muli %arg1, %c2_i32 : i32
    %c0_i32 = arith.constant 0 : i32
    %1 = arith.addi %0, %c0_i32 : i32
    %c0_i32_0 = arith.constant 0 : i32
    %c0_i32_1 = arith.constant 0 : i32
    %c0_i32_2 = arith.constant 0 : i32
    return %arg0, %1, %c0_i32_0, %c0_i32_1 : i32, i32, i32, i32
  }
  func.func @transform_1(%arg0: i32, %arg1: i32) -> (i32, i32, i32, i32) {
    %c2_i32 = arith.constant 2 : i32
    %0 = arith.muli %arg1, %c2_i32 : i32
    %c0_i32 = arith.constant 0 : i32
    %1 = arith.addi %0, %c0_i32 : i32
    %c0_i32_0 = arith.constant 0 : i32
    %c0_i32_1 = arith.constant 0 : i32
    %c0_i32_2 = arith.constant 0 : i32
    return %arg0, %1, %c0_i32_0, %c0_i32_1 : i32, i32, i32, i32
  }
  func.func @transform_2(%arg0: i32, %arg1: i32) -> (i32, i32, i32, i32) {
    %c2_i32 = arith.constant 2 : i32
    %0 = arith.muli %arg1, %c2_i32 : i32
    %c1_i32 = arith.constant 1 : i32
    %1 = arith.addi %0, %c1_i32 : i32
    %c0_i32 = arith.constant 0 : i32
    %c0_i32_0 = arith.constant 0 : i32
    %c0_i32_1 = arith.constant 0 : i32
    return %arg0, %1, %c0_i32, %c0_i32_0 : i32, i32, i32, i32
  }
  func.func @transform_3(%arg0: i32, %arg1: i32) -> (i32, i32, i32, i32) {
    %c2_i32 = arith.constant 2 : i32
    %0 = arith.muli %arg1, %c2_i32 : i32
    %c1_i32 = arith.constant 1 : i32
    %1 = arith.addi %0, %c1_i32 : i32
    %c0_i32 = arith.constant 0 : i32
    %c0_i32_0 = arith.constant 0 : i32
    %c0_i32_1 = arith.constant 0 : i32
    return %arg0, %1, %c0_i32, %c0_i32_0 : i32, i32, i32, i32
  }
  func.func @transform_4(%arg0: i32, %arg1: i32) -> (i32, i32, i32, i32) {
    %c2_i32 = arith.constant 2 : i32
    %0 = arith.muli %arg1, %c2_i32 : i32
    %c2_i32_0 = arith.constant 2 : i32
    %1 = arith.addi %0, %c2_i32_0 : i32
    %c0_i32 = arith.constant 0 : i32
    %c0_i32_1 = arith.constant 0 : i32
    %c0_i32_2 = arith.constant 0 : i32
    return %arg0, %1, %c0_i32, %c0_i32_1 : i32, i32, i32, i32
  }
  func.func @transform_5(%arg0: i32, %arg1: i32) -> (i32, i32, i32, i32) {
    %c2_i32 = arith.constant 2 : i32
    %0 = arith.muli %arg1, %c2_i32 : i32
    %c2_i32_0 = arith.constant 2 : i32
    %1 = arith.addi %0, %c2_i32_0 : i32
    %c0_i32 = arith.constant 0 : i32
    %c0_i32_1 = arith.constant 0 : i32
    %c0_i32_2 = arith.constant 0 : i32
    return %arg0, %1, %c0_i32, %c0_i32_1 : i32, i32, i32, i32
  }
  func.func @transform_6(%arg0: i32, %arg1: i32) -> (i32, i32, i32, i32) {
    %c2_i32 = arith.constant 2 : i32
    %0 = arith.muli %arg1, %c2_i32 : i32
    %c3_i32 = arith.constant 3 : i32
    %1 = arith.addi %0, %c3_i32 : i32
    %c0_i32 = arith.constant 0 : i32
    %c0_i32_0 = arith.constant 0 : i32
    %c0_i32_1 = arith.constant 0 : i32
    return %arg0, %1, %c0_i32, %c0_i32_0 : i32, i32, i32, i32
  }
  func.func @transform_7(%arg0: i32, %arg1: i32) -> (i32, i32, i32, i32) {
    %c2_i32 = arith.constant 2 : i32
    %0 = arith.muli %arg1, %c2_i32 : i32
    %c3_i32 = arith.constant 3 : i32
    %1 = arith.addi %0, %c3_i32 : i32
    %c0_i32 = arith.constant 0 : i32
    %c0_i32_0 = arith.constant 0 : i32
    %c0_i32_1 = arith.constant 0 : i32
    return %arg0, %1, %c0_i32, %c0_i32_0 : i32, i32, i32, i32
  }
  func.func @transform_8(%arg0: i32, %arg1: i32) -> (i32, i32, i32, i32) {
    %c2_i32 = arith.constant 2 : i32
    %0 = arith.muli %arg1, %c2_i32 : i32
    %c4_i32 = arith.constant 4 : i32
    %1 = arith.addi %0, %c4_i32 : i32
    %c0_i32 = arith.constant 0 : i32
    %c0_i32_0 = arith.constant 0 : i32
    %c0_i32_1 = arith.constant 0 : i32
    return %arg0, %1, %c0_i32, %c0_i32_0 : i32, i32, i32, i32
  }
  func.func @transform_9(%arg0: i32, %arg1: i32) -> (i32, i32, i32, i32) {
    %c2_i32 = arith.constant 2 : i32
    %0 = arith.muli %arg1, %c2_i32 : i32
    %c4_i32 = arith.constant 4 : i32
    %1 = arith.addi %0, %c4_i32 : i32
    %c0_i32 = arith.constant 0 : i32
    %c0_i32_0 = arith.constant 0 : i32
    %c0_i32_1 = arith.constant 0 : i32
    return %arg0, %1, %c0_i32, %c0_i32_0 : i32, i32, i32, i32
  }
  func.func @transform_10(%arg0: i32, %arg1: i32) -> (i32, i32, i32, i32) {
    %c2_i32 = arith.constant 2 : i32
    %0 = arith.muli %arg1, %c2_i32 : i32
    %c5_i32 = arith.constant 5 : i32
    %1 = arith.addi %0, %c5_i32 : i32
    %c0_i32 = arith.constant 0 : i32
    %c0_i32_0 = arith.constant 0 : i32
    %c0_i32_1 = arith.constant 0 : i32
    return %arg0, %1, %c0_i32, %c0_i32_0 : i32, i32, i32, i32
  }
  func.func @transform_11(%arg0: i32, %arg1: i32) -> (i32, i32, i32, i32) {
    %c2_i32 = arith.constant 2 : i32
    %0 = arith.muli %arg1, %c2_i32 : i32
    %c5_i32 = arith.constant 5 : i32
    %1 = arith.addi %0, %c5_i32 : i32
    %c0_i32 = arith.constant 0 : i32
    %c0_i32_0 = arith.constant 0 : i32
    %c0_i32_1 = arith.constant 0 : i32
    return %arg0, %1, %c0_i32, %c0_i32_0 : i32, i32, i32, i32
  }
  func.func @transform_12(%arg0: i32, %arg1: i32) -> (i32, i32, i32, i32) {
    %c2_i32 = arith.constant 2 : i32
    %0 = arith.muli %arg1, %c2_i32 : i32
    %c6_i32 = arith.constant 6 : i32
    %1 = arith.addi %0, %c6_i32 : i32
    %c0_i32 = arith.constant 0 : i32
    %c0_i32_0 = arith.constant 0 : i32
    %c0_i32_1 = arith.constant 0 : i32
    return %arg0, %1, %c0_i32, %c0_i32_0 : i32, i32, i32, i32
  }
  func.func @transform_13(%arg0: i32, %arg1: i32) -> (i32, i32, i32, i32) {
    %c2_i32 = arith.constant 2 : i32
    %0 = arith.muli %arg1, %c2_i32 : i32
    %c6_i32 = arith.constant 6 : i32
    %1 = arith.addi %0, %c6_i32 : i32
    %c0_i32 = arith.constant 0 : i32
    %c0_i32_0 = arith.constant 0 : i32
    %c0_i32_1 = arith.constant 0 : i32
    return %arg0, %1, %c0_i32, %c0_i32_0 : i32, i32, i32, i32
  }
  func.func @transform_14(%arg0: i32, %arg1: i32) -> (i32, i32, i32, i32) {
    %c0_i32 = arith.constant 0 : i32
    %c0_i32_0 = arith.constant 0 : i32
    %c0_i32_1 = arith.constant 0 : i32
    %c0_i32_2 = arith.constant 0 : i32
    %c0_i32_3 = arith.constant 0 : i32
    return %c0_i32, %c0_i32_0, %c0_i32_1, %c0_i32_2 : i32, i32, i32, i32
  }
  func.func @transform_15(%arg0: i32, %arg1: i32) -> (i32, i32) {
    %c0_i32 = arith.constant 0 : i32
    %c0_i32_0 = arith.constant 0 : i32
    %c0_i32_1 = arith.constant 0 : i32
    return %c0_i32, %c0_i32_0 : i32, i32
  }
  func.func @transform_16(%arg0: i32, %arg1: i32) -> (i32, i32, i32, i32) {
    %c0_i32 = arith.constant 0 : i32
    %c0_i32_0 = arith.constant 0 : i32
    %c0_i32_1 = arith.constant 0 : i32
    return %arg0, %arg1, %c0_i32, %c0_i32_0 : i32, i32, i32, i32
  }
}

</mosaic_0001>

<llo_original>
// kernel: tpu_custom_call.1
$region0: #{tpu_custom_call.1}
  #allocation0 [shape = 'u32[]', space=smem, size = 0x4, offset = 0x4, fixed_abs, tag = 'smem constant byte address 0x4 - core index']
  #allocation1 [shape = 'u32[144,128]{1,0:T(1,128)}', space=vmem, size = 0x12000, scoped, tag = 'internal scratch']
  %s0 = inlined_call_operand.vmem [shape: bf16[2,38,19,3], index: 0, kind: input, shape index: {}]
  %s1 = inlined_call_operand.vmem [shape: bf16[2,38,19,3], index: 1, kind: input, shape index: {}]
  %s2 = inlined_call_operand.vmem [shape: bf16[2,38,19,3], index: 2, kind: input, shape index: {}]
  %s3 = inlined_call_operand.vmem [shape: bf16[2,38,19,3], index: 3, kind: input, shape index: {}]
  %s4 = inlined_call_operand.vmem [shape: bf16[2,38,19,3], index: 4, kind: input, shape index: {}]
  %s5 = inlined_call_operand.vmem [shape: bf16[2,38,19,3], index: 5, kind: input, shape index: {}]
  %s6 = inlined_call_operand.vmem [shape: bf16[2,38,19,3], index: 6, kind: input, shape index: {}]
  %s7 = inlined_call_operand.vmem [shape: bf16[2,38,19,3], index: 7, kind: input, shape index: {}]
  %s8 = inlined_call_operand.vmem [shape: bf16[2,38,19,3], index: 8, kind: input, shape index: {}]
  %s9 = inlined_call_operand.vmem [shape: bf16[2,38,19,3], index: 9, kind: input, shape index: {}]
  %s10 = inlined_call_operand.vmem [shape: bf16[2,38,19,3], index: 10, kind: input, shape index: {}]
  %s11 = inlined_call_operand.vmem [shape: bf16[2,38,19,3], index: 11, kind: input, shape index: {}]
  %s12 = inlined_call_operand.vmem [shape: bf16[2,38,19,3], index: 12, kind: input, shape index: {}]
  %s13 = inlined_call_operand.vmem [shape: bf16[2,38,19,3], index: 13, kind: input, shape index: {}]
  %s14 = inlined_call_operand.vmem [shape: bf16[7,7,3,64], index: 14, kind: input, shape index: {}]
  %s15 = inlined_call_operand.vmem [shape: f32[1,64], index: 15, kind: input, shape index: {}]
  %s16 = inlined_call_operand.hbm [shape: bf16[2,16,16,64], index: 16, kind: output, shape index: {}]
  %s17 = sld [smem:[#allocation0]]
  $region97: #{tpu_custom_call.1} parent=0
    _
  %s19 = ssub.s32 1, %s17
  %s20 = scalar_select 0, %s19, %s17
  $region1: #{tpu_custom_call.1} parent=0
    #allocation2 [shape = 'u8[8192]{0}', space=vmem, size = 0x2000, scoped, tag = 'output window, operand 0']
    #allocation3 [shape = 's32[2]{0}', space=sflag, size = 0x8, scoped, tag = 'scoped memory for tpu_custom_call.1']
    %21 = vsyncpa [#allocation3], 0
    %s22 = scalar_lea.sflag [#allocation3], 1
    %23 = vsyncpa %s22, 0
    loop: start=0, step=1, limit=34
    $region2: #{tpu_custom_call.1} parent=1 // loop_pre_header
      _
    $region3: #{tpu_custom_call.1} parent=1 // loop_header
      %s25 = sphi 0, %s29
      %p26 = scmp.ge.s32.totalorder %s25, 34
      %s32 = sphi 0, %s44
      %s33 = sphi 0, %s40
      %s34 = sphi 0, %s32
      %s35 = sphi 0, %s33
      %s36 = sphi 0, %s34
      %s37 = sphi 0, %s35
      %s51 = sphi 0, %s53
      %s54 = sphi 0, %s51
      %s55 = sphi 0, %s54
      %s71 = sphi 0, %s55
      %s81 = sphi 0, %s83
      %s84 = sphi 0, %s81
      %s85 = sphi 0, %s84
      %s101 = sphi 0, %s85
      %s113 = sphi 0, %s115
      %s116 = sphi 0, %s113
      %s117 = sphi 0, %s116
      %s133 = sphi 0, %s117
      %s145 = sphi 0, %s147
      %s148 = sphi 0, %s145
      %s149 = sphi 0, %s148
      %s165 = sphi 0, %s149
      %s177 = sphi 0, %s179
      %s180 = sphi 0, %s177
      %s181 = sphi 0, %s180
      %s197 = sphi 0, %s181
      %s209 = sphi 0, %s211
      %s212 = sphi 0, %s209
      %s213 = sphi 0, %s212
      %s229 = sphi 0, %s213
      %s241 = sphi 0, %s243
      %s244 = sphi 0, %s241
      %s245 = sphi 0, %s244
      %s261 = sphi 0, %s245
      %s273 = sphi 0, %s275
      %s276 = sphi 0, %s273
      %s277 = sphi 0, %s276
      %s293 = sphi 0, %s277
      %s305 = sphi 0, %s307
      %s308 = sphi 0, %s305
      %s309 = sphi 0, %s308
      %s325 = sphi 0, %s309
      %s337 = sphi 0, %s339
      %s340 = sphi 0, %s337
      %s341 = sphi 0, %s340
      %s357 = sphi 0, %s341
      %s369 = sphi 0, %s371
      %s372 = sphi 0, %s369
      %s373 = sphi 0, %s372
      %s389 = sphi 0, %s373
      %s401 = sphi 0, %s403
      %s404 = sphi 0, %s401
      %s405 = sphi 0, %s404
      %s421 = sphi 0, %s405
      %s433 = sphi 0, %s435
      %s436 = sphi 0, %s433
      %s437 = sphi 0, %s436
      %s453 = sphi 0, %s437
      %s465 = sphi 0, %s467
      %s468 = sphi 0, %s465
      %s469 = sphi 0, %s468
      %s485 = sphi 0, %s469
      %s489 = sphi 0, %s489
      %s491 = sphi 0, %s489
      %s492 = sphi 0, %s491
      %s506 = sphi 0, %s492
      %s510 = sphi 0, %s510
      %s512 = sphi 0, %s510
      %s513 = sphi 0, %s512
      %s527 = sphi 0, %s513
      %s535 = sphi 0, %s537
      %s538 = sphi 0, %s535
      %s539 = sphi 0, %s538
      %s555 = sphi 0, %s539
    $region4: #{tpu_custom_call.1} parent=1 // loop_header_branch
      %28 = sbr.rel (%p26) target = $region8
    $region5: #{tpu_custom_call.1} parent=1 // loop_body
      %s30 = ssub.s32 %s25, 1
      %s31 = ssub.s32 %s25, 2
      %s38 = sadd.s32 1, %s33
      %p39 = scmp.ge.s32.totalorder %s38, 16
      %s40 = scalar_select %p39, 0, %s38
      %s41 = sadd.s32 1, %s32
      %s42 = scalar_select %p39, %s41, %s32
      %p43 = scmp.ge.s32.totalorder %s42, 2
      %s44 = scalar_select %p43, 0, %s42
      %s45 = smul.u32 %s33, 2
      %s46 = smul.u32 %s40, 2
      %s47 = ssub.s32 %s32, %s44
      %s48 = ssub.s32 %s45, %s46
      %s49 = sor.u32 %s47, %s48
      %p50 = scmp.eq.s32.totalorder %s49, 0
      %s52 = sadd.s32 %s51, 1
      %s53 = scalar_select %p50, %s51, %s52
      %p56 = pneg %p50
      %p57 = scmp.eq.s32.totalorder %s25, 31
      %p58 = por %p56, %p57
      %p59 = scmp.ne.s32.totalorder %s51, %s54
      %p60 = scmp.eq.s32.totalorder %s25, 0
      %p61 = por %p59, %p60
      %p62 = scmp.ne.s32.totalorder %s51, %s54
      %p63 = scmp.eq.s32.totalorder %s30, 31
      %p64 = por %p62, %p63
      %p65 = scmp.ne.s32.totalorder %s54, %s55
      %p66 = scmp.eq.s32.totalorder %s30, 0
      %p67 = por %p65, %p66
      %p68 = scmp.ne.s32.totalorder %s54, %s55
      %p69 = scmp.eq.s32.totalorder %s31, 31
      %p70 = por %p68, %p69
      %p72 = scmp.ne.s32.totalorder %s55, %s71
      %p73 = scmp.eq.s32.totalorder %s31, 0
      %p74 = por %p72, %p73
      %s75 = smul.u32 %s33, 2
      %s76 = smul.u32 %s40, 2
      %s77 = ssub.s32 %s32, %s44
      %s78 = ssub.s32 %s75, %s76
      %s79 = sor.u32 %s77, %s78
      %p80 = scmp.eq.s32.totalorder %s79, 0
      %s82 = sadd.s32 %s81, 1
      %s83 = scalar_select %p80, %s81, %s82
      %p86 = pneg %p80
      %p87 = scmp.eq.s32.totalorder %s25, 31
      %p88 = por %p86, %p87
      %p89 = scmp.ne.s32.totalorder %s81, %s84
      %p90 = scmp.eq.s32.totalorder %s25, 0
      %p91 = por %p89, %p90
      %p92 = scmp.ne.s32.totalorder %s81, %s84
      %p93 = scmp.eq.s32.totalorder %s30, 31
      %p94 = por %p92, %p93
      %p95 = scmp.ne.s32.totalorder %s84, %s85
      %p96 = scmp.eq.s32.totalorder %s30, 0
      %p97 = por %p95, %p96
      %p98 = scmp.ne.s32.totalorder %s84, %s85
      %p99 = scmp.eq.s32.totalorder %s31, 31
      %p100 = por %p98, %p99
      %p102 = scmp.ne.s32.totalorder %s85, %s101
      %p103 = scmp.eq.s32.totalorder %s31, 0
      %p104 = por %p102, %p103
      %s105 = smul.u32 %s33, 2
      %s106 = sadd.s32 %s105, 1
      %s107 = smul.u32 %s40, 2
      %s108 = sadd.s32 %s107, 1
      %s109 = ssub.s32 %s32, %s44
      %s110 = ssub.s32 %s106, %s108
      %s111 = sor.u32 %s109, %s110
      %p112 = scmp.eq.s32.totalorder %s111, 0
      %s114 = sadd.s32 %s113, 1
      %s115 = scalar_select %p112, %s113, %s114
      %p118 = pneg %p112
      %p119 = scmp.eq.s32.totalorder %s25, 31
      %p120 = por %p118, %p119
      %p121 = scmp.ne.s32.totalorder %s113, %s116
      %p122 = scmp.eq.s32.totalorder %s25, 0
      %p123 = por %p121, %p122
      %p124 = scmp.ne.s32.totalorder %s113, %s116
      %p125 = scmp.eq.s32.totalorder %s30, 31
      %p126 = por %p124, %p125
      %p127 = scmp.ne.s32.totalorder %s116, %s117
      %p128 = scmp.eq.s32.totalorder %s30, 0
      %p129 = por %p127, %p128
      %p130 = scmp.ne.s32.totalorder %s116, %s117
      %p131 = scmp.eq.s32.totalorder %s31, 31
      %p132 = por %p130, %p131
      %p134 = scmp.ne.s32.totalorder %s117, %s133
      %p135 = scmp.eq.s32.totalorder %s31, 0
      %p136 = por %p134, %p135
      %s137 = smul.u32 %s33, 2
      %s138 = sadd.s32 %s137, 1
      %s139 = smul.u32 %s40, 2
      %s140 = sadd.s32 %s139, 1
      %s141 = ssub.s32 %s32, %s44
      %s142 = ssub.s32 %s138, %s140
      %s143 = sor.u32 %s141, %s142
      %p144 = scmp.eq.s32.totalorder %s143, 0
      %s146 = sadd.s32 %s145, 1
      %s147 = scalar_select %p144, %s145, %s146
      %p150 = pneg %p144
      %p151 = scmp.eq.s32.totalorder %s25, 31
      %p152 = por %p150, %p151
      %p153 = scmp.ne.s32.totalorder %s145, %s148
      %p154 = scmp.eq.s32.totalorder %s25, 0
      %p155 = por %p153, %p154
      %p156 = scmp.ne.s32.totalorder %s145, %s148
      %p157 = scmp.eq.s32.totalorder %s30, 31
      %p158 = por %p156, %p157
      %p159 = scmp.ne.s32.totalorder %s148, %s149
      %p160 = scmp.eq.s32.totalorder %s30, 0
      %p161 = por %p159, %p160
      %p162 = scmp.ne.s32.totalorder %s148, %s149
      %p163 = scmp.eq.s32.totalorder %s31, 31
      %p164 = por %p162, %p163
      %p166 = scmp.ne.s32.totalorder %s149, %s165
      %p167 = scmp.eq.s32.totalorder %s31, 0
      %p168 = por %p166, %p167
      %s169 = smul.u32 %s33, 2
      %s170 = sadd.s32 %s169, 2
      %s171 = smul.u32 %s40, 2
      %s172 = sadd.s32 %s171, 2
      %s173 = ssub.s32 %s32, %s44
      %s174 = ssub.s32 %s170, %s172
      %s175 = sor.u32 %s173, %s174
      %p176 = scmp.eq.s32.totalorder %s175, 0
      %s178 = sadd.s32 %s177, 1
      %s179 = scalar_select %p176, %s177, %s178
      %p182 = pneg %p176
      %p183 = scmp.eq.s32.totalorder %s25, 31
      %p184 = por %p182, %p183
      %p185 = scmp.ne.s32.totalorder %s177, %s180
      %p186 = scmp.eq.s32.totalorder %s25, 0
      %p187 = por %p185, %p186
      %p188 = scmp.ne.s32.totalorder %s177, %s180
      %p189 = scmp.eq.s32.totalorder %s30, 31
      %p190 = por %p188, %p189
      %p191 = scmp.ne.s32.totalorder %s180, %s181
      %p192 = scmp.eq.s32.totalorder %s30, 0
      %p193 = por %p191, %p192
      %p194 = scmp.ne.s32.totalorder %s180, %s181
      %p195 = scmp.eq.s32.totalorder %s31, 31
      %p196 = por %p194, %p195
      %p198 = scmp.ne.s32.totalorder %s181, %s197
      %p199 = scmp.eq.s32.totalorder %s31, 0
      %p200 = por %p198, %p199
      %s201 = smul.u32 %s33, 2
      %s202 = sadd.s32 %s201, 2
      %s203 = smul.u32 %s40, 2
      %s204 = sadd.s32 %s203, 2
      %s205 = ssub.s32 %s32, %s44
      %s206 = ssub.s32 %s202, %s204
      %s207 = sor.u32 %s205, %s206
      %p208 = scmp.eq.s32.totalorder %s207, 0
      %s210 = sadd.s32 %s209, 1
      %s211 = scalar_select %p208, %s209, %s210
      %p214 = pneg %p208
      %p215 = scmp.eq.s32.totalorder %s25, 31
      %p216 = por %p214, %p215
      %p217 = scmp.ne.s32.totalorder %s209, %s212
      %p218 = scmp.eq.s32.totalorder %s25, 0
      %p219 = por %p217, %p218
      %p220 = scmp.ne.s32.totalorder %s209, %s212
      %p221 = scmp.eq.s32.totalorder %s30, 31
      %p222 = por %p220, %p221
      %p223 = scmp.ne.s32.totalorder %s212, %s213
      %p224 = scmp.eq.s32.totalorder %s30, 0
      %p225 = por %p223, %p224
      %p226 = scmp.ne.s32.totalorder %s212, %s213
      %p227 = scmp.eq.s32.totalorder %s31, 31
      %p228 = por %p226, %p227
      %p230 = scmp.ne.s32.totalorder %s213, %s229
      %p231 = scmp.eq.s32.totalorder %s31, 0
      %p232 = por %p230, %p231
      %s233 = smul.u32 %s33, 2
      %s234 = sadd.s32 %s233, 3
      %s235 = smul.u32 %s40, 2
      %s236 = sadd.s32 %s235, 3
      %s237 = ssub.s32 %s32, %s44
      %s238 = ssub.s32 %s234, %s236
      %s239 = sor.u32 %s237, %s238
      %p240 = scmp.eq.s32.totalorder %s239, 0
      %s242 = sadd.s32 %s241, 1
      %s243 = scalar_select %p240, %s241, %s242
      %p246 = pneg %p240
      %p247 = scmp.eq.s32.totalorder %s25, 31
      %p248 = por %p246, %p247
      %p249 = scmp.ne.s32.totalorder %s241, %s244
      %p250 = scmp.eq.s32.totalorder %s25, 0
      %p251 = por %p249, %p250
      %p252 = scmp.ne.s32.totalorder %s241, %s244
      %p253 = scmp.eq.s32.totalorder %s30, 31
      %p254 = por %p252, %p253
      %p255 = scmp.ne.s32.totalorder %s244, %s245
      %p256 = scmp.eq.s32.totalorder %s30, 0
      %p257 = por %p255, %p256
      %p258 = scmp.ne.s32.totalorder %s244, %s245
      %p259 = scmp.eq.s32.totalorder %s31, 31
      %p260 = por %p258, %p259
      %p262 = scmp.ne.s32.totalorder %s245, %s261
      %p263 = scmp.eq.s32.totalorder %s31, 0
      %p264 = por %p262, %p263
      %s265 = smul.u32 %s33, 2
      %s266 = sadd.s32 %s265, 3
      %s267 = smul.u32 %s40, 2
      %s268 = sadd.s32 %s267, 3
      %s269 = ssub.s32 %s32, %s44
      %s270 = ssub.s32 %s266, %s268
      %s271 = sor.u32 %s269, %s270
      %p272 = scmp.eq.s32.totalorder %s271, 0
      %s274 = sadd.s32 %s273, 1
      %s275 = scalar_select %p272, %s273, %s274
      %p278 = pneg %p272
      %p279 = scmp.eq.s32.totalorder %s25, 31
      %p280 = por %p278, %p279
      %p281 = scmp.ne.s32.totalorder %s273, %s276
      %p282 = scmp.eq.s32.totalorder %s25, 0
      %p283 = por %p281, %p282
      %p284 = scmp.ne.s32.totalorder %s273, %s276
      %p285 = scmp.eq.s32.totalorder %s30, 31
      %p286 = por %p284, %p285
      %p287 = scmp.ne.s32.totalorder %s276, %s277
      %p288 = scmp.eq.s32.totalorder %s30, 0
      %p289 = por %p287, %p288
      %p290 = scmp.ne.s32.totalorder %s276, %s277
      %p291 = scmp.eq.s32.totalorder %s31, 31
      %p292 = por %p290, %p291
      %p294 = scmp.ne.s32.totalorder %s277, %s293
      %p295 = scmp.eq.s32.totalorder %s31, 0
      %p296 = por %p294, %p295
      %s297 = smul.u32 %s33, 2
      %s298 = sadd.s32 %s297, 4
      %s299 = smul.u32 %s40, 2
      %s300 = sadd.s32 %s299, 4
      %s301 = ssub.s32 %s32, %s44
      %s302 = ssub.s32 %s298, %s300
      %s303 = sor.u32 %s301, %s302
      %p304 = scmp.eq.s32.totalorder %s303, 0
      %s306 = sadd.s32 %s305, 1
      %s307 = scalar_select %p304, %s305, %s306
      %p310 = pneg %p304
      %p311 = scmp.eq.s32.totalorder %s25, 31
      %p312 = por %p310, %p311
      %p313 = scmp.ne.s32.totalorder %s305, %s308
      %p314 = scmp.eq.s32.totalorder %s25, 0
      %p315 = por %p313, %p314
      %p316 = scmp.ne.s32.totalorder %s305, %s308
      %p317 = scmp.eq.s32.totalorder %s30, 31
      %p318 = por %p316, %p317
      %p319 = scmp.ne.s32.totalorder %s308, %s309
      %p320 = scmp.eq.s32.totalorder %s30, 0
      %p321 = por %p319, %p320
      %p322 = scmp.ne.s32.totalorder %s308, %s309
      %p323 = scmp.eq.s32.totalorder %s31, 31
      %p324 = por %p322, %p323
      %p326 = scmp.ne.s32.totalorder %s309, %s325
      %p327 = scmp.eq.s32.totalorder %s31, 0
      %p328 = por %p326, %p327
      %s329 = smul.u32 %s33, 2
      %s330 = sadd.s32 %s329, 4
      %s331 = smul.u32 %s40, 2
      %s332 = sadd.s32 %s331, 4
      %s333 = ssub.s32 %s32, %s44
      %s334 = ssub.s32 %s330, %s332
      %s335 = sor.u32 %s333, %s334
      %p336 = scmp.eq.s32.totalorder %s335, 0
      %s338 = sadd.s32 %s337, 1
      %s339 = scalar_select %p336, %s337, %s338
      %p342 = pneg %p336
      %p343 = scmp.eq.s32.totalorder %s25, 31
      %p344 = por %p342, %p343
      %p345 = scmp.ne.s32.totalorder %s337, %s340
      %p346 = scmp.eq.s32.totalorder %s25, 0
      %p347 = por %p345, %p346
      %p348 = scmp.ne.s32.totalorder %s337, %s340
      %p349 = scmp.eq.s32.totalorder %s30, 31
      %p350 = por %p348, %p349
      %p351 = scmp.ne.s32.totalorder %s340, %s341
      %p352 = scmp.eq.s32.totalorder %s30, 0
      %p353 = por %p351, %p352
      %p354 = scmp.ne.s32.totalorder %s340, %s341
      %p355 = scmp.eq.s32.totalorder %s31, 31
      %p356 = por %p354, %p355
      %p358 = scmp.ne.s32.totalorder %s341, %s357
      %p359 = scmp.eq.s32.totalorder %s31, 0
      %p360 = por %p358, %p359
      %s361 = smul.u32 %s33, 2
      %s362 = sadd.s32 %s361, 5
      %s363 = smul.u32 %s40, 2
      %s364 = sadd.s32 %s363, 5
      %s365 = ssub.s32 %s32, %s44
      %s366 = ssub.s32 %s362, %s364
      %s367 = sor.u32 %s365, %s366
      %p368 = scmp.eq.s32.totalorder %s367, 0
      %s370 = sadd.s32 %s369, 1
      %s371 = scalar_select %p368, %s369, %s370
      %p374 = pneg %p368
      %p375 = scmp.eq.s32.totalorder %s25, 31
      %p376 = por %p374, %p375
      %p377 = scmp.ne.s32.totalorder %s369, %s372
      %p378 = scmp.eq.s32.totalorder %s25, 0
      %p379 = por %p377, %p378
      %p380 = scmp.ne.s32.totalorder %s369, %s372
      %p381 = scmp.eq.s32.totalorder %s30, 31
      %p382 = por %p380, %p381
      %p383 = scmp.ne.s32.totalorder %s372, %s373
      %p384 = scmp.eq.s32.totalorder %s30, 0
      %p385 = por %p383, %p384
      %p386 = scmp.ne.s32.totalorder %s372, %s373
      %p387 = scmp.eq.s32.totalorder %s31, 31
      %p388 = por %p386, %p387
      %p390 = scmp.ne.s32.totalorder %s373, %s389
      %p391 = scmp.eq.s32.totalorder %s31, 0
      %p392 = por %p390, %p391
      %s393 = smul.u32 %s33, 2
      %s394 = sadd.s32 %s393, 5
      %s395 = smul.u32 %s40, 2
      %s396 = sadd.s32 %s395, 5
      %s397 = ssub.s32 %s32, %s44
      %s398 = ssub.s32 %s394, %s396
      %s399 = sor.u32 %s397, %s398
      %p400 = scmp.eq.s32.totalorder %s399, 0
      %s402 = sadd.s32 %s401, 1
      %s403 = scalar_select %p400, %s401, %s402
      %p406 = pneg %p400
      %p407 = scmp.eq.s32.totalorder %s25, 31
      %p408 = por %p406, %p407
      %p409 = scmp.ne.s32.totalorder %s401, %s404
      %p410 = scmp.eq.s32.totalorder %s25, 0
      %p411 = por %p409, %p410
      %p412 = scmp.ne.s32.totalorder %s401, %s404
      %p413 = scmp.eq.s32.totalorder %s30, 31
      %p414 = por %p412, %p413
      %p415 = scmp.ne.s32.totalorder %s404, %s405
      %p416 = scmp.eq.s32.totalorder %s30, 0
      %p417 = por %p415, %p416
      %p418 = scmp.ne.s32.totalorder %s404, %s405
      %p419 = scmp.eq.s32.totalorder %s31, 31
      %p420 = por %p418, %p419
      %p422 = scmp.ne.s32.totalorder %s405, %s421
      %p423 = scmp.eq.s32.totalorder %s31, 0
      %p424 = por %p422, %p423
      %s425 = smul.u32 %s33, 2
      %s426 = sadd.s32 %s425, 6
      %s427 = smul.u32 %s40, 2
      %s428 = sadd.s32 %s427, 6
      %s429 = ssub.s32 %s32, %s44
      %s430 = ssub.s32 %s426, %s428
      %s431 = sor.u32 %s429, %s430
      %p432 = scmp.eq.s32.totalorder %s431, 0
      %s434 = sadd.s32 %s433, 1
      %s435 = scalar_select %p432, %s433, %s434
      %p438 = pneg %p432
      %p439 = scmp.eq.s32.totalorder %s25, 31
      %p440 = por %p438, %p439
      %p441 = scmp.ne.s32.totalorder %s433, %s436
      %p442 = scmp.eq.s32.totalorder %s25, 0
      %p443 = por %p441, %p442
      %p444 = scmp.ne.s32.totalorder %s433, %s436
      %p445 = scmp.eq.s32.totalorder %s30, 31
      %p446 = por %p444, %p445
      %p447 = scmp.ne.s32.totalorder %s436, %s437
      %p448 = scmp.eq.s32.totalorder %s30, 0
      %p449 = por %p447, %p448
      %p450 = scmp.ne.s32.totalorder %s436, %s437
      %p451 = scmp.eq.s32.totalorder %s31, 31
      %p452 = por %p450, %p451
      %p454 = scmp.ne.s32.totalorder %s437, %s453
      %p455 = scmp.eq.s32.totalorder %s31, 0
      %p456 = por %p454, %p455
      %s457 = smul.u32 %s33, 2
      %s458 = sadd.s32 %s457, 6
      %s459 = smul.u32 %s40, 2
      %s460 = sadd.s32 %s459, 6
      %s461 = ssub.s32 %s32, %s44
      %s462 = ssub.s32 %s458, %s460
      %s463 = sor.u32 %s461, %s462
      %p464 = scmp.eq.s32.totalorder %s463, 0
      %s466 = sadd.s32 %s465, 1
      %s467 = scalar_select %p464, %s465, %s466
      %p470 = pneg %p464
      %p471 = scmp.eq.s32.totalorder %s25, 31
      %p472 = por %p470, %p471
      %p473 = scmp.ne.s32.totalorder %s465, %s468
      %p474 = scmp.eq.s32.totalorder %s25, 0
      %p475 = por %p473, %p474
      %p476 = scmp.ne.s32.totalorder %s465, %s468
      %p477 = scmp.eq.s32.totalorder %s30, 31
      %p478 = por %p476, %p477
      %p479 = scmp.ne.s32.totalorder %s468, %s469
      %p480 = scmp.eq.s32.totalorder %s30, 0
      %p481 = por %p479, %p480
      %p482 = scmp.ne.s32.totalorder %s468, %s469
      %p483 = scmp.eq.s32.totalorder %s31, 31
      %p484 = por %p482, %p483
      %p486 = scmp.ne.s32.totalorder %s469, %s485
      %p487 = scmp.eq.s32.totalorder %s31, 0
      %p488 = por %p486, %p487
      %s490 = sadd.s32 %s489, 1
      %p493 = scmp.eq.s32.totalorder %s25, 31
      %p494 = scmp.ne.s32.totalorder %s489, %s491
      %p495 = scmp.eq.s32.totalorder %s25, 0
      %p496 = por %p494, %p495
      %p497 = scmp.ne.s32.totalorder %s489, %s491
      %p498 = scmp.eq.s32.totalorder %s30, 31
      %p499 = por %p497, %p498
      %p500 = scmp.ne.s32.totalorder %s491, %s492
      %p501 = scmp.eq.s32.totalorder %s30, 0
      %p502 = por %p500, %p501
      %p503 = scmp.ne.s32.totalorder %s491, %s492
      %p504 = scmp.eq.s32.totalorder %s31, 31
      %p505 = por %p503, %p504
      %p507 = scmp.ne.s32.totalorder %s492, %s506
      %p508 = scmp.eq.s32.totalorder %s31, 0
      %p509 = por %p507, %p508
      %s511 = sadd.s32 %s510, 1
      %p514 = scmp.eq.s32.totalorder %s25, 31
      %p515 = scmp.ne.s32.totalorder %s510, %s512
      %p516 = scmp.eq.s32.totalorder %s25, 0
      %p517 = por %p515, %p516
      %p518 = scmp.ne.s32.totalorder %s510, %s512
      %p519 = scmp.eq.s32.totalorder %s30, 31
      %p520 = por %p518, %p519
      %p521 = scmp.ne.s32.totalorder %s512, %s513
      %p522 = scmp.eq.s32.totalorder %s30, 0
      %p523 = por %p521, %p522
      %p524 = scmp.ne.s32.totalorder %s512, %s513
      %p525 = scmp.eq.s32.totalorder %s31, 31
      %p526 = por %p524, %p525
      %p528 = scmp.ne.s32.totalorder %s513, %s527
      %p529 = scmp.eq.s32.totalorder %s31, 0
      %p530 = por %p528, %p529
      %s531 = ssub.s32 %s32, %s44
      %s532 = ssub.s32 %s33, %s40
      %s533 = sor.u32 %s531, %s532
      %p534 = scmp.eq.s32.totalorder %s533, 0
      %s536 = sadd.s32 %s535, 1
      %s537 = scalar_select %p534, %s535, %s536
      %p540 = pneg %p534
      %p541 = scmp.eq.s32.totalorder %s25, 31
      %p542 = por %p540, %p541
      %p543 = scmp.ne.s32.totalorder %s535, %s538
      %p544 = scmp.eq.s32.totalorder %s25, 0
      %p545 = por %p543, %p544
      %p546 = scmp.ne.s32.totalorder %s535, %s538
      %p547 = scmp.eq.s32.totalorder %s30, 31
      %p548 = por %p546, %p547
      %p549 = scmp.ne.s32.totalorder %s538, %s539
      %p550 = scmp.eq.s32.totalorder %s30, 0
      %p551 = por %p549, %p550
      %p552 = scmp.ne.s32.totalorder %s538, %s539
      %p553 = scmp.eq.s32.totalorder %s31, 31
      %p554 = por %p552, %p553
      %p556 = scmp.ne.s32.totalorder %s539, %s555
      %p557 = scmp.eq.s32.totalorder %s31, 0
      %p558 = por %p556, %p557
      %p559 = scmp.le.s32.totalorder 1, %s25
      %p560 = scmp.lt.s32.totalorder %s25, 33
      %p561 = pnand %p559, %p560
      %p562 = pneg %p561
      // Predicated region
      $region9: #{tpu_custom_call.1} parent=5 // pred_check
        _
      $region10: #{tpu_custom_call.1} parent=5 // pred_check_branch
        %564 = sbr.rel (%p561) target = $region12
      $region11: #{tpu_custom_call.1} parent=5 // pred_region
        %s565 = ssub.s32 %s25, 1
        // Predicated region
        $region13: #{tpu_custom_call.1} parent=11 // pred_check
          %p566 = pneg %p502
        $region14: #{tpu_custom_call.1} parent=11 // pred_check_branch
          %568 = sbr.rel (%p566) target = $region16
        $region15: #{tpu_custom_call.1} parent=11 // pred_region
          _
        $region16: #{tpu_custom_call.1} parent=11 // pred_fallthru
          _
        // Predicated region
        $region17: #{tpu_custom_call.1} parent=11 // pred_check
          %p569 = pneg %p523
        $region18: #{tpu_custom_call.1} parent=11 // pred_check_branch
          %571 = sbr.rel (%p569) target = $region20
        $region19: #{tpu_custom_call.1} parent=11 // pred_region
          _
        $region20: #{tpu_custom_call.1} parent=11 // pred_fallthru
          _
      $region12: #{tpu_custom_call.1} parent=5 // pred_fallthru
        _
      %p572 = scmp.lt.s32.totalorder %s25, 32
      // Predicated region
      $region21: #{tpu_custom_call.1} parent=5 // pred_check
        %p573 = pneg %p572
      $region22: #{tpu_custom_call.1} parent=5 // pred_check_branch
        %575 = sbr.rel (%p573) target = $region24
      $region23: #{tpu_custom_call.1} parent=5 // pred_region
        // Predicated region
        $region25: #{tpu_custom_call.1} parent=23 // pred_check
          %p576 = pneg %p61
        $region26: #{tpu_custom_call.1} parent=23 // pred_check_branch
          %578 = sbr.rel (%p576) target = $region28
        $region27: #{tpu_custom_call.1} parent=23 // pred_region
          %s579 = smul.u32 %s33, 2
          %p580 = scmp.lt.s32.totalorder %s32, 1
          %s581 = scalar_select %p580, %s32, 1
          %p582 = scmp.lt.s32.totalorder %s579, 37
          %s583 = scalar_select %p582, %s579, 37
          %s584 = smul.addr %s583, 3
          %s585 = smul.addr %s581, 114
          %s586 = sadd.s32 %s584, %s585
          %s587 = smul.addr %s586, 4
          %s588 = scalar_lea.vmem %s0, %s587
          %s589 = smul.u32 %s33, 2
        $region28: #{tpu_custom_call.1} parent=23 // pred_fallthru
          _
        // Predicated region
        $region29: #{tpu_custom_call.1} parent=23 // pred_check
          %p590 = pneg %p91
        $region30: #{tpu_custom_call.1} parent=23 // pred_check_branch
          %592 = sbr.rel (%p590) target = $region32
        $region31: #{tpu_custom_call.1} parent=23 // pred_region
          %s593 = smul.u32 %s33, 2
          %p594 = scmp.lt.s32.totalorder %s32, 1
          %s595 = scalar_select %p594, %s32, 1
          %p596 = scmp.lt.s32.totalorder %s593, 37
          %s597 = scalar_select %p596, %s593, 37
          %s598 = smul.addr %s597, 3
          %s599 = smul.addr %s595, 114
          %s600 = sadd.s32 %s598, %s599
          %s601 = smul.addr %s600, 4
          %s602 = scalar_lea.vmem %s1, %s601
          %s603 = smul.u32 %s33, 2
        $region32: #{tpu_custom_call.1} parent=23 // pred_fallthru
          _
        // Predicated region
        $region33: #{tpu_custom_call.1} parent=23 // pred_check
          %p604 = pneg %p123
        $region34: #{tpu_custom_call.1} parent=23 // pred_check_branch
          %606 = sbr.rel (%p604) target = $region36
        $region35: #{tpu_custom_call.1} parent=23 // pred_region
          %s607 = smul.u32 %s33, 2
          %s608 = sadd.s32 %s607, 1
          %p609 = scmp.lt.s32.totalorder %s32, 1
          %s610 = scalar_select %p609, %s32, 1
          %p611 = scmp.lt.s32.totalorder %s608, 37
          %s612 = scalar_select %p611, %s608, 37
          %s613 = smul.addr %s612, 3
          %s614 = smul.addr %s610, 114
          %s615 = sadd.s32 %s613, %s614
          %s616 = smul.addr %s615, 4
          %s617 = scalar_lea.vmem %s2, %s616
          %s618 = smul.u32 %s33, 2
          %s619 = sadd.s32 %s618, 1
        $region36: #{tpu_custom_call.1} parent=23 // pred_fallthru
          _
        // Predicated region
        $region37: #{tpu_custom_call.1} parent=23 // pred_check
          %p620 = pneg %p155
        $region38: #{tpu_custom_call.1} parent=23 // pred_check_branch
          %622 = sbr.rel (%p620) target = $region40
        $region39: #{tpu_custom_call.1} parent=23 // pred_region
          %s623 = smul.u32 %s33, 2
          %s624 = sadd.s32 %s623, 1
          %p625 = scmp.lt.s32.totalorder %s32, 1
          %s626 = scalar_select %p625, %s32, 1
          %p627 = scmp.lt.s32.totalorder %s624, 37
          %s628 = scalar_select %p627, %s624, 37
          %s629 = smul.addr %s628, 3
          %s630 = smul.addr %s626, 114
          %s631 = sadd.s32 %s629, %s630
          %s632 = smul.addr %s631, 4
          %s633 = scalar_lea.vmem %s3, %s632
          %s634 = smul.u32 %s33, 2
          %s635 = sadd.s32 %s634, 1
        $region40: #{tpu_custom_call.1} parent=23 // pred_fallthru
          _
        // Predicated region
        $region41: #{tpu_custom_call.1} parent=23 // pred_check
          %p636 = pneg %p187
        $region42: #{tpu_custom_call.1} parent=23 // pred_check_branch
          %638 = sbr.rel (%p636) target = $region44
        $region43: #{tpu_custom_call.1} parent=23 // pred_region
          %s639 = smul.u32 %s33, 2
          %s640 = sadd.s32 %s639, 2
          %p641 = scmp.lt.s32.totalorder %s32, 1
          %s642 = scalar_select %p641, %s32, 1
          %p643 = scmp.lt.s32.totalorder %s640, 37
          %s644 = scalar_select %p643, %s640, 37
          %s645 = smul.addr %s644, 3
          %s646 = smul.addr %s642, 114
          %s647 = sadd.s32 %s645, %s646
          %s648 = smul.addr %s647, 4
          %s649 = scalar_lea.vmem %s4, %s648
          %s650 = smul.u32 %s33, 2
          %s651 = sadd.s32 %s650, 2
        $region44: #{tpu_custom_call.1} parent=23 // pred_fallthru
          _
        // Predicated region
        $region45: #{tpu_custom_call.1} parent=23 // pred_check
          %p652 = pneg %p219
        $region46: #{tpu_custom_call.1} parent=23 // pred_check_branch
          %654 = sbr.rel (%p652) target = $region48
        $region47: #{tpu_custom_call.1} parent=23 // pred_region
          %s655 = smul.u32 %s33, 2
          %s656 = sadd.s32 %s655, 2
          %p657 = scmp.lt.s32.totalorder %s32, 1
          %s658 = scalar_select %p657, %s32, 1
          %p659 = scmp.lt.s32.totalorder %s656, 37
          %s660 = scalar_select %p659, %s656, 37
          %s661 = smul.addr %s660, 3
          %s662 = smul.addr %s658, 114
          %s663 = sadd.s32 %s661, %s662
          %s664 = smul.addr %s663, 4
          %s665 = scalar_lea.vmem %s5, %s664
          %s666 = smul.u32 %s33, 2
          %s667 = sadd.s32 %s666, 2
        $region48: #{tpu_custom_call.1} parent=23 // pred_fallthru
          _
        // Predicated region
        $region49: #{tpu_custom_call.1} parent=23 // pred_check
          %p668 = pneg %p251
        $region50: #{tpu_custom_call.1} parent=23 // pred_check_branch
          %670 = sbr.rel (%p668) target = $region52
        $region51: #{tpu_custom_call.1} parent=23 // pred_region
          %s671 = smul.u32 %s33, 2
          %s672 = sadd.s32 %s671, 3
          %p673 = scmp.lt.s32.totalorder %s32, 1
          %s674 = scalar_select %p673, %s32, 1
          %p675 = scmp.lt.s32.totalorder %s672, 37
          %s676 = scalar_select %p675, %s672, 37
          %s677 = smul.addr %s676, 3
          %s678 = smul.addr %s674, 114
          %s679 = sadd.s32 %s677, %s678
          %s680 = smul.addr %s679, 4
          %s681 = scalar_lea.vmem %s6, %s680
          %s682 = smul.u32 %s33, 2
          %s683 = sadd.s32 %s682, 3
        $region52: #{tpu_custom_call.1} parent=23 // pred_fallthru
          _
        // Predicated region
        $region53: #{tpu_custom_call.1} parent=23 // pred_check
          %p684 = pneg %p283
        $region54: #{tpu_custom_call.1} parent=23 // pred_check_branch
          %686 = sbr.rel (%p684) target = $region56
        $region55: #{tpu_custom_call.1} parent=23 // pred_region
          %s687 = smul.u32 %s33, 2
          %s688 = sadd.s32 %s687, 3
          %p689 = scmp.lt.s32.totalorder %s32, 1
          %s690 = scalar_select %p689, %s32, 1
          %p691 = scmp.lt.s32.totalorder %s688, 37
          %s692 = scalar_select %p691, %s688, 37
          %s693 = smul.addr %s692, 3
          %s694 = smul.addr %s690, 114
          %s695 = sadd.s32 %s693, %s694
          %s696 = smul.addr %s695, 4
          %s697 = scalar_lea.vmem %s7, %s696
          %s698 = smul.u32 %s33, 2
          %s699 = sadd.s32 %s698, 3
        $region56: #{tpu_custom_call.1} parent=23 // pred_fallthru
          _
        // Predicated region
        $region57: #{tpu_custom_call.1} parent=23 // pred_check
          %p700 = pneg %p315
        $region58: #{tpu_custom_call.1} parent=23 // pred_check_branch
          %702 = sbr.rel (%p700) target = $region60
        $region59: #{tpu_custom_call.1} parent=23 // pred_region
          %s703 = smul.u32 %s33, 2
          %s704 = sadd.s32 %s703, 4
          %p705 = scmp.lt.s32.totalorder %s32, 1
          %s706 = scalar_select %p705, %s32, 1
          %p707 = scmp.lt.s32.totalorder %s704, 37
          %s708 = scalar_select %p707, %s704, 37
          %s709 = smul.addr %s708, 3
          %s710 = smul.addr %s706, 114
          %s711 = sadd.s32 %s709, %s710
          %s712 = smul.addr %s711, 4
          %s713 = scalar_lea.vmem %s8, %s712
          %s714 = smul.u32 %s33, 2
          %s715 = sadd.s32 %s714, 4
        $region60: #{tpu_custom_call.1} parent=23 // pred_fallthru
          _
        // Predicated region
        $region61: #{tpu_custom_call.1} parent=23 // pred_check
          %p716 = pneg %p347
        $region62: #{tpu_custom_call.1} parent=23 // pred_check_branch
          %718 = sbr.rel (%p716) target = $region64
        $region63: #{tpu_custom_call.1} parent=23 // pred_region
          %s719 = smul.u32 %s33, 2
          %s720 = sadd.s32 %s719, 4
          %p721 = scmp.lt.s32.totalorder %s32, 1
          %s722 = scalar_select %p721, %s32, 1
          %p723 = scmp.lt.s32.totalorder %s720, 37
          %s724 = scalar_select %p723, %s720, 37
          %s725 = smul.addr %s724, 3
          %s726 = smul.addr %s722, 114
          %s727 = sadd.s32 %s725, %s726
          %s728 = smul.addr %s727, 4
          %s729 = scalar_lea.vmem %s9, %s728
          %s730 = smul.u32 %s33, 2
          %s731 = sadd.s32 %s730, 4
        $region64: #{tpu_custom_call.1} parent=23 // pred_fallthru
          _
        // Predicated region
        $region65: #{tpu_custom_call.1} parent=23 // pred_check
          %p732 = pneg %p379
        $region66: #{tpu_custom_call.1} parent=23 // pred_check_branch
          %734 = sbr.rel (%p732) target = $region68
        $region67: #{tpu_custom_call.1} parent=23 // pred_region
          %s735 = smul.u32 %s33, 2
          %s736 = sadd.s32 %s735, 5
          %p737 = scmp.lt.s32.totalorder %s32, 1
          %s738 = scalar_select %p737, %s32, 1
          %p739 = scmp.lt.s32.totalorder %s736, 37
          %s740 = scalar_select %p739, %s736, 37
          %s741 = smul.addr %s740, 3
          %s742 = smul.addr %s738, 114
          %s743 = sadd.s32 %s741, %s742
          %s744 = smul.addr %s743, 4
          %s745 = scalar_lea.vmem %s10, %s744
          %s746 = smul.u32 %s33, 2
          %s747 = sadd.s32 %s746, 5
        $region68: #{tpu_custom_call.1} parent=23 // pred_fallthru
          _
        // Predicated region
        $region69: #{tpu_custom_call.1} parent=23 // pred_check
          %p748 = pneg %p411
        $region70: #{tpu_custom_call.1} parent=23 // pred_check_branch
          %750 = sbr.rel (%p748) target = $region72
        $region71: #{tpu_custom_call.1} parent=23 // pred_region
          %s751 = smul.u32 %s33, 2
          %s752 = sadd.s32 %s751, 5
          %p753 = scmp.lt.s32.totalorder %s32, 1
          %s754 = scalar_select %p753, %s32, 1
          %p755 = scmp.lt.s32.totalorder %s752, 37
          %s756 = scalar_select %p755, %s752, 37
          %s757 = smul.addr %s756, 3
          %s758 = smul.addr %s754, 114
          %s759 = sadd.s32 %s757, %s758
          %s760 = smul.addr %s759, 4
          %s761 = scalar_lea.vmem %s11, %s760
          %s762 = smul.u32 %s33, 2
          %s763 = sadd.s32 %s762, 5
        $region72: #{tpu_custom_call.1} parent=23 // pred_fallthru
          _
        // Predicated region
        $region73: #{tpu_custom_call.1} parent=23 // pred_check
          %p764 = pneg %p443
        $region74: #{tpu_custom_call.1} parent=23 // pred_check_branch
          %766 = sbr.rel (%p764) target = $region76
        $region75: #{tpu_custom_call.1} parent=23 // pred_region
          %s767 = smul.u32 %s33, 2
          %s768 = sadd.s32 %s767, 6
          %p769 = scmp.lt.s32.totalorder %s32, 1
          %s770 = scalar_select %p769, %s32, 1
          %p771 = scmp.lt.s32.totalorder %s768, 37
          %s772 = scalar_select %p771, %s768, 37
          %s773 = smul.addr %s772, 3
          %s774 = smul.addr %s770, 114
          %s775 = sadd.s32 %s773, %s774
          %s776 = smul.addr %s775, 4
          %s777 = scalar_lea.vmem %s12, %s776
          %s778 = smul.u32 %s33, 2
          %s779 = sadd.s32 %s778, 6
        $region76: #{tpu_custom_call.1} parent=23 // pred_fallthru
          _
        // Predicated region
        $region77: #{tpu_custom_call.1} parent=23 // pred_check
          %p780 = pneg %p475
        $region78: #{tpu_custom_call.1} parent=23 // pred_check_branch
          %782 = sbr.rel (%p780) target = $region80
        $region79: #{tpu_custom_call.1} parent=23 // pred_region
          %s783 = smul.u32 %s33, 2
          %s784 = sadd.s32 %s783, 6
          %p785 = scmp.lt.s32.totalorder %s32, 1
          %s786 = scalar_select %p785, %s32, 1
          %p787 = scmp.lt.s32.totalorder %s784, 37
          %s788 = scalar_select %p787, %s784, 37
          %s789 = smul.addr %s788, 3
          %s790 = smul.addr %s786, 114
          %s791 = sadd.s32 %s789, %s790
          %s792 = smul.addr %s791, 4
          %s793 = scalar_lea.vmem %s13, %s792
          %s794 = smul.u32 %s33, 2
          %s795 = sadd.s32 %s794, 6
        $region80: #{tpu_custom_call.1} parent=23 // pred_fallthru
          _
      $region24: #{tpu_custom_call.1} parent=5 // pred_fallthru
        _
      %p796 = scmp.le.s32.totalorder 1, %s25
      %p797 = scmp.lt.s32.totalorder %s25, 33
      %p798 = pnand %p796, %p797
      %p799 = pneg %p798
      // Predicated region
      $region81: #{tpu_custom_call.1} parent=5 // pred_check
        _
      $region82: #{tpu_custom_call.1} parent=5 // pred_check_branch
        %801 = sbr.rel (%p798) target = $region84
      $region83: #{tpu_custom_call.1} parent=5 // pred_region
        %s802 = ssub.s32 %s25, 1
        %s803 = smul.u32 %s35, 2
        %p804 = scmp.lt.s32.totalorder %s34, 1
        %s805 = scalar_select %p804, %s34, 1
        %p806 = scmp.lt.s32.totalorder %s803, 37
        %s807 = scalar_select %p806, %s803, 37
        %s808 = smul.addr %s807, 3
        %s809 = smul.addr %s805, 114
        %s810 = sadd.s32 %s808, %s809
        %s811 = smul.addr %s810, 4
        %s812 = scalar_lea.vmem %s0, %s811
        %p813 = pneg %p67
        %p814 = pneg %p64
        %s815 = smul.u32 %s35, 2
        %p816 = scmp.lt.s32.totalorder %s34, 1
        %s817 = scalar_select %p816, %s34, 1
        %p818 = scmp.lt.s32.totalorder %s815, 37
        %s819 = scalar_select %p818, %s815, 37
        %s820 = smul.addr %s819, 3
        %s821 = smul.addr %s817, 114
        %s822 = sadd.s32 %s820, %s821
        %s823 = smul.addr %s822, 4
        %s824 = scalar_lea.vmem %s1, %s823
        %p825 = pneg %p97
        %p826 = pneg %p94
        %s827 = smul.u32 %s35, 2
        %s828 = sadd.s32 %s827, 1
        %p829 = scmp.lt.s32.totalorder %s34, 1
        %s830 = scalar_select %p829, %s34, 1
        %p831 = scmp.lt.s32.totalorder %s828, 37
        %s832 = scalar_select %p831, %s828, 37
        %s833 = smul.addr %s832, 3
        %s834 = smul.addr %s830, 114
        %s835 = sadd.s32 %s833, %s834
        %s836 = smul.addr %s835, 4
        %s837 = scalar_lea.vmem %s2, %s836
        %p838 = pneg %p129
        %p839 = pneg %p126
        %s840 = smul.u32 %s35, 2
        %s841 = sadd.s32 %s840, 1
        %p842 = scmp.lt.s32.totalorder %s34, 1
        %s843 = scalar_select %p842, %s34, 1
        %p844 = scmp.lt.s32.totalorder %s841, 37
        %s845 = scalar_select %p844, %s841, 37
        %s846 = smul.addr %s845, 3
        %s847 = smul.addr %s843, 114
        %s848 = sadd.s32 %s846, %s847
        %s849 = smul.addr %s848, 4
        %s850 = scalar_lea.vmem %s3, %s849
        %p851 = pneg %p161
        %p852 = pneg %p158
        %s853 = smul.u32 %s35, 2
        %s854 = sadd.s32 %s853, 2
        %p855 = scmp.lt.s32.totalorder %s34, 1
        %s856 = scalar_select %p855, %s34, 1
        %p857 = scmp.lt.s32.totalorder %s854, 37
        %s858 = scalar_select %p857, %s854, 37
        %s859 = smul.addr %s858, 3
        %s860 = smul.addr %s856, 114
        %s861 = sadd.s32 %s859, %s860
        %s862 = smul.addr %s861, 4
        %s863 = scalar_lea.vmem %s4, %s862
        %p864 = pneg %p193
        %p865 = pneg %p190
        %s866 = smul.u32 %s35, 2
        %s867 = sadd.s32 %s866, 2
        %p868 = scmp.lt.s32.totalorder %s34, 1
        %s869 = scalar_select %p868, %s34, 1
        %p870 = scmp.lt.s32.totalorder %s867, 37
        %s871 = scalar_select %p870, %s867, 37
        %s872 = smul.addr %s871, 3
        %s873 = smul.addr %s869, 114
        %s874 = sadd.s32 %s872, %s873
        %s875 = smul.addr %s874, 4
        %s876 = scalar_lea.vmem %s5, %s875
        %p877 = pneg %p225
        %p878 = pneg %p222
        %s879 = smul.u32 %s35, 2
        %s880 = sadd.s32 %s879, 3
        %p881 = scmp.lt.s32.totalorder %s34, 1
        %s882 = scalar_select %p881, %s34, 1
        %p883 = scmp.lt.s32.totalorder %s880, 37
        %s884 = scalar_select %p883, %s880, 37
        %s885 = smul.addr %s884, 3
        %s886 = smul.addr %s882, 114
        %s887 = sadd.s32 %s885, %s886
        %s888 = smul.addr %s887, 4
        %s889 = scalar_lea.vmem %s6, %s888
        %p890 = pneg %p257
        %p891 = pneg %p254
        %s892 = smul.u32 %s35, 2
        %s893 = sadd.s32 %s892, 3
        %p894 = scmp.lt.s32.totalorder %s34, 1
        %s895 = scalar_select %p894, %s34, 1
        %p896 = scmp.lt.s32.totalorder %s893, 37
        %s897 = scalar_select %p896, %s893, 37
        %s898 = smul.addr %s897, 3
        %s899 = smul.addr %s895, 114
        %s900 = sadd.s32 %s898, %s899
        %s901 = smul.addr %s900, 4
        %s902 = scalar_lea.vmem %s7, %s901
        %p903 = pneg %p289
        %p904 = pneg %p286
        %s905 = smul.u32 %s35, 2
        %s906 = sadd.s32 %s905, 4
        %p907 = scmp.lt.s32.totalorder %s34, 1
        %s908 = scalar_select %p907, %s34, 1
        %p909 = scmp.lt.s32.totalorder %s906, 37
        %s910 = scalar_select %p909, %s906, 37
        %s911 = smul.addr %s910, 3
        %s912 = smul.addr %s908, 114
        %s913 = sadd.s32 %s911, %s912
        %s914 = smul.addr %s913, 4
        %s915 = scalar_lea.vmem %s8, %s914
        %p916 = pneg %p321
        %p917 = pneg %p318
        %s918 = smul.u32 %s35, 2
        %s919 = sadd.s32 %s918, 4
        %p920 = scmp.lt.s32.totalorder %s34, 1
        %s921 = scalar_select %p920, %s34, 1
        %p922 = scmp.lt.s32.totalorder %s919, 37
        %s923 = scalar_select %p922, %s919, 37
        %s924 = smul.addr %s923, 3
        %s925 = smul.addr %s921, 114
        %s926 = sadd.s32 %s924, %s925
        %s927 = smul.addr %s926, 4
        %s928 = scalar_lea.vmem %s9, %s927
        %p929 = pneg %p353
        %p930 = pneg %p350
        %s931 = smul.u32 %s35, 2
        %s932 = sadd.s32 %s931, 5
        %p933 = scmp.lt.s32.totalorder %s34, 1
        %s934 = scalar_select %p933, %s34, 1
        %p935 = scmp.lt.s32.totalorder %s932, 37
        %s936 = scalar_select %p935, %s932, 37
        %s937 = smul.addr %s936, 3
        %s938 = smul.addr %s934, 114
        %s939 = sadd.s32 %s937, %s938
        %s940 = smul.addr %s939, 4
        %s941 = scalar_lea.vmem %s10, %s940
        %p942 = pneg %p385
        %p943 = pneg %p382
        %s944 = smul.u32 %s35, 2
        %s945 = sadd.s32 %s944, 5
        %p946 = scmp.lt.s32.totalorder %s34, 1
        %s947 = scalar_select %p946, %s34, 1
        %p948 = scmp.lt.s32.totalorder %s945, 37
        %s949 = scalar_select %p948, %s945, 37
        %s950 = smul.addr %s949, 3
        %s951 = smul.addr %s947, 114
        %s952 = sadd.s32 %s950, %s951
        %s953 = smul.addr %s952, 4
        %s954 = scalar_lea.vmem %s11, %s953
        %p955 = pneg %p417
        %p956 = pneg %p414
        %s957 = smul.u32 %s35, 2
        %s958 = sadd.s32 %s957, 6
        %p959 = scmp.lt.s32.totalorder %s34, 1
        %s960 = scalar_select %p959, %s34, 1
        %p961 = scmp.lt.s32.totalorder %s958, 37
        %s962 = scalar_select %p961, %s958, 37
        %s963 = smul.addr %s962, 3
        %s964 = smul.addr %s960, 114
        %s965 = sadd.s32 %s963, %s964
        %s966 = smul.addr %s965, 4
        %s967 = scalar_lea.vmem %s12, %s966
        %p968 = pneg %p449
        %p969 = pneg %p446
        %s970 = smul.u32 %s35, 2
        %s971 = sadd.s32 %s970, 6
        %p972 = scmp.lt.s32.totalorder %s34, 1
        %s973 = scalar_select %p972, %s34, 1
        %p974 = scmp.lt.s32.totalorder %s971, 37
        %s975 = scalar_select %p974, %s971, 37
        %s976 = smul.addr %s975, 3
        %s977 = smul.addr %s973, 114
        %s978 = sadd.s32 %s976, %s977
        %s979 = smul.addr %s978, 4
        %s980 = scalar_lea.vmem %s13, %s979
        %p981 = pneg %p481
        %p982 = pneg %p478
        %p983 = pneg %p502
        %p984 = pneg %p499
        %p985 = pneg %p523
        %p986 = pneg %p520
        %p987 = pneg %p551
        %p988 = pneg %p548
        %s989 = sand.u32 %s538, 1
        %s990 = scalar_lea.sflag [#allocation3], %s989
        %s991 = sand.u32 %s538, 1
        %s992 = smul.addr %s991, 8
        %s993 = scalar_lea.vmem [#allocation2], %s992
        %s994 = smul.u32 %s35, 2
        %p995 = scmp.lt.s32.totalorder %s34, 1
        %s996 = scalar_select %p995, %s34, 1
        %p997 = scmp.lt.s32.totalorder %s994, 37
        %s998 = scalar_select %p997, %s994, 37
        %s999 = smul.addr %s998, 3
        %s1000 = smul.addr %s996, 114
        %s1001 = sadd.s32 %s999, %s1000
        %s1002 = smul.addr %s1001, 4
        %s1003 = scalar_lea.vmem %s0, %s1002
        %s1004 = smul.u32 %s35, 2
        %s1005 = smul.u32 %s35, 2
        %p1006 = scmp.lt.s32.totalorder %s34, 1
        %s1007 = scalar_select %p1006, %s34, 1
        %p1008 = scmp.lt.s32.totalorder %s1005, 37
        %s1009 = scalar_select %p1008, %s1005, 37
        %s1010 = smul.addr %s1009, 3
        %s1011 = smul.addr %s1007, 114
        %s1012 = sadd.s32 %s1010, %s1011
        %s1013 = smul.addr %s1012, 4
        %s1014 = scalar_lea.vmem %s1, %s1013
        %s1015 = smul.u32 %s35, 2
        %s1016 = smul.u32 %s35, 2
        %s1017 = sadd.s32 %s1016, 1
        %p1018 = scmp.lt.s32.totalorder %s34, 1
        %s1019 = scalar_select %p1018, %s34, 1
        %p1020 = scmp.lt.s32.totalorder %s1017, 37
        %s1021 = scalar_select %p1020, %s1017, 37
        %s1022 = smul.addr %s1021, 3
        %s1023 = smul.addr %s1019, 114
        %s1024 = sadd.s32 %s1022, %s1023
        %s1025 = smul.addr %s1024, 4
        %s1026 = scalar_lea.vmem %s2, %s1025
        %s1027 = smul.u32 %s35, 2
        %s1028 = sadd.s32 %s1027, 1
        %s1029 = smul.u32 %s35, 2
        %s1030 = sadd.s32 %s1029, 1
        %p1031 = scmp.lt.s32.totalorder %s34, 1
        %s1032 = scalar_select %p1031, %s34, 1
        %p1033 = scmp.lt.s32.totalorder %s1030, 37
        %s1034 = scalar_select %p1033, %s1030, 37
        %s1035 = smul.addr %s1034, 3
        %s1036 = smul.addr %s1032, 114
        %s1037 = sadd.s32 %s1035, %s1036
        %s1038 = smul.addr %s1037, 4
        %s1039 = scalar_lea.vmem %s3, %s1038
        %s1040 = smul.u32 %s35, 2
        %s1041 = sadd.s32 %s1040, 1
        %s1042 = smul.u32 %s35, 2
        %s1043 = sadd.s32 %s1042, 2
        %p1044 = scmp.lt.s32.totalorder %s34, 1
        %s1045 = scalar_select %p1044, %s34, 1
        %p1046 = scmp.lt.s32.totalorder %s1043, 37
        %s1047 = scalar_select %p1046, %s1043, 37
        %s1048 = smul.addr %s1047, 3
        %s1049 = smul.addr %s1045, 114
        %s1050 = sadd.s32 %s1048, %s1049
        %s1051 = smul.addr %s1050, 4
        %s1052 = scalar_lea.vmem %s4, %s1051
        %s1053 = smul.u32 %s35, 2
        %s1054 = sadd.s32 %s1053, 2
        %s1055 = smul.u32 %s35, 2
        %s1056 = sadd.s32 %s1055, 2
        %p1057 = scmp.lt.s32.totalorder %s34, 1
        %s1058 = scalar_select %p1057, %s34, 1
        %p1059 = scmp.lt.s32.totalorder %s1056, 37
        %s1060 = scalar_select %p1059, %s1056, 37
        %s1061 = smul.addr %s1060, 3
        %s1062 = smul.addr %s1058, 114
        %s1063 = sadd.s32 %s1061, %s1062
        %s1064 = smul.addr %s1063, 4
        %s1065 = scalar_lea.vmem %s5, %s1064
        %s1066 = smul.u32 %s35, 2
        %s1067 = sadd.s32 %s1066, 2
        %s1068 = smul.u32 %s35, 2
        %s1069 = sadd.s32 %s1068, 3
        %p1070 = scmp.lt.s32.totalorder %s34, 1
        %s1071 = scalar_select %p1070, %s34, 1
        %p1072 = scmp.lt.s32.totalorder %s1069, 37
        %s1073 = scalar_select %p1072, %s1069, 37
        %s1074 = smul.addr %s1073, 3
        %s1075 = smul.addr %s1071, 114
        %s1076 = sadd.s32 %s1074, %s1075
        %s1077 = smul.addr %s1076, 4
        %s1078 = scalar_lea.vmem %s6, %s1077
        %s1079 = smul.u32 %s35, 2
        %s1080 = sadd.s32 %s1079, 3
        %s1081 = smul.u32 %s35, 2
        %s1082 = sadd.s32 %s1081, 3
        %p1083 = scmp.lt.s32.totalorder %s34, 1
        %s1084 = scalar_select %p1083, %s34, 1
        %p1085 = scmp.lt.s32.totalorder %s1082, 37
        %s1086 = scalar_select %p1085, %s1082, 37
        %s1087 = smul.addr %s1086, 3
        %s1088 = smul.addr %s1084, 114
        %s1089 = sadd.s32 %s1087, %s1088
        %s1090 = smul.addr %s1089, 4
        %s1091 = scalar_lea.vmem %s7, %s1090
        %s1092 = smul.u32 %s35, 2
        %s1093 = sadd.s32 %s1092, 3
        %s1094 = smul.u32 %s35, 2
        %s1095 = sadd.s32 %s1094, 4
        %p1096 = scmp.lt.s32.totalorder %s34, 1
        %s1097 = scalar_select %p1096, %s34, 1
        %p1098 = scmp.lt.s32.totalorder %s1095, 37
        %s1099 = scalar_select %p1098, %s1095, 37
        %s1100 = smul.addr %s1099, 3
        %s1101 = smul.addr %s1097, 114
        %s1102 = sadd.s32 %s1100, %s1101
        %s1103 = smul.addr %s1102, 4
        %s1104 = scalar_lea.vmem %s8, %s1103
        %s1105 = smul.u32 %s35, 2
        %s1106 = sadd.s32 %s1105, 4
        %s1107 = smul.u32 %s35, 2
        %s1108 = sadd.s32 %s1107, 4
        %p1109 = scmp.lt.s32.totalorder %s34, 1
        %s1110 = scalar_select %p1109, %s34, 1
        %p1111 = scmp.lt.s32.totalorder %s1108, 37
        %s1112 = scalar_select %p1111, %s1108, 37
        %s1113 = smul.addr %s1112, 3
        %s1114 = smul.addr %s1110, 114
        %s1115 = sadd.s32 %s1113, %s1114
        %s1116 = smul.addr %s1115, 4
        %s1117 = scalar_lea.vmem %s9, %s1116
        %s1118 = smul.u32 %s35, 2
        %s1119 = sadd.s32 %s1118, 4
        %s1120 = smul.u32 %s35, 2
        %s1121 = sadd.s32 %s1120, 5
        %p1122 = scmp.lt.s32.totalorder %s34, 1
        %s1123 = scalar_select %p1122, %s34, 1
        %p1124 = scmp.lt.s32.totalorder %s1121, 37
        %s1125 = scalar_select %p1124, %s1121, 37
        %s1126 = smul.addr %s1125, 3
        %s1127 = smul.addr %s1123, 114
        %s1128 = sadd.s32 %s1126, %s1127
        %s1129 = smul.addr %s1128, 4
        %s1130 = scalar_lea.vmem %s10, %s1129
        %s1131 = smul.u32 %s35, 2
        %s1132 = sadd.s32 %s1131, 5
        %s1133 = smul.u32 %s35, 2
        %s1134 = sadd.s32 %s1133, 5
        %p1135 = scmp.lt.s32.totalorder %s34, 1
        %s1136 = scalar_select %p1135, %s34, 1
        %p1137 = scmp.lt.s32.totalorder %s1134, 37
        %s1138 = scalar_select %p1137, %s1134, 37
        %s1139 = smul.addr %s1138, 3
        %s1140 = smul.addr %s1136, 114
        %s1141 = sadd.s32 %s1139, %s1140
        %s1142 = smul.addr %s1141, 4
        %s1143 = scalar_lea.vmem %s11, %s1142
        %s1144 = smul.u32 %s35, 2
        %s1145 = sadd.s32 %s1144, 5
        %s1146 = smul.u32 %s35, 2
        %s1147 = sadd.s32 %s1146, 6
        %p1148 = scmp.lt.s32.totalorder %s34, 1
        %s1149 = scalar_select %p1148, %s34, 1
        %p1150 = scmp.lt.s32.totalorder %s1147, 37
        %s1151 = scalar_select %p1150, %s1147, 37
        %s1152 = smul.addr %s1151, 3
        %s1153 = smul.addr %s1149, 114
        %s1154 = sadd.s32 %s1152, %s1153
        %s1155 = smul.addr %s1154, 4
        %s1156 = scalar_lea.vmem %s12, %s1155
        %s1157 = smul.u32 %s35, 2
        %s1158 = sadd.s32 %s1157, 6
        %s1159 = smul.u32 %s35, 2
        %s1160 = sadd.s32 %s1159, 6
        %p1161 = scmp.lt.s32.totalorder %s34, 1
        %s1162 = scalar_select %p1161, %s34, 1
        %p1163 = scmp.lt.s32.totalorder %s1160, 37
        %s1164 = scalar_select %p1163, %s1160, 37
        %s1165 = smul.addr %s1164, 3
        %s1166 = smul.addr %s1162, 114
        %s1167 = sadd.s32 %s1165, %s1166
        %s1168 = smul.addr %s1167, 4
        %s1169 = scalar_lea.vmem %s13, %s1168
        %s1170 = smul.u32 %s35, 2
        %s1171 = sadd.s32 %s1170, 6
        %v1173 = vld [vmem:[%s1003] sm:$0xf]
        %v1174 = vld [vmem:[%s1003 + $0x4] sm:$0xf]
        %v1175 = vld [vmem:[%s14] sm:$0x3]
        %v1176 = vld [vmem:[%s1014] sm:$0xf]
        %v1177 = vld [vmem:[%s1014 + $0x4] sm:$0xf]
        %s1178 = scalar_lea.vmem %s14, 2
        %v1179 = vld [vmem:[%s1178] sm:$0x3]
        %v1182 = vunpack.c.l.b16 %v1176
        %v1183 = vunpack.c.l.b16 %v1177
        %v1184 = vpack.c.b16 %v1183, %v1182
        %vm1185 = vcmask 23552
        %v1187 = vsel %vm1185, %v1184, 0
        %vm1189 = vcmask 1040384
        %vm1190 = vcmask 1041408
        %v1191 = vsel %vm1189, 4294967295, 65535
        %v1192 = vsel %vm1190, %v1191, 0
        %v1194 = vand.u32 %v1179, %v1192
        %1196 = vmatprep.subr.bf16.mxu0 0
        %1197 = vmatpush1.bf16.msra.mxu0 %v1194
        %1198 = vmatprep.subr.bf16.mxu0 0
        %1199 = vmatpush1.bf16.msra.mxu0 0
        %1200 = vmatprep.subr.bf16.mxu0 0
        %1201 = vmatpush1.bf16.msra.mxu0 0
        %1202 = vmatprep.subr.bf16.mxu0 0
        %1203 = vmatpush1.bf16.msra.mxu0 0
        %1204 = vmatprep.subr.bf16.mxu0 0
        %1205 = vmatpush1.bf16.msra.mxu0 0
        %1206 = vmatprep.subr.bf16.mxu0 0
        %1207 = vmatpush1.bf16.msra.mxu0 0
        %1208 = vmatprep.subr.bf16.mxu0 0
        %1209 = vmatpush1.bf16.msra.mxu0 0
        %1210 = vmatprep.subr.bf16.mxu0 0
        %1211 = vmatpush1.bf16.msra.mxu0 0
        %1212 = vmatprep.subr.bf16.mxu0 0
        %1213 = vmatpush1.bf16.msra.mxu0 0
        %1214 = vmatprep.subr.bf16.mxu0 0
        %1215 = vmatpush1.bf16.msra.mxu0 0
        %1216 = vmatprep.subr.bf16.mxu0 0
        %1217 = vmatpush1.bf16.msra.mxu0 0
        %1218 = vmatprep.subr.bf16.mxu0 0
        %1219 = vmatpush1.bf16.msra.mxu0 0
        %1220 = vmatprep.subr.bf16.mxu0 0
        %1221 = vmatpush1.bf16.msra.mxu0 0
        %1222 = vmatprep.subr.bf16.mxu0 0
        %1223 = vmatpush1.bf16.msra.mxu0 0
        %1224 = vmatprep.subr.bf16.mxu0 0
        %1225 = vmatpush1.bf16.msra.mxu0 0
        %1226 = vmatprep.subr.bf16.mxu0 0
        %1227 = vmatpush1.bf16.msra.mxu0 0
        %1228 = vmatprep.mubr.bf16.mxu0 0
        %1229 = vmatmul.mubr.bf16.gmra.mrb[0].mxu0 %v1187
        %v1230 = vpop.f32.mrb[0].mxu0
        %v1231 = vadd.f32 0.0, %v1230
        %v1232 = vpop.f32.mrb[0].mxu0
        %v1233 = vpop.f32.mrb[0].mxu0
        %v1234 = vadd.f32 0.0, %v1233
        %v1235 = vpop.f32.mrb[0].mxu0
        %1236 = vdwg.mxu0
        %v1239 = vunpack.c.l.b16 %v1173
        %v1240 = vunpack.c.l.b16 %v1174
        %v1241 = vpack.c.b16 %v1240, %v1239
        %v1243 = vsel %vm1185, %v1241, 0
        %v1246 = vand.u32 %v1175, %v1192
        %1248 = vmatprep.subr.bf16.mxu0 0
        %1249 = vmatpush1.bf16.msra.mxu0 %v1246
        %1250 = vmatprep.subr.bf16.mxu0 0
        %1251 = vmatpush1.bf16.msra.mxu0 0
        %1252 = vmatprep.subr.bf16.mxu0 0
        %1253 = vmatpush1.bf16.msra.mxu0 0
        %1254 = vmatprep.subr.bf16.mxu0 0
        %1255 = vmatpush1.bf16.msra.mxu0 0
        %1256 = vmatprep.subr.bf16.mxu0 0
        %1257 = vmatpush1.bf16.msra.mxu0 0
        %1258 = vmatprep.subr.bf16.mxu0 0
        %1259 = vmatpush1.bf16.msra.mxu0 0
        %1260 = vmatprep.subr.bf16.mxu0 0
        %1261 = vmatpush1.bf16.msra.mxu0 0
        %1262 = vmatprep.subr.bf16.mxu0 0
        %1263 = vmatpush1.bf16.msra.mxu0 0
        %1264 = vmatprep.subr.bf16.mxu0 0
        %1265 = vmatpush1.bf16.msra.mxu0 0
        %1266 = vmatprep.subr.bf16.mxu0 0
        %1267 = vmatpush1.bf16.msra.mxu0 0
        %1268 = vmatprep.subr.bf16.mxu0 0
        %1269 = vmatpush1.bf16.msra.mxu0 0
        %1270 = vmatprep.subr.bf16.mxu0 0
        %1271 = vmatpush1.bf16.msra.mxu0 0
        %1272 = vmatprep.subr.bf16.mxu0 0
        %1273 = vmatpush1.bf16.msra.mxu0 0
        %1274 = vmatprep.subr.bf16.mxu0 0
        %1275 = vmatpush1.bf16.msra.mxu0 0
        %1276 = vmatprep.subr.bf16.mxu0 0
        %1277 = vmatpush1.bf16.msra.mxu0 0
        %1278 = vmatprep.subr.bf16.mxu0 0
        %1279 = vmatpush1.bf16.msra.mxu0 0
        %1280 = vmatprep.mubr.bf16.mxu0 0
        %1281 = vmatmul.mubr.bf16.gmra.mrb[0].mxu0 %v1243
        %v1282 = vpop.f32.mrb[0].mxu0
        %v1283 = vadd.f32 %v1231, %v1282
        %v1284 = vpop.f32.mrb[0].mxu0
        %v1285 = vpop.f32.mrb[0].mxu0
        %v1286 = vadd.f32 %v1234, %v1285
        %v1287 = vpop.f32.mrb[0].mxu0
        %1288 = vdwg.mxu0
        %v1289 = vld [vmem:[%s1003] sm:$0xf]
        %v1290 = vld [vmem:[%s1003 + $0x4] sm:$0xf]
        %v1291 = vld [vmem:[%s1003 + $0x8] sm:$0x1]
        %s1292 = scalar_lea.vmem %s14, 4
        %v1293 = vld [vmem:[%s1292] sm:$0x3]
        %v1297 = vunpack.c.l.b16 %v1289
        %v1298 = vunpack.c.l.b16 %v1290
        %v1299 = vunpack.c.l.b16 %v1291
        %v1300 = vpack.c.b16 %v1298, %v1297
        %v1301 = vpack.c.b16 %v1299, %v1299
        %vm1302 = vsmask.f32 7424
        %v1304 = vshrl.u32 %v1300, 16
        %v1306 = vshll.u32 %v1300, 16
        %v1308 = vrot.slane %v1306, 1
        %v1309 = vor.u32 %v1304, %v1308
        %v1311 = vshll.u32 %v1301, 16
        %v1313 = vrot.slane %v1311, 1
        %v1314 = vsel %vm1302, %v1309, %v1313
        %v1316 = vsel %vm1185, %v1314, 0
        %v1319 = vand.u32 %v1293, %v1192
        %1321 = vmatprep.subr.bf16.mxu0 0
        %1322 = vmatpush1.bf16.msra.mxu0 %v1319
        %1323 = vmatprep.subr.bf16.mxu0 0
        %1324 = vmatpush1.bf16.msra.mxu0 0
        %1325 = vmatprep.subr.bf16.mxu0 0
        %1326 = vmatpush1.bf16.msra.mxu0 0
        %1327 = vmatprep.subr.bf16.mxu0 0
        %1328 = vmatpush1.bf16.msra.mxu0 0
        %1329 = vmatprep.subr.bf16.mxu0 0
        %1330 = vmatpush1.bf16.msra.mxu0 0
        %1331 = vmatprep.subr.bf16.mxu0 0
        %1332 = vmatpush1.bf16.msra.mxu0 0
        %1333 = vmatprep.subr.bf16.mxu0 0
        %1334 = vmatpush1.bf16.msra.mxu0 0
        %1335 = vmatprep.subr.bf16.mxu0 0
        %1336 = vmatpush1.bf16.msra.mxu0 0
        %1337 = vmatprep.subr.bf16.mxu0 0
        %1338 = vmatpush1.bf16.msra.mxu0 0
        %1339 = vmatprep.subr.bf16.mxu0 0
        %1340 = vmatpush1.bf16.msra.mxu0 0
        %1341 = vmatprep.subr.bf16.mxu0 0
        %1342 = vmatpush1.bf16.msra.mxu0 0
        %1343 = vmatprep.subr.bf16.mxu0 0
        %1344 = vmatpush1.bf16.msra.mxu0 0
        %1345 = vmatprep.subr.bf16.mxu0 0
        %1346 = vmatpush1.bf16.msra.mxu0 0
        %1347 = vmatprep.subr.bf16.mxu0 0
        %1348 = vmatpush1.bf16.msra.mxu0 0
        %1349 = vmatprep.subr.bf16.mxu0 0
        %1350 = vmatpush1.bf16.msra.mxu0 0
        %1351 = vmatprep.subr.bf16.mxu0 0
        %1352 = vmatpush1.bf16.msra.mxu0 0
        %1353 = vmatprep.mubr.bf16.mxu0 0
        %1354 = vmatmul.mubr.bf16.gmra.mrb[0].mxu0 %v1316
        %v1355 = vpop.f32.mrb[0].mxu0
        %v1356 = vadd.f32 0.0, %v1355
        %v1357 = vpop.f32.mrb[0].mxu0
        %v1358 = vpop.f32.mrb[0].mxu0
        %v1359 = vadd.f32 0.0, %v1358
        %v1360 = vpop.f32.mrb[0].mxu0
        %1361 = vdwg.mxu0
        %v1362 = vadd.f32 %v1283, %v1356
        %v1363 = vadd.f32 %v1286, %v1359
        %v1364 = vld [vmem:[%s1014] sm:$0xf]
        %v1365 = vld [vmem:[%s1014 + $0x4] sm:$0xf]
        %v1366 = vld [vmem:[%s1014 + $0x8] sm:$0x1]
        %s1367 = scalar_lea.vmem %s14, 6
        %v1368 = vld [vmem:[%s1367] sm:$0x3]
        %v1372 = vunpack.c.l.b16 %v1364
        %v1373 = vunpack.c.l.b16 %v1365
        %v1374 = vunpack.c.l.b16 %v1366
        %v1375 = vpack.c.b16 %v1373, %v1372
        %v1376 = vpack.c.b16 %v1374, %v1374
        %v1378 = vshrl.u32 %v1375, 16
        %v1380 = vshll.u32 %v1375, 16
        %v1382 = vrot.slane %v1380, 1
        %v1383 = vor.u32 %v1378, %v1382
        %v1385 = vshll.u32 %v1376, 16
        %v1387 = vrot.slane %v1385, 1
        %v1388 = vsel %vm1302, %v1383, %v1387
        %v1390 = vsel %vm1185, %v1388, 0
        %v1393 = vand.u32 %v1368, %v1192
        %1395 = vmatprep.subr.bf16.mxu0 0
        %1396 = vmatpush1.bf16.msra.mxu0 %v1393
        %1397 = vmatprep.subr.bf16.mxu0 0
        %1398 = vmatpush1.bf16.msra.mxu0 0
        %1399 = vmatprep.subr.bf16.mxu0 0
        %1400 = vmatpush1.bf16.msra.mxu0 0
        %1401 = vmatprep.subr.bf16.mxu0 0
        %1402 = vmatpush1.bf16.msra.mxu0 0
        %1403 = vmatprep.subr.bf16.mxu0 0
        %1404 = vmatpush1.bf16.msra.mxu0 0
        %1405 = vmatprep.subr.bf16.mxu0 0
        %1406 = vmatpush1.bf16.msra.mxu0 0
        %1407 = vmatprep.subr.bf16.mxu0 0
        %1408 = vmatpush1.bf16.msra.mxu0 0
        %1409 = vmatprep.subr.bf16.mxu0 0
        %1410 = vmatpush1.bf16.msra.mxu0 0
        %1411 = vmatprep.subr.bf16.mxu0 0
        %1412 = vmatpush1.bf16.msra.mxu0 0
        %1413 = vmatprep.subr.bf16.mxu0 0
        %1414 = vmatpush1.bf16.msra.mxu0 0
        %1415 = vmatprep.subr.bf16.mxu0 0
        %1416 = vmatpush1.bf16.msra.mxu0 0
        %1417 = vmatprep.subr.bf16.mxu0 0
        %1418 = vmatpush1.bf16.msra.mxu0 0
        %1419 = vmatprep.subr.bf16.mxu0 0
        %1420 = vmatpush1.bf16.msra.mxu0 0
        %1421 = vmatprep.subr.bf16.mxu0 0
        %1422 = vmatpush1.bf16.msra.mxu0 0
        %1423 = vmatprep.subr.bf16.mxu0 0
        %1424 = vmatpush1.bf16.msra.mxu0 0
        %1425 = vmatprep.subr.bf16.mxu0 0
        %1426 = vmatpush1.bf16.msra.mxu0 0
        %1427 = vmatprep.mubr.bf16.mxu0 0
        %1428 = vmatmul.mubr.bf16.gmra.mrb[0].mxu0 %v1390
        %v1429 = vpop.f32.mrb[0].mxu0
        %v1430 = vadd.f32 0.0, %v1429
        %v1431 = vpop.f32.mrb[0].mxu0
        %v1432 = vpop.f32.mrb[0].mxu0
        %v1433 = vadd.f32 0.0, %v1432
        %v1434 = vpop.f32.mrb[0].mxu0
        %1435 = vdwg.mxu0
        %v1436 = vadd.f32 %v1362, %v1430
        %v1437 = vadd.f32 %v1363, %v1433
        %v1438 = vld [vmem:[%s1003] sm:$0xe]
        %s1439 = scalar_lea.vmem %s14, 8
        %v1440 = vld [vmem:[%s1439] sm:$0x3]
        %v1442 = vunpack.c.l.b16 %v1438
        %v1443 = vpack.c.b16 %v1298, %v1442
        %vm1444 = vcmask 1046528
        %v1445 = vrot.slane %v1443, 1
        %v1446 = vrot.slane %v1301, 1
        %v1447 = vsel %vm1444, %v1445, %v1446
        %v1449 = vsel %vm1185, %v1447, 0
        %v1452 = vand.u32 %v1440, %v1192
        %1454 = vmatprep.subr.bf16.mxu0 0
        %1455 = vmatpush1.bf16.msra.mxu0 %v1452
        %1456 = vmatprep.subr.bf16.mxu0 0
        %1457 = vmatpush1.bf16.msra.mxu0 0
        %1458 = vmatprep.subr.bf16.mxu0 0
        %1459 = vmatpush1.bf16.msra.mxu0 0
        %1460 = vmatprep.subr.bf16.mxu0 0
        %1461 = vmatpush1.bf16.msra.mxu0 0
        %1462 = vmatprep.subr.bf16.mxu0 0
        %1463 = vmatpush1.bf16.msra.mxu0 0
        %1464 = vmatprep.subr.bf16.mxu0 0
        %1465 = vmatpush1.bf16.msra.mxu0 0
        %1466 = vmatprep.subr.bf16.mxu0 0
        %1467 = vmatpush1.bf16.msra.mxu0 0
        %1468 = vmatprep.subr.bf16.mxu0 0
        %1469 = vmatpush1.bf16.msra.mxu0 0
        %1470 = vmatprep.subr.bf16.mxu0 0
        %1471 = vmatpush1.bf16.msra.mxu0 0
        %1472 = vmatprep.subr.bf16.mxu0 0
        %1473 = vmatpush1.bf16.msra.mxu0 0
        %1474 = vmatprep.subr.bf16.mxu0 0
        %1475 = vmatpush1.bf16.msra.mxu0 0
        %1476 = vmatprep.subr.bf16.mxu0 0
        %1477 = vmatpush1.bf16.msra.mxu0 0
        %1478 = vmatprep.subr.bf16.mxu0 0
        %1479 = vmatpush1.bf16.msra.mxu0 0
        %1480 = vmatprep.subr.bf16.mxu0 0
        %1481 = vmatpush1.bf16.msra.mxu0 0
        %1482 = vmatprep.subr.bf16.mxu0 0
        %1483 = vmatpush1.bf16.msra.mxu0 0
        %1484 = vmatprep.subr.bf16.mxu0 0
        %1485 = vmatpush1.bf16.msra.mxu0 0
        %1486 = vmatprep.mubr.bf16.mxu0 0
        %1487 = vmatmul.mubr.bf16.gmra.mrb[0].mxu0 %v1449
        %v1488 = vpop.f32.mrb[0].mxu0
        %v1489 = vadd.f32 0.0, %v1488
        %v1490 = vpop.f32.mrb[0].mxu0
        %v1491 = vpop.f32.mrb[0].mxu0
        %v1492 = vadd.f32 0.0, %v1491
        %v1493 = vpop.f32.mrb[0].mxu0
        %1494 = vdwg.mxu0
        %v1495 = vadd.f32 %v1436, %v1489
        %v1496 = vadd.f32 %v1437, %v1492
        %v1497 = vld [vmem:[%s1014] sm:$0xe]
        %s1498 = scalar_lea.vmem %s14, 10
        %v1499 = vld [vmem:[%s1498] sm:$0x3]
        %v1501 = vunpack.c.l.b16 %v1497
        %v1502 = vpack.c.b16 %v1373, %v1501
        %v1503 = vrot.slane %v1502, 1
        %v1504 = vrot.slane %v1376, 1
        %v1505 = vsel %vm1444, %v1503, %v1504
        %v1507 = vsel %vm1185, %v1505, 0
        %v1510 = vand.u32 %v1499, %v1192
        %1512 = vmatprep.subr.bf16.mxu0 0
        %1513 = vmatpush1.bf16.msra.mxu0 %v1510
        %1514 = vmatprep.subr.bf16.mxu0 0
        %1515 = vmatpush1.bf16.msra.mxu0 0
        %1516 = vmatprep.subr.bf16.mxu0 0
        %1517 = vmatpush1.bf16.msra.mxu0 0
        %1518 = vmatprep.subr.bf16.mxu0 0
        %1519 = vmatpush1.bf16.msra.mxu0 0
        %1520 = vmatprep.subr.bf16.mxu0 0
        %1521 = vmatpush1.bf16.msra.mxu0 0
        %1522 = vmatprep.subr.bf16.mxu0 0
        %1523 = vmatpush1.bf16.msra.mxu0 0
        %1524 = vmatprep.subr.bf16.mxu0 0
        %1525 = vmatpush1.bf16.msra.mxu0 0
        %1526 = vmatprep.subr.bf16.mxu0 0
        %1527 = vmatpush1.bf16.msra.mxu0 0
        %1528 = vmatprep.subr.bf16.mxu0 0
        %1529 = vmatpush1.bf16.msra.mxu0 0
        %1530 = vmatprep.subr.bf16.mxu0 0
        %1531 = vmatpush1.bf16.msra.mxu0 0
        %1532 = vmatprep.subr.bf16.mxu0 0
        %1533 = vmatpush1.bf16.msra.mxu0 0
        %1534 = vmatprep.subr.bf16.mxu0 0
        %1535 = vmatpush1.bf16.msra.mxu0 0
        %1536 = vmatprep.subr.bf16.mxu0 0
        %1537 = vmatpush1.bf16.msra.mxu0 0
        %1538 = vmatprep.subr.bf16.mxu0 0
        %1539 = vmatpush1.bf16.msra.mxu0 0
        %1540 = vmatprep.subr.bf16.mxu0 0
        %1541 = vmatpush1.bf16.msra.mxu0 0
        %1542 = vmatprep.subr.bf16.mxu0 0
        %1543 = vmatpush1.bf16.msra.mxu0 0
        %1544 = vmatprep.mubr.bf16.mxu0 0
        %1545 = vmatmul.mubr.bf16.gmra.mrb[0].mxu0 %v1507
        %v1546 = vpop.f32.mrb[0].mxu0
        %v1547 = vadd.f32 0.0, %v1546
        %v1548 = vpop.f32.mrb[0].mxu0
        %v1549 = vpop.f32.mrb[0].mxu0
        %v1550 = vadd.f32 0.0, %v1549
        %v1551 = vpop.f32.mrb[0].mxu0
        %1552 = vdwg.mxu0
        %v1553 = vadd.f32 %v1495, %v1547
        %v1554 = vadd.f32 %v1496, %v1550
        %v1555 = vld [vmem:[%s1003 + $0x8] sm:$0x3]
        %s1556 = scalar_lea.vmem %s14, 12
        %v1557 = vld [vmem:[%s1556] sm:$0x3]
        %v1559 = vunpack.c.l.b16 %v1555
        %v1560 = vpack.c.b16 %v1559, %v1559
        %vm1561 = vsmask.f32 6400
        %v1563 = vshrl.u32 %v1443, 16
        %v1565 = vrot.slane %v1563, 1
        %v1566 = vshll.u32 %v1443, 16
        %v1568 = vrot.slane %v1566, 2
        %v1569 = vor.u32 %v1565, %v1568
        %v1571 = vshrl.u32 %v1560, 16
        %v1573 = vrot.slane %v1571, 1
        %v1574 = vshll.u32 %v1560, 16
        %v1576 = vrot.slane %v1574, 2
        %v1577 = vor.u32 %v1573, %v1576
        %v1578 = vsel %vm1561, %v1569, %v1577
        %v1580 = vsel %vm1185, %v1578, 0
        %v1583 = vand.u32 %v1557, %v1192
        %1585 = vmatprep.subr.bf16.mxu0 0
        %1586 = vmatpush1.bf16.msra.mxu0 %v1583
        %1587 = vmatprep.subr.bf16.mxu0 0
        %1588 = vmatpush1.bf16.msra.mxu0 0
        %1589 = vmatprep.subr.bf16.mxu0 0
        %1590 = vmatpush1.bf16.msra.mxu0 0
        %1591 = vmatprep.subr.bf16.mxu0 0
        %1592 = vmatpush1.bf16.msra.mxu0 0
        %1593 = vmatprep.subr.bf16.mxu0 0
        %1594 = vmatpush1.bf16.msra.mxu0 0
        %1595 = vmatprep.subr.bf16.mxu0 0
        %1596 = vmatpush1.bf16.msra.mxu0 0
        %1597 = vmatprep.subr.bf16.mxu0 0
        %1598 = vmatpush1.bf16.msra.mxu0 0
        %1599 = vmatprep.subr.bf16.mxu0 0
        %1600 = vmatpush1.bf16.msra.mxu0 0
        %1601 = vmatprep.subr.bf16.mxu0 0
        %1602 = vmatpush1.bf16.msra.mxu0 0
        %1603 = vmatprep.subr.bf16.mxu0 0
        %1604 = vmatpush1.bf16.msra.mxu0 0
        %1605 = vmatprep.subr.bf16.mxu0 0
        %1606 = vmatpush1.bf16.msra.mxu0 0
        %1607 = vmatprep.subr.bf16.mxu0 0
        %1608 = vmatpush1.bf16.msra.mxu0 0
        %1609 = vmatprep.subr.bf16.mxu0 0
        %1610 = vmatpush1.bf16.msra.mxu0 0
        %1611 = vmatprep.subr.bf16.mxu0 0
        %1612 = vmatpush1.bf16.msra.mxu0 0
        %1613 = vmatprep.subr.bf16.mxu0 0
        %1614 = vmatpush1.bf16.msra.mxu0 0
        %1615 = vmatprep.subr.bf16.mxu0 0
        %1616 = vmatpush1.bf16.msra.mxu0 0
        %1617 = vmatprep.mubr.bf16.mxu0 0
        %1618 = vmatmul.mubr.bf16.gmra.mrb[0].mxu0 %v1580
        %v1619 = vpop.f32.mrb[0].mxu0
        %v1620 = vadd.f32 0.0, %v1619
        %v1621 = vpop.f32.mrb[0].mxu0
        %v1622 = vpop.f32.mrb[0].mxu0
        %v1623 = vadd.f32 0.0, %v1622
        %v1624 = vpop.f32.mrb[0].mxu0
        %1625 = vdwg.mxu0
        %v1626 = vadd.f32 %v1553, %v1620
        %v1627 = vadd.f32 %v1554, %v1623
        %v1628 = vld [vmem:[%s1026] sm:$0xf]
        %v1629 = vld [vmem:[%s1026 + $0x4] sm:$0xf]
        %s1630 = scalar_lea.vmem %s14, 14
        %v1631 = vld [vmem:[%s1630] sm:$0x3]
        %v1634 = vunpack.c.l.b16 %v1628
        %v1635 = vunpack.c.l.b16 %v1629
        %v1636 = vpack.c.b16 %v1635, %v1634
        %v1638 = vsel %vm1185, %v1636, 0
        %v1641 = vand.u32 %v1631, %v1192
        %1643 = vmatprep.subr.bf16.mxu0 0
        %1644 = vmatpush1.bf16.msra.mxu0 %v1641
        %1645 = vmatprep.subr.bf16.mxu0 0
        %1646 = vmatpush1.bf16.msra.mxu0 0
        %1647 = vmatprep.subr.bf16.mxu0 0
        %1648 = vmatpush1.bf16.msra.mxu0 0
        %1649 = vmatprep.subr.bf16.mxu0 0
        %1650 = vmatpush1.bf16.msra.mxu0 0
        %1651 = vmatprep.subr.bf16.mxu0 0
        %1652 = vmatpush1.bf16.msra.mxu0 0
        %1653 = vmatprep.subr.bf16.mxu0 0
        %1654 = vmatpush1.bf16.msra.mxu0 0
        %1655 = vmatprep.subr.bf16.mxu0 0
        %1656 = vmatpush1.bf16.msra.mxu0 0
        %1657 = vmatprep.subr.bf16.mxu0 0
        %1658 = vmatpush1.bf16.msra.mxu0 0
        %1659 = vmatprep.subr.bf16.mxu0 0
        %1660 = vmatpush1.bf16.msra.mxu0 0
        %1661 = vmatprep.subr.bf16.mxu0 0
        %1662 = vmatpush1.bf16.msra.mxu0 0
        %1663 = vmatprep.subr.bf16.mxu0 0
        %1664 = vmatpush1.bf16.msra.mxu0 0
        %1665 = vmatprep.subr.bf16.mxu0 0
        %1666 = vmatpush1.bf16.msra.mxu0 0
        %1667 = vmatprep.subr.bf16.mxu0 0
        %1668 = vmatpush1.bf16.msra.mxu0 0
        %1669 = vmatprep.subr.bf16.mxu0 0
        %1670 = vmatpush1.bf16.msra.mxu0 0
        %1671 = vmatprep.subr.bf16.mxu0 0
        %1672 = vmatpush1.bf16.msra.mxu0 0
        %1673 = vmatprep.subr.bf16.mxu0 0
        %1674 = vmatpush1.bf16.msra.mxu0 0
        %1675 = vmatprep.mubr.bf16.mxu0 0
        %1676 = vmatmul.mubr.bf16.gmra.mrb[0].mxu0 %v1638
        %v1677 = vpop.f32.mrb[0].mxu0
        %v1678 = vadd.f32 0.0, %v1677
        %v1679 = vpop.f32.mrb[0].mxu0
        %v1680 = vpop.f32.mrb[0].mxu0
        %v1681 = vadd.f32 0.0, %v1680
        %v1682 = vpop.f32.mrb[0].mxu0
        %1683 = vdwg.mxu0
        %v1684 = vadd.f32 %v1626, %v1678
        %v1685 = vadd.f32 %v1627, %v1681
        %v1686 = vld [vmem:[%s1039] sm:$0xf]
        %v1687 = vld [vmem:[%s1039 + $0x4] sm:$0xf]
        %s1688 = scalar_lea.vmem %s14, 16
        %v1689 = vld [vmem:[%s1688] sm:$0x3]
        %v1692 = vunpack.c.l.b16 %v1686
        %v1693 = vunpack.c.l.b16 %v1687
        %v1694 = vpack.c.b16 %v1693, %v1692
        %v1696 = vsel %vm1185, %v1694, 0
        %v1699 = vand.u32 %v1689, %v1192
        %1701 = vmatprep.subr.bf16.mxu0 0
        %1702 = vmatpush1.bf16.msra.mxu0 %v1699
        %1703 = vmatprep.subr.bf16.mxu0 0
        %1704 = vmatpush1.bf16.msra.mxu0 0
        %1705 = vmatprep.subr.bf16.mxu0 0
        %1706 = vmatpush1.bf16.msra.mxu0 0
        %1707 = vmatprep.subr.bf16.mxu0 0
        %1708 = vmatpush1.bf16.msra.mxu0 0
        %1709 = vmatprep.subr.bf16.mxu0 0
        %1710 = vmatpush1.bf16.msra.mxu0 0
        %1711 = vmatprep.subr.bf16.mxu0 0
        %1712 = vmatpush1.bf16.msra.mxu0 0
        %1713 = vmatprep.subr.bf16.mxu0 0
        %1714 = vmatpush1.bf16.msra.mxu0 0
        %1715 = vmatprep.subr.bf16.mxu0 0
        %1716 = vmatpush1.bf16.msra.mxu0 0
        %1717 = vmatprep.subr.bf16.mxu0 0
        %1718 = vmatpush1.bf16.msra.mxu0 0
        %1719 = vmatprep.subr.bf16.mxu0 0
        %1720 = vmatpush1.bf16.msra.mxu0 0
        %1721 = vmatprep.subr.bf16.mxu0 0
        %1722 = vmatpush1.bf16.msra.mxu0 0
        %1723 = vmatprep.subr.bf16.mxu0 0
        %1724 = vmatpush1.bf16.msra.mxu0 0
        %1725 = vmatprep.subr.bf16.mxu0 0
        %1726 = vmatpush1.bf16.msra.mxu0 0
        %1727 = vmatprep.subr.bf16.mxu0 0
        %1728 = vmatpush1.bf16.msra.mxu0 0
        %1729 = vmatprep.subr.bf16.mxu0 0
        %1730 = vmatpush1.bf16.msra.mxu0 0
        %1731 = vmatprep.subr.bf16.mxu0 0
        %1732 = vmatpush1.bf16.msra.mxu0 0
        %1733 = vmatprep.mubr.bf16.mxu0 0
        %1734 = vmatmul.mubr.bf16.gmra.mrb[0].mxu0 %v1696
        %v1735 = vpop.f32.mrb[0].mxu0
        %v1736 = vadd.f32 0.0, %v1735
        %v1737 = vpop.f32.mrb[0].mxu0
        %v1738 = vpop.f32.mrb[0].mxu0
        %v1739 = vadd.f32 0.0, %v1738
        %v1740 = vpop.f32.mrb[0].mxu0
        %1741 = vdwg.mxu0
        %v1742 = vadd.f32 %v1684, %v1736
        %v1743 = vadd.f32 %v1685, %v1739
        %v1744 = vld [vmem:[%s1026] sm:$0xf]
        %v1745 = vld [vmem:[%s1026 + $0x4] sm:$0xf]
        %v1746 = vld [vmem:[%s1026 + $0x8] sm:$0x1]
        %s1747 = scalar_lea.vmem %s14, 18
        %v1748 = vld [vmem:[%s1747] sm:$0x3]
        %v1752 = vunpack.c.l.b16 %v1744
        %v1753 = vunpack.c.l.b16 %v1745
        %v1754 = vunpack.c.l.b16 %v1746
        %v1755 = vpack.c.b16 %v1753, %v1752
        %v1756 = vpack.c.b16 %v1754, %v1754
        %v1758 = vshrl.u32 %v1755, 16
        %v1760 = vshll.u32 %v1755, 16
        %v1762 = vrot.slane %v1760, 1
        %v1763 = vor.u32 %v1758, %v1762
        %v1765 = vshll.u32 %v1756, 16
        %v1767 = vrot.slane %v1765, 1
        %v1768 = vsel %vm1302, %v1763, %v1767
        %v1770 = vsel %vm1185, %v1768, 0
        %v1773 = vand.u32 %v1748, %v1192
        %1775 = vmatprep.subr.bf16.mxu0 0
        %1776 = vmatpush1.bf16.msra.mxu0 %v1773
        %1777 = vmatprep.subr.bf16.mxu0 0
        %1778 = vmatpush1.bf16.msra.mxu0 0
        %1779 = vmatprep.subr.bf16.mxu0 0
        %1780 = vmatpush1.bf16.msra.mxu0 0
        %1781 = vmatprep.subr.bf16.mxu0 0
        %1782 = vmatpush1.bf16.msra.mxu0 0
        %1783 = vmatprep.subr.bf16.mxu0 0
        %1784 = vmatpush1.bf16.msra.mxu0 0
        %1785 = vmatprep.subr.bf16.mxu0 0
        %1786 = vmatpush1.bf16.msra.mxu0 0
        %1787 = vmatprep.subr.bf16.mxu0 0
        %1788 = vmatpush1.bf16.msra.mxu0 0
        %1789 = vmatprep.subr.bf16.mxu0 0
        %1790 = vmatpush1.bf16.msra.mxu0 0
        %1791 = vmatprep.subr.bf16.mxu0 0
        %1792 = vmatpush1.bf16.msra.mxu0 0
        %1793 = vmatprep.subr.bf16.mxu0 0
        %1794 = vmatpush1.bf16.msra.mxu0 0
        %1795 = vmatprep.subr.bf16.mxu0 0
        %1796 = vmatpush1.bf16.msra.mxu0 0
        %1797 = vmatprep.subr.bf16.mxu0 0
        %1798 = vmatpush1.bf16.msra.mxu0 0
        %1799 = vmatprep.subr.bf16.mxu0 0
        %1800 = vmatpush1.bf16.msra.mxu0 0
        %1801 = vmatprep.subr.bf16.mxu0 0
        %1802 = vmatpush1.bf16.msra.mxu0 0
        %1803 = vmatprep.subr.bf16.mxu0 0
        %1804 = vmatpush1.bf16.msra.mxu0 0
        %1805 = vmatprep.subr.bf16.mxu0 0
        %1806 = vmatpush1.bf16.msra.mxu0 0
        %1807 = vmatprep.mubr.bf16.mxu0 0
        %1808 = vmatmul.mubr.bf16.gmra.mrb[0].mxu0 %v1770
        %v1809 = vpop.f32.mrb[0].mxu0
        %v1810 = vadd.f32 0.0, %v1809
        %v1811 = vpop.f32.mrb[0].mxu0
        %v1812 = vpop.f32.mrb[0].mxu0
        %v1813 = vadd.f32 0.0, %v1812
        %v1814 = vpop.f32.mrb[0].mxu0
        %1815 = vdwg.mxu0
        %v1816 = vadd.f32 %v1742, %v1810
        %v1817 = vadd.f32 %v1743, %v1813
        %v1818 = vld [vmem:[%s1039] sm:$0xf]
        %v1819 = vld [vmem:[%s1039 + $0x4] sm:$0xf]
        %v1820 = vld [vmem:[%s1039 + $0x8] sm:$0x1]
        %s1821 = scalar_lea.vmem %s14, 20
        %v1822 = vld [vmem:[%s1821] sm:$0x3]
        %v1826 = vunpack.c.l.b16 %v1818
        %v1827 = vunpack.c.l.b16 %v1819
        %v1828 = vunpack.c.l.b16 %v1820
        %v1829 = vpack.c.b16 %v1827, %v1826
        %v1830 = vpack.c.b16 %v1828, %v1828
        %v1832 = vshrl.u32 %v1829, 16
        %v1834 = vshll.u32 %v1829, 16
        %v1836 = vrot.slane %v1834, 1
        %v1837 = vor.u32 %v1832, %v1836
        %v1839 = vshll.u32 %v1830, 16
        %v1841 = vrot.slane %v1839, 1
        %v1842 = vsel %vm1302, %v1837, %v1841
        %v1844 = vsel %vm1185, %v1842, 0
        %v1847 = vand.u32 %v1822, %v1192
        %1849 = vmatprep.subr.bf16.mxu0 0
        %1850 = vmatpush1.bf16.msra.mxu0 %v1847
        %1851 = vmatprep.subr.bf16.mxu0 0
        %1852 = vmatpush1.bf16.msra.mxu0 0
        %1853 = vmatprep.subr.bf16.mxu0 0
        %1854 = vmatpush1.bf16.msra.mxu0 0
        %1855 = vmatprep.subr.bf16.mxu0 0
        %1856 = vmatpush1.bf16.msra.mxu0 0
        %1857 = vmatprep.subr.bf16.mxu0 0
        %1858 = vmatpush1.bf16.msra.mxu0 0
        %1859 = vmatprep.subr.bf16.mxu0 0
        %1860 = vmatpush1.bf16.msra.mxu0 0
        %1861 = vmatprep.subr.bf16.mxu0 0
        %1862 = vmatpush1.bf16.msra.mxu0 0
        %1863 = vmatprep.subr.bf16.mxu0 0
        %1864 = vmatpush1.bf16.msra.mxu0 0
        %1865 = vmatprep.subr.bf16.mxu0 0
        %1866 = vmatpush1.bf16.msra.mxu0 0
        %1867 = vmatprep.subr.bf16.mxu0 0
        %1868 = vmatpush1.bf16.msra.mxu0 0
        %1869 = vmatprep.subr.bf16.mxu0 0
        %1870 = vmatpush1.bf16.msra.mxu0 0
        %1871 = vmatprep.subr.bf16.mxu0 0
        %1872 = vmatpush1.bf16.msra.mxu0 0
        %1873 = vmatprep.subr.bf16.mxu0 0
        %1874 = vmatpush1.bf16.msra.mxu0 0
        %1875 = vmatprep.subr.bf16.mxu0 0
        %1876 = vmatpush1.bf16.msra.mxu0 0
        %1877 = vmatprep.subr.bf16.mxu0 0
        %1878 = vmatpush1.bf16.msra.mxu0 0
        %1879 = vmatprep.subr.bf16.mxu0 0
        %1880 = vmatpush1.bf16.msra.mxu0 0
        %1881 = vmatprep.mubr.bf16.mxu0 0
        %1882 = vmatmul.mubr.bf16.gmra.mrb[0].mxu0 %v1844
        %v1883 = vpop.f32.mrb[0].mxu0
        %v1884 = vadd.f32 0.0, %v1883
        %v1885 = vpop.f32.mrb[0].mxu0
        %v1886 = vpop.f32.mrb[0].mxu0
        %v1887 = vadd.f32 0.0, %v1886
        %v1888 = vpop.f32.mrb[0].mxu0
        %1889 = vdwg.mxu0
        %v1890 = vadd.f32 %v1816, %v1884
        %v1891 = vadd.f32 %v1817, %v1887
        %v1892 = vld [vmem:[%s1026] sm:$0xe]
        %s1893 = scalar_lea.vmem %s14, 22
        %v1894 = vld [vmem:[%s1893] sm:$0x3]
        %v1896 = vunpack.c.l.b16 %v1892
        %v1897 = vpack.c.b16 %v1753, %v1896
        %v1898 = vrot.slane %v1897, 1
        %v1899 = vrot.slane %v1756, 1
        %v1900 = vsel %vm1444, %v1898, %v1899
        %v1902 = vsel %vm1185, %v1900, 0
        %v1905 = vand.u32 %v1894, %v1192
        %1907 = vmatprep.subr.bf16.mxu0 0
        %1908 = vmatpush1.bf16.msra.mxu0 %v1905
        %1909 = vmatprep.subr.bf16.mxu0 0
        %1910 = vmatpush1.bf16.msra.mxu0 0
        %1911 = vmatprep.subr.bf16.mxu0 0
        %1912 = vmatpush1.bf16.msra.mxu0 0
        %1913 = vmatprep.subr.bf16.mxu0 0
        %1914 = vmatpush1.bf16.msra.mxu0 0
        %1915 = vmatprep.subr.bf16.mxu0 0
        %1916 = vmatpush1.bf16.msra.mxu0 0
        %1917 = vmatprep.subr.bf16.mxu0 0
        %1918 = vmatpush1.bf16.msra.mxu0 0
        %1919 = vmatprep.subr.bf16.mxu0 0
        %1920 = vmatpush1.bf16.msra.mxu0 0
        %1921 = vmatprep.subr.bf16.mxu0 0
        %1922 = vmatpush1.bf16.msra.mxu0 0
        %1923 = vmatprep.subr.bf16.mxu0 0
        %1924 = vmatpush1.bf16.msra.mxu0 0
        %1925 = vmatprep.subr.bf16.mxu0 0
        %1926 = vmatpush1.bf16.msra.mxu0 0
        %1927 = vmatprep.subr.bf16.mxu0 0
        %1928 = vmatpush1.bf16.msra.mxu0 0
        %1929 = vmatprep.subr.bf16.mxu0 0
        %1930 = vmatpush1.bf16.msra.mxu0 0
        %1931 = vmatprep.subr.bf16.mxu0 0
        %1932 = vmatpush1.bf16.msra.mxu0 0
        %1933 = vmatprep.subr.bf16.mxu0 0
        %1934 = vmatpush1.bf16.msra.mxu0 0
        %1935 = vmatprep.subr.bf16.mxu0 0
        %1936 = vmatpush1.bf16.msra.mxu0 0
        %1937 = vmatprep.subr.bf16.mxu0 0
        %1938 = vmatpush1.bf16.msra.mxu0 0
        %1939 = vmatprep.mubr.bf16.mxu0 0
        %1940 = vmatmul.mubr.bf16.gmra.mrb[0].mxu0 %v1902
        %v1941 = vpop.f32.mrb[0].mxu0
        %v1942 = vadd.f32 0.0, %v1941
        %v1943 = vpop.f32.mrb[0].mxu0
        %v1944 = vpop.f32.mrb[0].mxu0
        %v1945 = vadd.f32 0.0, %v1944
        %v1946 = vpop.f32.mrb[0].mxu0
        %1947 = vdwg.mxu0
        %v1948 = vadd.f32 %v1890, %v1942
        %v1949 = vadd.f32 %v1891, %v1945
        %v1950 = vld [vmem:[%s1039] sm:$0xe]
        %s1951 = scalar_lea.vmem %s14, 24
        %v1952 = vld [vmem:[%s1951] sm:$0x3]
        %v1954 = vunpack.c.l.b16 %v1950
        %v1955 = vpack.c.b16 %v1827, %v1954
        %v1956 = vrot.slane %v1955, 1
        %v1957 = vrot.slane %v1830, 1
        %v1958 = vsel %vm1444, %v1956, %v1957
        %v1960 = vsel %vm1185, %v1958, 0
        %v1963 = vand.u32 %v1952, %v1192
        %1965 = vmatprep.subr.bf16.mxu0 0
        %1966 = vmatpush1.bf16.msra.mxu0 %v1963
        %1967 = vmatprep.subr.bf16.mxu0 0
        %1968 = vmatpush1.bf16.msra.mxu0 0
        %1969 = vmatprep.subr.bf16.mxu0 0
        %1970 = vmatpush1.bf16.msra.mxu0 0
        %1971 = vmatprep.subr.bf16.mxu0 0
        %1972 = vmatpush1.bf16.msra.mxu0 0
        %1973 = vmatprep.subr.bf16.mxu0 0
        %1974 = vmatpush1.bf16.msra.mxu0 0
        %1975 = vmatprep.subr.bf16.mxu0 0
        %1976 = vmatpush1.bf16.msra.mxu0 0
        %1977 = vmatprep.subr.bf16.mxu0 0
        %1978 = vmatpush1.bf16.msra.mxu0 0
        %1979 = vmatprep.subr.bf16.mxu0 0
        %1980 = vmatpush1.bf16.msra.mxu0 0
        %1981 = vmatprep.subr.bf16.mxu0 0
        %1982 = vmatpush1.bf16.msra.mxu0 0
        %1983 = vmatprep.subr.bf16.mxu0 0
        %1984 = vmatpush1.bf16.msra.mxu0 0
        %1985 = vmatprep.subr.bf16.mxu0 0
        %1986 = vmatpush1.bf16.msra.mxu0 0
        %1987 = vmatprep.subr.bf16.mxu0 0
        %1988 = vmatpush1.bf16.msra.mxu0 0
        %1989 = vmatprep.subr.bf16.mxu0 0
        %1990 = vmatpush1.bf16.msra.mxu0 0
        %1991 = vmatprep.subr.bf16.mxu0 0
        %1992 = vmatpush1.bf16.msra.mxu0 0
        %1993 = vmatprep.subr.bf16.mxu0 0
        %1994 = vmatpush1.bf16.msra.mxu0 0
        %1995 = vmatprep.subr.bf16.mxu0 0
        %1996 = vmatpush1.bf16.msra.mxu0 0
        %1997 = vmatprep.mubr.bf16.mxu0 0
        %1998 = vmatmul.mubr.bf16.gmra.mrb[0].mxu0 %v1960
        %v1999 = vpop.f32.mrb[0].mxu0
        %v2000 = vadd.f32 0.0, %v1999
        %v2001 = vpop.f32.mrb[0].mxu0
        %v2002 = vpop.f32.mrb[0].mxu0
        %v2003 = vadd.f32 0.0, %v2002
        %v2004 = vpop.f32.mrb[0].mxu0
        %2005 = vdwg.mxu0
        %v2006 = vadd.f32 %v1948, %v2000
        %v2007 = vadd.f32 %v1949, %v2003
        %v2008 = vld [vmem:[%s1026 + $0x8] sm:$0x3]
        %s2009 = scalar_lea.vmem %s14, 26
        %v2010 = vld [vmem:[%s2009] sm:$0x3]
        %v2012 = vunpack.c.l.b16 %v2008
        %v2013 = vpack.c.b16 %v2012, %v2012
        %v2015 = vshrl.u32 %v1897, 16
        %v2017 = vrot.slane %v2015, 1
        %v2018 = vshll.u32 %v1897, 16
        %v2020 = vrot.slane %v2018, 2
        %v2021 = vor.u32 %v2017, %v2020
        %v2023 = vshrl.u32 %v2013, 16
        %v2025 = vrot.slane %v2023, 1
        %v2026 = vshll.u32 %v2013, 16
        %v2028 = vrot.slane %v2026, 2
        %v2029 = vor.u32 %v2025, %v2028
        %v2030 = vsel %vm1561, %v2021, %v2029
        %v2032 = vsel %vm1185, %v2030, 0
        %v2035 = vand.u32 %v2010, %v1192
        %2037 = vmatprep.subr.bf16.mxu0 0
        %2038 = vmatpush1.bf16.msra.mxu0 %v2035
        %2039 = vmatprep.subr.bf16.mxu0 0
        %2040 = vmatpush1.bf16.msra.mxu0 0
        %2041 = vmatprep.subr.bf16.mxu0 0
        %2042 = vmatpush1.bf16.msra.mxu0 0
        %2043 = vmatprep.subr.bf16.mxu0 0
        %2044 = vmatpush1.bf16.msra.mxu0 0
        %2045 = vmatprep.subr.bf16.mxu0 0
        %2046 = vmatpush1.bf16.msra.mxu0 0
        %2047 = vmatprep.subr.bf16.mxu0 0
        %2048 = vmatpush1.bf16.msra.mxu0 0
        %2049 = vmatprep.subr.bf16.mxu0 0
        %2050 = vmatpush1.bf16.msra.mxu0 0
        %2051 = vmatprep.subr.bf16.mxu0 0
        %2052 = vmatpush1.bf16.msra.mxu0 0
        %2053 = vmatprep.subr.bf16.mxu0 0
        %2054 = vmatpush1.bf16.msra.mxu0 0
        %2055 = vmatprep.subr.bf16.mxu0 0
        %2056 = vmatpush1.bf16.msra.mxu0 0
        %2057 = vmatprep.subr.bf16.mxu0 0
        %2058 = vmatpush1.bf16.msra.mxu0 0
        %2059 = vmatprep.subr.bf16.mxu0 0
        %2060 = vmatpush1.bf16.msra.mxu0 0
        %2061 = vmatprep.subr.bf16.mxu0 0
        %2062 = vmatpush1.bf16.msra.mxu0 0
        %2063 = vmatprep.subr.bf16.mxu0 0
        %2064 = vmatpush1.bf16.msra.mxu0 0
        %2065 = vmatprep.subr.bf16.mxu0 0
        %2066 = vmatpush1.bf16.msra.mxu0 0
        %2067 = vmatprep.subr.bf16.mxu0 0
        %2068 = vmatpush1.bf16.msra.mxu0 0
        %2069 = vmatprep.mubr.bf16.mxu0 0
        %2070 = vmatmul.mubr.bf16.gmra.mrb[0].mxu0 %v2032
        %v2071 = vpop.f32.mrb[0].mxu0
        %v2072 = vadd.f32 0.0, %v2071
        %v2073 = vpop.f32.mrb[0].mxu0
        %v2074 = vpop.f32.mrb[0].mxu0
        %v2075 = vadd.f32 0.0, %v2074
        %v2076 = vpop.f32.mrb[0].mxu0
        %2077 = vdwg.mxu0
        %v2078 = vadd.f32 %v2006, %v2072
        %v2079 = vadd.f32 %v2007, %v2075
        %v2080 = vld [vmem:[%s1052] sm:$0xf]
        %v2081 = vld [vmem:[%s1052 + $0x4] sm:$0xf]
        %s2082 = scalar_lea.vmem %s14, 28
        %v2083 = vld [vmem:[%s2082] sm:$0x3]
        %v2086 = vunpack.c.l.b16 %v2080
        %v2087 = vunpack.c.l.b16 %v2081
        %v2088 = vpack.c.b16 %v2087, %v2086
        %v2090 = vsel %vm1185, %v2088, 0
        %v2093 = vand.u32 %v2083, %v1192
        %2095 = vmatprep.subr.bf16.mxu0 0
        %2096 = vmatpush1.bf16.msra.mxu0 %v2093
        %2097 = vmatprep.subr.bf16.mxu0 0
        %2098 = vmatpush1.bf16.msra.mxu0 0
        %2099 = vmatprep.subr.bf16.mxu0 0
        %2100 = vmatpush1.bf16.msra.mxu0 0
        %2101 = vmatprep.subr.bf16.mxu0 0
        %2102 = vmatpush1.bf16.msra.mxu0 0
        %2103 = vmatprep.subr.bf16.mxu0 0
        %2104 = vmatpush1.bf16.msra.mxu0 0
        %2105 = vmatprep.subr.bf16.mxu0 0
        %2106 = vmatpush1.bf16.msra.mxu0 0
        %2107 = vmatprep.subr.bf16.mxu0 0
        %2108 = vmatpush1.bf16.msra.mxu0 0
        %2109 = vmatprep.subr.bf16.mxu0 0
        %2110 = vmatpush1.bf16.msra.mxu0 0
        %2111 = vmatprep.subr.bf16.mxu0 0
        %2112 = vmatpush1.bf16.msra.mxu0 0
        %2113 = vmatprep.subr.bf16.mxu0 0
        %2114 = vmatpush1.bf16.msra.mxu0 0
        %2115 = vmatprep.subr.bf16.mxu0 0
        %2116 = vmatpush1.bf16.msra.mxu0 0
        %2117 = vmatprep.subr.bf16.mxu0 0
        %2118 = vmatpush1.bf16.msra.mxu0 0
        %2119 = vmatprep.subr.bf16.mxu0 0
        %2120 = vmatpush1.bf16.msra.mxu0 0
        %2121 = vmatprep.subr.bf16.mxu0 0
        %2122 = vmatpush1.bf16.msra.mxu0 0
        %2123 = vmatprep.subr.bf16.mxu0 0
        %2124 = vmatpush1.bf16.msra.mxu0 0
        %2125 = vmatprep.subr.bf16.mxu0 0
        %2126 = vmatpush1.bf16.msra.mxu0 0
        %2127 = vmatprep.mubr.bf16.mxu0 0
        %2128 = vmatmul.mubr.bf16.gmra.mrb[0].mxu0 %v2090
        %v2129 = vpop.f32.mrb[0].mxu0
        %v2130 = vadd.f32 0.0, %v2129
        %v2131 = vpop.f32.mrb[0].mxu0
        %v2132 = vpop.f32.mrb[0].mxu0
        %v2133 = vadd.f32 0.0, %v2132
        %v2134 = vpop.f32.mrb[0].mxu0
        %2135 = vdwg.mxu0
        %v2136 = vadd.f32 %v2078, %v2130
        %v2137 = vadd.f32 %v2079, %v2133
        %v2138 = vld [vmem:[%s1065] sm:$0xf]
        %v2139 = vld [vmem:[%s1065 + $0x4] sm:$0xf]
        %s2140 = scalar_lea.vmem %s14, 30
        %v2141 = vld [vmem:[%s2140] sm:$0x3]
        %v2144 = vunpack.c.l.b16 %v2138
        %v2145 = vunpack.c.l.b16 %v2139
        %v2146 = vpack.c.b16 %v2145, %v2144
        %v2148 = vsel %vm1185, %v2146, 0
        %v2151 = vand.u32 %v2141, %v1192
        %2153 = vmatprep.subr.bf16.mxu0 0
        %2154 = vmatpush1.bf16.msra.mxu0 %v2151
        %2155 = vmatprep.subr.bf16.mxu0 0
        %2156 = vmatpush1.bf16.msra.mxu0 0
        %2157 = vmatprep.subr.bf16.mxu0 0
        %2158 = vmatpush1.bf16.msra.mxu0 0
        %2159 = vmatprep.subr.bf16.mxu0 0
        %2160 = vmatpush1.bf16.msra.mxu0 0
        %2161 = vmatprep.subr.bf16.mxu0 0
        %2162 = vmatpush1.bf16.msra.mxu0 0
        %2163 = vmatprep.subr.bf16.mxu0 0
        %2164 = vmatpush1.bf16.msra.mxu0 0
        %2165 = vmatprep.subr.bf16.mxu0 0
        %2166 = vmatpush1.bf16.msra.mxu0 0
        %2167 = vmatprep.subr.bf16.mxu0 0
        %2168 = vmatpush1.bf16.msra.mxu0 0
        %2169 = vmatprep.subr.bf16.mxu0 0
        %2170 = vmatpush1.bf16.msra.mxu0 0
        %2171 = vmatprep.subr.bf16.mxu0 0
        %2172 = vmatpush1.bf16.msra.mxu0 0
        %2173 = vmatprep.subr.bf16.mxu0 0
        %2174 = vmatpush1.bf16.msra.mxu0 0
        %2175 = vmatprep.subr.bf16.mxu0 0
        %2176 = vmatpush1.bf16.msra.mxu0 0
        %2177 = vmatprep.subr.bf16.mxu0 0
        %2178 = vmatpush1.bf16.msra.mxu0 0
        %2179 = vmatprep.subr.bf16.mxu0 0
        %2180 = vmatpush1.bf16.msra.mxu0 0
        %2181 = vmatprep.subr.bf16.mxu0 0
        %2182 = vmatpush1.bf16.msra.mxu0 0
        %2183 = vmatprep.subr.bf16.mxu0 0
        %2184 = vmatpush1.bf16.msra.mxu0 0
        %2185 = vmatprep.mubr.bf16.mxu0 0
        %2186 = vmatmul.mubr.bf16.gmra.mrb[0].mxu0 %v2148
        %v2187 = vpop.f32.mrb[0].mxu0
        %v2188 = vadd.f32 0.0, %v2187
        %v2189 = vpop.f32.mrb[0].mxu0
        %v2190 = vpop.f32.mrb[0].mxu0
        %v2191 = vadd.f32 0.0, %v2190
        %v2192 = vpop.f32.mrb[0].mxu0
        %2193 = vdwg.mxu0
        %v2194 = vadd.f32 %v2136, %v2188
        %v2195 = vadd.f32 %v2137, %v2191
        %v2196 = vld [vmem:[%s1052] sm:$0xf]
        %v2197 = vld [vmem:[%s1052 + $0x4] sm:$0xf]
        %v2198 = vld [vmem:[%s1052 + $0x8] sm:$0x1]
        %s2199 = scalar_lea.vmem %s14, 32
        %v2200 = vld [vmem:[%s2199] sm:$0x3]
        %v2204 = vunpack.c.l.b16 %v2196
        %v2205 = vunpack.c.l.b16 %v2197
        %v2206 = vunpack.c.l.b16 %v2198
        %v2207 = vpack.c.b16 %v2205, %v2204
        %v2208 = vpack.c.b16 %v2206, %v2206
        %v2210 = vshrl.u32 %v2207, 16
        %v2212 = vshll.u32 %v2207, 16
        %v2214 = vrot.slane %v2212, 1
        %v2215 = vor.u32 %v2210, %v2214
        %v2217 = vshll.u32 %v2208, 16
        %v2219 = vrot.slane %v2217, 1
        %v2220 = vsel %vm1302, %v2215, %v2219
        %v2222 = vsel %vm1185, %v2220, 0
        %v2225 = vand.u32 %v2200, %v1192
        %2227 = vmatprep.subr.bf16.mxu0 0
        %2228 = vmatpush1.bf16.msra.mxu0 %v2225
        %2229 = vmatprep.subr.bf16.mxu0 0
        %2230 = vmatpush1.bf16.msra.mxu0 0
        %2231 = vmatprep.subr.bf16.mxu0 0
        %2232 = vmatpush1.bf16.msra.mxu0 0
        %2233 = vmatprep.subr.bf16.mxu0 0
        %2234 = vmatpush1.bf16.msra.mxu0 0
        %2235 = vmatprep.subr.bf16.mxu0 0
        %2236 = vmatpush1.bf16.msra.mxu0 0
        %2237 = vmatprep.subr.bf16.mxu0 0
        %2238 = vmatpush1.bf16.msra.mxu0 0
        %2239 = vmatprep.subr.bf16.mxu0 0
        %2240 = vmatpush1.bf16.msra.mxu0 0
        %2241 = vmatprep.subr.bf16.mxu0 0
        %2242 = vmatpush1.bf16.msra.mxu0 0
        %2243 = vmatprep.subr.bf16.mxu0 0
        %2244 = vmatpush1.bf16.msra.mxu0 0
        %2245 = vmatprep.subr.bf16.mxu0 0
        %2246 = vmatpush1.bf16.msra.mxu0 0
        %2247 = vmatprep.subr.bf16.mxu0 0
        %2248 = vmatpush1.bf16.msra.mxu0 0
        %2249 = vmatprep.subr.bf16.mxu0 0
        %2250 = vmatpush1.bf16.msra.mxu0 0
        %2251 = vmatprep.subr.bf16.mxu0 0
        %2252 = vmatpush1.bf16.msra.mxu0 0
        %2253 = vmatprep.subr.bf16.mxu0 0
        %2254 = vmatpush1.bf16.msra.mxu0 0
        %2255 = vmatprep.subr.bf16.mxu0 0
        %2256 = vmatpush1.bf16.msra.mxu0 0
        %2257 = vmatprep.subr.bf16.mxu0 0
        %2258 = vmatpush1.bf16.msra.mxu0 0
        %2259 = vmatprep.mubr.bf16.mxu0 0
        %2260 = vmatmul.mubr.bf16.gmra.mrb[0].mxu0 %v2222
        %v2261 = vpop.f32.mrb[0].mxu0
        %v2262 = vadd.f32 0.0, %v2261
        %v2263 = vpop.f32.mrb[0].mxu0
        %v2264 = vpop.f32.mrb[0].mxu0
        %v2265 = vadd.f32 0.0, %v2264
        %v2266 = vpop.f32.mrb[0].mxu0
        %2267 = vdwg.mxu0
        %v2268 = vadd.f32 %v2194, %v2262
        %v2269 = vadd.f32 %v2195, %v2265
        %v2270 = vld [vmem:[%s1065] sm:$0xf]
        %v2271 = vld [vmem:[%s1065 + $0x4] sm:$0xf]
        %v2272 = vld [vmem:[%s1065 + $0x8] sm:$0x1]
        %s2273 = scalar_lea.vmem %s14, 34
        %v2274 = vld [vmem:[%s2273] sm:$0x3]
        %v2278 = vunpack.c.l.b16 %v2270
        %v2279 = vunpack.c.l.b16 %v2271
        %v2280 = vunpack.c.l.b16 %v2272
        %v2281 = vpack.c.b16 %v2279, %v2278
        %v2282 = vpack.c.b16 %v2280, %v2280
        %v2284 = vshrl.u32 %v2281, 16
        %v2286 = vshll.u32 %v2281, 16
        %v2288 = vrot.slane %v2286, 1
        %v2289 = vor.u32 %v2284, %v2288
        %v2291 = vshll.u32 %v2282, 16
        %v2293 = vrot.slane %v2291, 1
        %v2294 = vsel %vm1302, %v2289, %v2293
        %v2296 = vsel %vm1185, %v2294, 0
        %v2299 = vand.u32 %v2274, %v1192
        %2301 = vmatprep.subr.bf16.mxu0 0
        %2302 = vmatpush1.bf16.msra.mxu0 %v2299
        %2303 = vmatprep.subr.bf16.mxu0 0
        %2304 = vmatpush1.bf16.msra.mxu0 0
        %2305 = vmatprep.subr.bf16.mxu0 0
        %2306 = vmatpush1.bf16.msra.mxu0 0
        %2307 = vmatprep.subr.bf16.mxu0 0
        %2308 = vmatpush1.bf16.msra.mxu0 0
        %2309 = vmatprep.subr.bf16.mxu0 0
        %2310 = vmatpush1.bf16.msra.mxu0 0
        %2311 = vmatprep.subr.bf16.mxu0 0
        %2312 = vmatpush1.bf16.msra.mxu0 0
        %2313 = vmatprep.subr.bf16.mxu0 0
        %2314 = vmatpush1.bf16.msra.mxu0 0
        %2315 = vmatprep.subr.bf16.mxu0 0
        %2316 = vmatpush1.bf16.msra.mxu0 0
        %2317 = vmatprep.subr.bf16.mxu0 0
        %2318 = vmatpush1.bf16.msra.mxu0 0
        %2319 = vmatprep.subr.bf16.mxu0 0
        %2320 = vmatpush1.bf16.msra.mxu0 0
        %2321 = vmatprep.subr.bf16.mxu0 0
        %2322 = vmatpush1.bf16.msra.mxu0 0
        %2323 = vmatprep.subr.bf16.mxu0 0
        %2324 = vmatpush1.bf16.msra.mxu0 0
        %2325 = vmatprep.subr.bf16.mxu0 0
        %2326 = vmatpush1.bf16.msra.mxu0 0
        %2327 = vmatprep.subr.bf16.mxu0 0
        %2328 = vmatpush1.bf16.msra.mxu0 0
        %2329 = vmatprep.subr.bf16.mxu0 0
        %2330 = vmatpush1.bf16.msra.mxu0 0
        %2331 = vmatprep.subr.bf16.mxu0 0
        %2332 = vmatpush1.bf16.msra.mxu0 0
        %2333 = vmatprep.mubr.bf16.mxu0 0
        %2334 = vmatmul.mubr.bf16.gmra.mrb[0].mxu0 %v2296
        %v2335 = vpop.f32.mrb[0].mxu0
        %v2336 = vadd.f32 0.0, %v2335
        %v2337 = vpop.f32.mrb[0].mxu0
        %v2338 = vpop.f32.mrb[0].mxu0
        %v2339 = vadd.f32 0.0, %v2338
        %v2340 = vpop.f32.mrb[0].mxu0
        %2341 = vdwg.mxu0
        %v2342 = vadd.f32 %v2268, %v2336
        %v2343 = vadd.f32 %v2269, %v2339
        %v2344 = vld [vmem:[%s1052] sm:$0xe]
        %s2345 = scalar_lea.vmem %s14, 36
        %v2346 = vld [vmem:[%s2345] sm:$0x3]
        %v2348 = vunpack.c.l.b16 %v2344
        %v2349 = vpack.c.b16 %v2205, %v2348
        %v2350 = vrot.slane %v2349, 1
        %v2351 = vrot.slane %v2208, 1
        %v2352 = vsel %vm1444, %v2350, %v2351
        %v2354 = vsel %vm1185, %v2352, 0
        %v2357 = vand.u32 %v2346, %v1192
        %2359 = vmatprep.subr.bf16.mxu0 0
        %2360 = vmatpush1.bf16.msra.mxu0 %v2357
        %2361 = vmatprep.subr.bf16.mxu0 0
        %2362 = vmatpush1.bf16.msra.mxu0 0
        %2363 = vmatprep.subr.bf16.mxu0 0
        %2364 = vmatpush1.bf16.msra.mxu0 0
        %2365 = vmatprep.subr.bf16.mxu0 0
        %2366 = vmatpush1.bf16.msra.mxu0 0
        %2367 = vmatprep.subr.bf16.mxu0 0
        %2368 = vmatpush1.bf16.msra.mxu0 0
        %2369 = vmatprep.subr.bf16.mxu0 0
        %2370 = vmatpush1.bf16.msra.mxu0 0
        %2371 = vmatprep.subr.bf16.mxu0 0
        %2372 = vmatpush1.bf16.msra.mxu0 0
        %2373 = vmatprep.subr.bf16.mxu0 0
        %2374 = vmatpush1.bf16.msra.mxu0 0
        %2375 = vmatprep.subr.bf16.mxu0 0
        %2376 = vmatpush1.bf16.msra.mxu0 0
        %2377 = vmatprep.subr.bf16.mxu0 0
        %2378 = vmatpush1.bf16.msra.mxu0 0
        %2379 = vmatprep.subr.bf16.mxu0 0
        %2380 = vmatpush1.bf16.msra.mxu0 0
        %2381 = vmatprep.subr.bf16.mxu0 0
        %2382 = vmatpush1.bf16.msra.mxu0 0
        %2383 = vmatprep.subr.bf16.mxu0 0
        %2384 = vmatpush1.bf16.msra.mxu0 0
        %2385 = vmatprep.subr.bf16.mxu0 0
        %2386 = vmatpush1.bf16.msra.mxu0 0
        %2387 = vmatprep.subr.bf16.mxu0 0
        %2388 = vmatpush1.bf16.msra.mxu0 0
        %2389 = vmatprep.subr.bf16.mxu0 0
        %2390 = vmatpush1.bf16.msra.mxu0 0
        %2391 = vmatprep.mubr.bf16.mxu0 0
        %2392 = vmatmul.mubr.bf16.gmra.mrb[0].mxu0 %v2354
        %v2393 = vpop.f32.mrb[0].mxu0
        %v2394 = vadd.f32 0.0, %v2393
        %v2395 = vpop.f32.mrb[0].mxu0
        %v2396 = vpop.f32.mrb[0].mxu0
        %v2397 = vadd.f32 0.0, %v2396
        %v2398 = vpop.f32.mrb[0].mxu0
        %2399 = vdwg.mxu0
        %v2400 = vadd.f32 %v2342, %v2394
        %v2401 = vadd.f32 %v2343, %v2397
        %v2402 = vld [vmem:[%s1065] sm:$0xe]
        %s2403 = scalar_lea.vmem %s14, 38
        %v2404 = vld [vmem:[%s2403] sm:$0x3]
        %v2406 = vunpack.c.l.b16 %v2402
        %v2407 = vpack.c.b16 %v2279, %v2406
        %v2408 = vrot.slane %v2407, 1
        %v2409 = vrot.slane %v2282, 1
        %v2410 = vsel %vm1444, %v2408, %v2409
        %v2412 = vsel %vm1185, %v2410, 0
        %v2415 = vand.u32 %v2404, %v1192
        %2417 = vmatprep.subr.bf16.mxu0 0
        %2418 = vmatpush1.bf16.msra.mxu0 %v2415
        %2419 = vmatprep.subr.bf16.mxu0 0
        %2420 = vmatpush1.bf16.msra.mxu0 0
        %2421 = vmatprep.subr.bf16.mxu0 0
        %2422 = vmatpush1.bf16.msra.mxu0 0
        %2423 = vmatprep.subr.bf16.mxu0 0
        %2424 = vmatpush1.bf16.msra.mxu0 0
        %2425 = vmatprep.subr.bf16.mxu0 0
        %2426 = vmatpush1.bf16.msra.mxu0 0
        %2427 = vmatprep.subr.bf16.mxu0 0
        %2428 = vmatpush1.bf16.msra.mxu0 0
        %2429 = vmatprep.subr.bf16.mxu0 0
        %2430 = vmatpush1.bf16.msra.mxu0 0
        %2431 = vmatprep.subr.bf16.mxu0 0
        %2432 = vmatpush1.bf16.msra.mxu0 0
        %2433 = vmatprep.subr.bf16.mxu0 0
        %2434 = vmatpush1.bf16.msra.mxu0 0
        %2435 = vmatprep.subr.bf16.mxu0 0
        %2436 = vmatpush1.bf16.msra.mxu0 0
        %2437 = vmatprep.subr.bf16.mxu0 0
        %2438 = vmatpush1.bf16.msra.mxu0 0
        %2439 = vmatprep.subr.bf16.mxu0 0
        %2440 = vmatpush1.bf16.msra.mxu0 0
        %2441 = vmatprep.subr.bf16.mxu0 0
        %2442 = vmatpush1.bf16.msra.mxu0 0
        %2443 = vmatprep.subr.bf16.mxu0 0
        %2444 = vmatpush1.bf16.msra.mxu0 0
        %2445 = vmatprep.subr.bf16.mxu0 0
        %2446 = vmatpush1.bf16.msra.mxu0 0
        %2447 = vmatprep.subr.bf16.mxu0 0
        %2448 = vmatpush1.bf16.msra.mxu0 0
        %2449 = vmatprep.mubr.bf16.mxu0 0
        %2450 = vmatmul.mubr.bf16.gmra.mrb[0].mxu0 %v2412
        %v2451 = vpop.f32.mrb[0].mxu0
        %v2452 = vadd.f32 0.0, %v2451
        %v2453 = vpop.f32.mrb[0].mxu0
        %v2454 = vpop.f32.mrb[0].mxu0
        %v2455 = vadd.f32 0.0, %v2454
        %v2456 = vpop.f32.mrb[0].mxu0
        %2457 = vdwg.mxu0
        %v2458 = vadd.f32 %v2400, %v2452
        %v2459 = vadd.f32 %v2401, %v2455
        %v2460 = vld [vmem:[%s1052 + $0x8] sm:$0x3]
        %s2461 = scalar_lea.vmem %s14, 40
        %v2462 = vld [vmem:[%s2461] sm:$0x3]
        %v2464 = vunpack.c.l.b16 %v2460
        %v2465 = vpack.c.b16 %v2464, %v2464
        %v2467 = vshrl.u32 %v2349, 16
        %v2469 = vrot.slane %v2467, 1
        %v2470 = vshll.u32 %v2349, 16
        %v2472 = vrot.slane %v2470, 2
        %v2473 = vor.u32 %v2469, %v2472
        %v2475 = vshrl.u32 %v2465, 16
        %v2477 = vrot.slane %v2475, 1
        %v2478 = vshll.u32 %v2465, 16
        %v2480 = vrot.slane %v2478, 2
        %v2481 = vor.u32 %v2477, %v2480
        %v2482 = vsel %vm1561, %v2473, %v2481
        %v2484 = vsel %vm1185, %v2482, 0
        %v2487 = vand.u32 %v2462, %v1192
        %2489 = vmatprep.subr.bf16.mxu0 0
        %2490 = vmatpush1.bf16.msra.mxu0 %v2487
        %2491 = vmatprep.subr.bf16.mxu0 0
        %2492 = vmatpush1.bf16.msra.mxu0 0
        %2493 = vmatprep.subr.bf16.mxu0 0
        %2494 = vmatpush1.bf16.msra.mxu0 0
        %2495 = vmatprep.subr.bf16.mxu0 0
        %2496 = vmatpush1.bf16.msra.mxu0 0
        %2497 = vmatprep.subr.bf16.mxu0 0
        %2498 = vmatpush1.bf16.msra.mxu0 0
        %2499 = vmatprep.subr.bf16.mxu0 0
        %2500 = vmatpush1.bf16.msra.mxu0 0
        %2501 = vmatprep.subr.bf16.mxu0 0
        %2502 = vmatpush1.bf16.msra.mxu0 0
        %2503 = vmatprep.subr.bf16.mxu0 0
        %2504 = vmatpush1.bf16.msra.mxu0 0
        %2505 = vmatprep.subr.bf16.mxu0 0
        %2506 = vmatpush1.bf16.msra.mxu0 0
        %2507 = vmatprep.subr.bf16.mxu0 0
        %2508 = vmatpush1.bf16.msra.mxu0 0
        %2509 = vmatprep.subr.bf16.mxu0 0
        %2510 = vmatpush1.bf16.msra.mxu0 0
        %2511 = vmatprep.subr.bf16.mxu0 0
        %2512 = vmatpush1.bf16.msra.mxu0 0
        %2513 = vmatprep.subr.bf16.mxu0 0
        %2514 = vmatpush1.bf16.msra.mxu0 0
        %2515 = vmatprep.subr.bf16.mxu0 0
        %2516 = vmatpush1.bf16.msra.mxu0 0
        %2517 = vmatprep.subr.bf16.mxu0 0
        %2518 = vmatpush1.bf16.msra.mxu0 0
        %2519 = vmatprep.subr.bf16.mxu0 0
        %2520 = vmatpush1.bf16.msra.mxu0 0
        %2521 = vmatprep.mubr.bf16.mxu0 0
        %2522 = vmatmul.mubr.bf16.gmra.mrb[0].mxu0 %v2484
        %v2523 = vpop.f32.mrb[0].mxu0
        %v2524 = vadd.f32 0.0, %v2523
        %v2525 = vpop.f32.mrb[0].mxu0
        %v2526 = vpop.f32.mrb[0].mxu0
        %v2527 = vadd.f32 0.0, %v2526
        %v2528 = vpop.f32.mrb[0].mxu0
        %2529 = vdwg.mxu0
        %v2530 = vadd.f32 %v2458, %v2524
        %v2531 = vadd.f32 %v2459, %v2527
        %v2532 = vld [vmem:[%s1078] sm:$0xf]
        %v2533 = vld [vmem:[%s1078 + $0x4] sm:$0xf]
        %s2534 = scalar_lea.vmem %s14, 42
        %v2535 = vld [vmem:[%s2534] sm:$0x3]
        %v2538 = vunpack.c.l.b16 %v2532
        %v2539 = vunpack.c.l.b16 %v2533
        %v2540 = vpack.c.b16 %v2539, %v2538
        %v2542 = vsel %vm1185, %v2540, 0
        %v2545 = vand.u32 %v2535, %v1192
        %2547 = vmatprep.subr.bf16.mxu0 0
        %2548 = vmatpush1.bf16.msra.mxu0 %v2545
        %2549 = vmatprep.subr.bf16.mxu0 0
        %2550 = vmatpush1.bf16.msra.mxu0 0
        %2551 = vmatprep.subr.bf16.mxu0 0
        %2552 = vmatpush1.bf16.msra.mxu0 0
        %2553 = vmatprep.subr.bf16.mxu0 0
        %2554 = vmatpush1.bf16.msra.mxu0 0
        %2555 = vmatprep.subr.bf16.mxu0 0
        %2556 = vmatpush1.bf16.msra.mxu0 0
        %2557 = vmatprep.subr.bf16.mxu0 0
        %2558 = vmatpush1.bf16.msra.mxu0 0
        %2559 = vmatprep.subr.bf16.mxu0 0
        %2560 = vmatpush1.bf16.msra.mxu0 0
        %2561 = vmatprep.subr.bf16.mxu0 0
        %2562 = vmatpush1.bf16.msra.mxu0 0
        %2563 = vmatprep.subr.bf16.mxu0 0
        %2564 = vmatpush1.bf16.msra.mxu0 0
        %2565 = vmatprep.subr.bf16.mxu0 0
        %2566 = vmatpush1.bf16.msra.mxu0 0
        %2567 = vmatprep.subr.bf16.mxu0 0
        %2568 = vmatpush1.bf16.msra.mxu0 0
        %2569 = vmatprep.subr.bf16.mxu0 0
        %2570 = vmatpush1.bf16.msra.mxu0 0
        %2571 = vmatprep.subr.bf16.mxu0 0
        %2572 = vmatpush1.bf16.msra.mxu0 0
        %2573 = vmatprep.subr.bf16.mxu0 0
        %2574 = vmatpush1.bf16.msra.mxu0 0
        %2575 = vmatprep.subr.bf16.mxu0 0
        %2576 = vmatpush1.bf16.msra.mxu0 0
        %2577 = vmatprep.subr.bf16.mxu0 0
        %2578 = vmatpush1.bf16.msra.mxu0 0
        %2579 = vmatprep.mubr.bf16.mxu0 0
        %2580 = vmatmul.mubr.bf16.gmra.mrb[0].mxu0 %v2542
        %v2581 = vpop.f32.mrb[0].mxu0
        %v2582 = vadd.f32 0.0, %v2581
        %v2583 = vpop.f32.mrb[0].mxu0
        %v2584 = vpop.f32.mrb[0].mxu0
        %v2585 = vadd.f32 0.0, %v2584
        %v2586 = vpop.f32.mrb[0].mxu0
        %2587 = vdwg.mxu0
        %v2588 = vadd.f32 %v2530, %v2582
        %v2589 = vadd.f32 %v2531, %v2585
        %v2590 = vld [vmem:[%s1091] sm:$0xf]
        %v2591 = vld [vmem:[%s1091 + $0x4] sm:$0xf]
        %s2592 = scalar_lea.vmem %s14, 44
        %v2593 = vld [vmem:[%s2592] sm:$0x3]
        %v2596 = vunpack.c.l.b16 %v2590
        %v2597 = vunpack.c.l.b16 %v2591
        %v2598 = vpack.c.b16 %v2597, %v2596
        %v2600 = vsel %vm1185, %v2598, 0
        %v2603 = vand.u32 %v2593, %v1192
        %2605 = vmatprep.subr.bf16.mxu0 0
        %2606 = vmatpush1.bf16.msra.mxu0 %v2603
        %2607 = vmatprep.subr.bf16.mxu0 0
        %2608 = vmatpush1.bf16.msra.mxu0 0
        %2609 = vmatprep.subr.bf16.mxu0 0
        %2610 = vmatpush1.bf16.msra.mxu0 0
        %2611 = vmatprep.subr.bf16.mxu0 0
        %2612 = vmatpush1.bf16.msra.mxu0 0
        %2613 = vmatprep.subr.bf16.mxu0 0
        %2614 = vmatpush1.bf16.msra.mxu0 0
        %2615 = vmatprep.subr.bf16.mxu0 0
        %2616 = vmatpush1.bf16.msra.mxu0 0
        %2617 = vmatprep.subr.bf16.mxu0 0
        %2618 = vmatpush1.bf16.msra.mxu0 0
        %2619 = vmatprep.subr.bf16.mxu0 0
        %2620 = vmatpush1.bf16.msra.mxu0 0
        %2621 = vmatprep.subr.bf16.mxu0 0
        %2622 = vmatpush1.bf16.msra.mxu0 0
        %2623 = vmatprep.subr.bf16.mxu0 0
        %2624 = vmatpush1.bf16.msra.mxu0 0
        %2625 = vmatprep.subr.bf16.mxu0 0
        %2626 = vmatpush1.bf16.msra.mxu0 0
        %2627 = vmatprep.subr.bf16.mxu0 0
        %2628 = vmatpush1.bf16.msra.mxu0 0
        %2629 = vmatprep.subr.bf16.mxu0 0
        %2630 = vmatpush1.bf16.msra.mxu0 0
        %2631 = vmatprep.subr.bf16.mxu0 0
        %2632 = vmatpush1.bf16.msra.mxu0 0
        %2633 = vmatprep.subr.bf16.mxu0 0
        %2634 = vmatpush1.bf16.msra.mxu0 0
        %2635 = vmatprep.subr.bf16.mxu0 0
        %2636 = vmatpush1.bf16.msra.mxu0 0
        %2637 = vmatprep.mubr.bf16.mxu0 0
        %2638 = vmatmul.mubr.bf16.gmra.mrb[0].mxu0 %v2600
        %v2639 = vpop.f32.mrb[0].mxu0
        %v2640 = vadd.f32 0.0, %v2639
        %v2641 = vpop.f32.mrb[0].mxu0
        %v2642 = vpop.f32.mrb[0].mxu0
        %v2643 = vadd.f32 0.0, %v2642
        %v2644 = vpop.f32.mrb[0].mxu0
        %2645 = vdwg.mxu0
        %v2646 = vadd.f32 %v2588, %v2640
        %v2647 = vadd.f32 %v2589, %v2643
        %v2648 = vld [vmem:[%s1078] sm:$0xf]
        %v2649 = vld [vmem:[%s1078 + $0x4] sm:$0xf]
        %v2650 = vld [vmem:[%s1078 + $0x8] sm:$0x1]
        %s2651 = scalar_lea.vmem %s14, 46
        %v2652 = vld [vmem:[%s2651] sm:$0x3]
        %v2656 = vunpack.c.l.b16 %v2648
        %v2657 = vunpack.c.l.b16 %v2649
        %v2658 = vunpack.c.l.b16 %v2650
        %v2659 = vpack.c.b16 %v2657, %v2656
        %v2660 = vpack.c.b16 %v2658, %v2658
        %v2662 = vshrl.u32 %v2659, 16
        %v2664 = vshll.u32 %v2659, 16
        %v2666 = vrot.slane %v2664, 1
        %v2667 = vor.u32 %v2662, %v2666
        %v2669 = vshll.u32 %v2660, 16
        %v2671 = vrot.slane %v2669, 1
        %v2672 = vsel %vm1302, %v2667, %v2671
        %v2674 = vsel %vm1185, %v2672, 0
        %v2677 = vand.u32 %v2652, %v1192
        %2679 = vmatprep.subr.bf16.mxu0 0
        %2680 = vmatpush1.bf16.msra.mxu0 %v2677
        %2681 = vmatprep.subr.bf16.mxu0 0
        %2682 = vmatpush1.bf16.msra.mxu0 0
        %2683 = vmatprep.subr.bf16.mxu0 0
        %2684 = vmatpush1.bf16.msra.mxu0 0
        %2685 = vmatprep.subr.bf16.mxu0 0
        %2686 = vmatpush1.bf16.msra.mxu0 0
        %2687 = vmatprep.subr.bf16.mxu0 0
        %2688 = vmatpush1.bf16.msra.mxu0 0
        %2689 = vmatprep.subr.bf16.mxu0 0
        %2690 = vmatpush1.bf16.msra.mxu0 0
        %2691 = vmatprep.subr.bf16.mxu0 0
        %2692 = vmatpush1.bf16.msra.mxu0 0
        %2693 = vmatprep.subr.bf16.mxu0 0
        %2694 = vmatpush1.bf16.msra.mxu0 0
        %2695 = vmatprep.subr.bf16.mxu0 0
        %2696 = vmatpush1.bf16.msra.mxu0 0
        %2697 = vmatprep.subr.bf16.mxu0 0
        %2698 = vmatpush1.bf16.msra.mxu0 0
        %2699 = vmatprep.subr.bf16.mxu0 0
        %2700 = vmatpush1.bf16.msra.mxu0 0
        %2701 = vmatprep.subr.bf16.mxu0 0
        %2702 = vmatpush1.bf16.msra.mxu0 0
        %2703 = vmatprep.subr.bf16.mxu0 0
        %2704 = vmatpush1.bf16.msra.mxu0 0
        %2705 = vmatprep.subr.bf16.mxu0 0
        %2706 = vmatpush1.bf16.msra.mxu0 0
        %2707 = vmatprep.subr.bf16.mxu0 0
        %2708 = vmatpush1.bf16.msra.mxu0 0
        %2709 = vmatprep.subr.bf16.mxu0 0
        %2710 = vmatpush1.bf16.msra.mxu0 0
        %2711 = vmatprep.mubr.bf16.mxu0 0
        %2712 = vmatmul.mubr.bf16.gmra.mrb[0].mxu0 %v2674
        %v2713 = vpop.f32.mrb[0].mxu0
        %v2714 = vadd.f32 0.0, %v2713
        %v2715 = vpop.f32.mrb[0].mxu0
        %v2716 = vpop.f32.mrb[0].mxu0
        %v2717 = vadd.f32 0.0, %v2716
        %v2718 = vpop.f32.mrb[0].mxu0
        %2719 = vdwg.mxu0
        %v2720 = vadd.f32 %v2646, %v2714
        %v2721 = vadd.f32 %v2647, %v2717
        %v2722 = vld [vmem:[%s1091] sm:$0xf]
        %v2723 = vld [vmem:[%s1091 + $0x4] sm:$0xf]
        %v2724 = vld [vmem:[%s1091 + $0x8] sm:$0x1]
        %s2725 = scalar_lea.vmem %s14, 48
        %v2726 = vld [vmem:[%s2725] sm:$0x3]
        %v2730 = vunpack.c.l.b16 %v2722
        %v2731 = vunpack.c.l.b16 %v2723
        %v2732 = vunpack.c.l.b16 %v2724
        %v2733 = vpack.c.b16 %v2731, %v2730
        %v2734 = vpack.c.b16 %v2732, %v2732
        %v2736 = vshrl.u32 %v2733, 16
        %v2738 = vshll.u32 %v2733, 16
        %v2740 = vrot.slane %v2738, 1
        %v2741 = vor.u32 %v2736, %v2740
        %v2743 = vshll.u32 %v2734, 16
        %v2745 = vrot.slane %v2743, 1
        %v2746 = vsel %vm1302, %v2741, %v2745
        %v2748 = vsel %vm1185, %v2746, 0
        %v2751 = vand.u32 %v2726, %v1192
        %2753 = vmatprep.subr.bf16.mxu0 0
        %2754 = vmatpush1.bf16.msra.mxu0 %v2751
        %2755 = vmatprep.subr.bf16.mxu0 0
        %2756 = vmatpush1.bf16.msra.mxu0 0
        %2757 = vmatprep.subr.bf16.mxu0 0
        %2758 = vmatpush1.bf16.msra.mxu0 0
        %2759 = vmatprep.subr.bf16.mxu0 0
        %2760 = vmatpush1.bf16.msra.mxu0 0
        %2761 = vmatprep.subr.bf16.mxu0 0
        %2762 = vmatpush1.bf16.msra.mxu0 0
        %2763 = vmatprep.subr.bf16.mxu0 0
        %2764 = vmatpush1.bf16.msra.mxu0 0
        %2765 = vmatprep.subr.bf16.mxu0 0
        %2766 = vmatpush1.bf16.msra.mxu0 0
        %2767 = vmatprep.subr.bf16.mxu0 0
        %2768 = vmatpush1.bf16.msra.mxu0 0
        %2769 = vmatprep.subr.bf16.mxu0 0
        %2770 = vmatpush1.bf16.msra.mxu0 0
        %2771 = vmatprep.subr.bf16.mxu0 0
        %2772 = vmatpush1.bf16.msra.mxu0 0
        %2773 = vmatprep.subr.bf16.mxu0 0
        %2774 = vmatpush1.bf16.msra.mxu0 0
        %2775 = vmatprep.subr.bf16.mxu0 0
        %2776 = vmatpush1.bf16.msra.mxu0 0
        %2777 = vmatprep.subr.bf16.mxu0 0
        %2778 = vmatpush1.bf16.msra.mxu0 0
        %2779 = vmatprep.subr.bf16.mxu0 0
        %2780 = vmatpush1.bf16.msra.mxu0 0
        %2781 = vmatprep.subr.bf16.mxu0 0
        %2782 = vmatpush1.bf16.msra.mxu0 0
        %2783 = vmatprep.subr.bf16.mxu0 0
        %2784 = vmatpush1.bf16.msra.mxu0 0
        %2785 = vmatprep.mubr.bf16.mxu0 0
        %2786 = vmatmul.mubr.bf16.gmra.mrb[0].mxu0 %v2748
        %v2787 = vpop.f32.mrb[0].mxu0
        %v2788 = vadd.f32 0.0, %v2787
        %v2789 = vpop.f32.mrb[0].mxu0
        %v2790 = vpop.f32.mrb[0].mxu0
        %v2791 = vadd.f32 0.0, %v2790
        %v2792 = vpop.f32.mrb[0].mxu0
        %2793 = vdwg.mxu0
        %v2794 = vadd.f32 %v2720, %v2788
        %v2795 = vadd.f32 %v2721, %v2791
        %v2796 = vld [vmem:[%s1078] sm:$0xe]
        %s2797 = scalar_lea.vmem %s14, 50
        %v2798 = vld [vmem:[%s2797] sm:$0x3]
        %v2800 = vunpack.c.l.b16 %v2796
        %v2801 = vpack.c.b16 %v2657, %v2800
        %v2802 = vrot.slane %v2801, 1
        %v2803 = vrot.slane %v2660, 1
        %v2804 = vsel %vm1444, %v2802, %v2803
        %v2806 = vsel %vm1185, %v2804, 0
        %v2809 = vand.u32 %v2798, %v1192
        %2811 = vmatprep.subr.bf16.mxu0 0
        %2812 = vmatpush1.bf16.msra.mxu0 %v2809
        %2813 = vmatprep.subr.bf16.mxu0 0
        %2814 = vmatpush1.bf16.msra.mxu0 0
        %2815 = vmatprep.subr.bf16.mxu0 0
        %2816 = vmatpush1.bf16.msra.mxu0 0
        %2817 = vmatprep.subr.bf16.mxu0 0
        %2818 = vmatpush1.bf16.msra.mxu0 0
        %2819 = vmatprep.subr.bf16.mxu0 0
        %2820 = vmatpush1.bf16.msra.mxu0 0
        %2821 = vmatprep.subr.bf16.mxu0 0
        %2822 = vmatpush1.bf16.msra.mxu0 0
        %2823 = vmatprep.subr.bf16.mxu0 0
        %2824 = vmatpush1.bf16.msra.mxu0 0
        %2825 = vmatprep.subr.bf16.mxu0 0
        %2826 = vmatpush1.bf16.msra.mxu0 0
        %2827 = vmatprep.subr.bf16.mxu0 0
        %2828 = vmatpush1.bf16.msra.mxu0 0
        %2829 = vmatprep.subr.bf16.mxu0 0
        %2830 = vmatpush1.bf16.msra.mxu0 0
        %2831 = vmatprep.subr.bf16.mxu0 0
        %2832 = vmatpush1.bf16.msra.mxu0 0
        %2833 = vmatprep.subr.bf16.mxu0 0
        %2834 = vmatpush1.bf16.msra.mxu0 0
        %2835 = vmatprep.subr.bf16.mxu0 0
        %2836 = vmatpush1.bf16.msra.mxu0 0
        %2837 = vmatprep.subr.bf16.mxu0 0
        %2838 = vmatpush1.bf16.msra.mxu0 0
        %2839 = vmatprep.subr.bf16.mxu0 0
        %2840 = vmatpush1.bf16.msra.mxu0 0
        %2841 = vmatprep.subr.bf16.mxu0 0
        %2842 = vmatpush1.bf16.msra.mxu0 0
        %2843 = vmatprep.mubr.bf16.mxu0 0
        %2844 = vmatmul.mubr.bf16.gmra.mrb[0].mxu0 %v2806
        %v2845 = vpop.f32.mrb[0].mxu0
        %v2846 = vadd.f32 0.0, %v2845
        %v2847 = vpop.f32.mrb[0].mxu0
        %v2848 = vpop.f32.mrb[0].mxu0
        %v2849 = vadd.f32 0.0, %v2848
        %v2850 = vpop.f32.mrb[0].mxu0
        %2851 = vdwg.mxu0
        %v2852 = vadd.f32 %v2794, %v2846
        %v2853 = vadd.f32 %v2795, %v2849
        %v2854 = vld [vmem:[%s1091] sm:$0xe]
        %s2855 = scalar_lea.vmem %s14, 52
        %v2856 = vld [vmem:[%s2855] sm:$0x3]
        %v2858 = vunpack.c.l.b16 %v2854
        %v2859 = vpack.c.b16 %v2731, %v2858
        %v2860 = vrot.slane %v2859, 1
        %v2861 = vrot.slane %v2734, 1
        %v2862 = vsel %vm1444, %v2860, %v2861
        %v2864 = vsel %vm1185, %v2862, 0
        %v2867 = vand.u32 %v2856, %v1192
        %2869 = vmatprep.subr.bf16.mxu0 0
        %2870 = vmatpush1.bf16.msra.mxu0 %v2867
        %2871 = vmatprep.subr.bf16.mxu0 0
        %2872 = vmatpush1.bf16.msra.mxu0 0
        %2873 = vmatprep.subr.bf16.mxu0 0
        %2874 = vmatpush1.bf16.msra.mxu0 0
        %2875 = vmatprep.subr.bf16.mxu0 0
        %2876 = vmatpush1.bf16.msra.mxu0 0
        %2877 = vmatprep.subr.bf16.mxu0 0
        %2878 = vmatpush1.bf16.msra.mxu0 0
        %2879 = vmatprep.subr.bf16.mxu0 0
        %2880 = vmatpush1.bf16.msra.mxu0 0
        %2881 = vmatprep.subr.bf16.mxu0 0
        %2882 = vmatpush1.bf16.msra.mxu0 0
        %2883 = vmatprep.subr.bf16.mxu0 0
        %2884 = vmatpush1.bf16.msra.mxu0 0
        %2885 = vmatprep.subr.bf16.mxu0 0
        %2886 = vmatpush1.bf16.msra.mxu0 0
        %2887 = vmatprep.subr.bf16.mxu0 0
        %2888 = vmatpush1.bf16.msra.mxu0 0
        %2889 = vmatprep.subr.bf16.mxu0 0
        %2890 = vmatpush1.bf16.msra.mxu0 0
        %2891 = vmatprep.subr.bf16.mxu0 0
        %2892 = vmatpush1.bf16.msra.mxu0 0
        %2893 = vmatprep.subr.bf16.mxu0 0
        %2894 = vmatpush1.bf16.msra.mxu0 0
        %2895 = vmatprep.subr.bf16.mxu0 0
        %2896 = vmatpush1.bf16.msra.mxu0 0
        %2897 = vmatprep.subr.bf16.mxu0 0
        %2898 = vmatpush1.bf16.msra.mxu0 0
        %2899 = vmatprep.subr.bf16.mxu0 0
        %2900 = vmatpush1.bf16.msra.mxu0 0
        %2901 = vmatprep.mubr.bf16.mxu0 0
        %2902 = vmatmul.mubr.bf16.gmra.mrb[0].mxu0 %v2864
        %v2903 = vpop.f32.mrb[0].mxu0
        %v2904 = vadd.f32 0.0, %v2903
        %v2905 = vpop.f32.mrb[0].mxu0
        %v2906 = vpop.f32.mrb[0].mxu0
        %v2907 = vadd.f32 0.0, %v2906
        %v2908 = vpop.f32.mrb[0].mxu0
        %2909 = vdwg.mxu0
        %v2910 = vadd.f32 %v2852, %v2904
        %v2911 = vadd.f32 %v2853, %v2907
        %v2912 = vld [vmem:[%s1078 + $0x8] sm:$0x3]
        %s2913 = scalar_lea.vmem %s14, 54
        %v2914 = vld [vmem:[%s2913] sm:$0x3]
        %v2916 = vunpack.c.l.b16 %v2912
        %v2917 = vpack.c.b16 %v2916, %v2916
        %v2919 = vshrl.u32 %v2801, 16
        %v2921 = vrot.slane %v2919, 1
        %v2922 = vshll.u32 %v2801, 16
        %v2924 = vrot.slane %v2922, 2
        %v2925 = vor.u32 %v2921, %v2924
        %v2927 = vshrl.u32 %v2917, 16
        %v2929 = vrot.slane %v2927, 1
        %v2930 = vshll.u32 %v2917, 16
        %v2932 = vrot.slane %v2930, 2
        %v2933 = vor.u32 %v2929, %v2932
        %v2934 = vsel %vm1561, %v2925, %v2933
        %v2936 = vsel %vm1185, %v2934, 0
        %v2939 = vand.u32 %v2914, %v1192
        %2941 = vmatprep.subr.bf16.mxu0 0
        %2942 = vmatpush1.bf16.msra.mxu0 %v2939
        %2943 = vmatprep.subr.bf16.mxu0 0
        %2944 = vmatpush1.bf16.msra.mxu0 0
        %2945 = vmatprep.subr.bf16.mxu0 0
        %2946 = vmatpush1.bf16.msra.mxu0 0
        %2947 = vmatprep.subr.bf16.mxu0 0
        %2948 = vmatpush1.bf16.msra.mxu0 0
        %2949 = vmatprep.subr.bf16.mxu0 0
        %2950 = vmatpush1.bf16.msra.mxu0 0
        %2951 = vmatprep.subr.bf16.mxu0 0
        %2952 = vmatpush1.bf16.msra.mxu0 0
        %2953 = vmatprep.subr.bf16.mxu0 0
        %2954 = vmatpush1.bf16.msra.mxu0 0
        %2955 = vmatprep.subr.bf16.mxu0 0
        %2956 = vmatpush1.bf16.msra.mxu0 0
        %2957 = vmatprep.subr.bf16.mxu0 0
        %2958 = vmatpush1.bf16.msra.mxu0 0
        %2959 = vmatprep.subr.bf16.mxu0 0
        %2960 = vmatpush1.bf16.msra.mxu0 0
        %2961 = vmatprep.subr.bf16.mxu0 0
        %2962 = vmatpush1.bf16.msra.mxu0 0
        %2963 = vmatprep.subr.bf16.mxu0 0
        %2964 = vmatpush1.bf16.msra.mxu0 0
        %2965 = vmatprep.subr.bf16.mxu0 0
        %2966 = vmatpush1.bf16.msra.mxu0 0
        %2967 = vmatprep.subr.bf16.mxu0 0
        %2968 = vmatpush1.bf16.msra.mxu0 0
        %2969 = vmatprep.subr.bf16.mxu0 0
        %2970 = vmatpush1.bf16.msra.mxu0 0
        %2971 = vmatprep.subr.bf16.mxu0 0
        %2972 = vmatpush1.bf16.msra.mxu0 0
        %2973 = vmatprep.mubr.bf16.mxu0 0
        %2974 = vmatmul.mubr.bf16.gmra.mrb[0].mxu0 %v2936
        %v2975 = vpop.f32.mrb[0].mxu0
        %v2976 = vadd.f32 0.0, %v2975
        %v2977 = vpop.f32.mrb[0].mxu0
        %v2978 = vpop.f32.mrb[0].mxu0
        %v2979 = vadd.f32 0.0, %v2978
        %v2980 = vpop.f32.mrb[0].mxu0
        %2981 = vdwg.mxu0
        %v2982 = vadd.f32 %v2910, %v2976
        %v2983 = vadd.f32 %v2911, %v2979
        %v2984 = vld [vmem:[%s1104] sm:$0xf]
        %v2985 = vld [vmem:[%s1104 + $0x4] sm:$0xf]
        %s2986 = scalar_lea.vmem %s14, 56
        %v2987 = vld [vmem:[%s2986] sm:$0x3]
        %v2990 = vunpack.c.l.b16 %v2984
        %v2991 = vunpack.c.l.b16 %v2985
        %v2992 = vpack.c.b16 %v2991, %v2990
        %v2994 = vsel %vm1185, %v2992, 0
        %v2997 = vand.u32 %v2987, %v1192
        %2999 = vmatprep.subr.bf16.mxu0 0
        %3000 = vmatpush1.bf16.msra.mxu0 %v2997
        %3001 = vmatprep.subr.bf16.mxu0 0
        %3002 = vmatpush1.bf16.msra.mxu0 0
        %3003 = vmatprep.subr.bf16.mxu0 0
        %3004 = vmatpush1.bf16.msra.mxu0 0
        %3005 = vmatprep.subr.bf16.mxu0 0
        %3006 = vmatpush1.bf16.msra.mxu0 0
        %3007 = vmatprep.subr.bf16.mxu0 0
        %3008 = vmatpush1.bf16.msra.mxu0 0
        %3009 = vmatprep.subr.bf16.mxu0 0
        %3010 = vmatpush1.bf16.msra.mxu0 0
        %3011 = vmatprep.subr.bf16.mxu0 0
        %3012 = vmatpush1.bf16.msra.mxu0 0
        %3013 = vmatprep.subr.bf16.mxu0 0
        %3014 = vmatpush1.bf16.msra.mxu0 0
        %3015 = vmatprep.subr.bf16.mxu0 0
        %3016 = vmatpush1.bf16.msra.mxu0 0
        %3017 = vmatprep.subr.bf16.mxu0 0
        %3018 = vmatpush1.bf16.msra.mxu0 0
        %3019 = vmatprep.subr.bf16.mxu0 0
        %3020 = vmatpush1.bf16.msra.mxu0 0
        %3021 = vmatprep.subr.bf16.mxu0 0
        %3022 = vmatpush1.bf16.msra.mxu0 0
        %3023 = vmatprep.subr.bf16.mxu0 0
        %3024 = vmatpush1.bf16.msra.mxu0 0
        %3025 = vmatprep.subr.bf16.mxu0 0
        %3026 = vmatpush1.bf16.msra.mxu0 0
        %3027 = vmatprep.subr.bf16.mxu0 0
        %3028 = vmatpush1.bf16.msra.mxu0 0
        %3029 = vmatprep.subr.bf16.mxu0 0
        %3030 = vmatpush1.bf16.msra.mxu0 0
        %3031 = vmatprep.mubr.bf16.mxu0 0
        %3032 = vmatmul.mubr.bf16.gmra.mrb[0].mxu0 %v2994
        %v3033 = vpop.f32.mrb[0].mxu0
        %v3034 = vadd.f32 0.0, %v3033
        %v3035 = vpop.f32.mrb[0].mxu0
        %v3036 = vpop.f32.mrb[0].mxu0
        %v3037 = vadd.f32 0.0, %v3036
        %v3038 = vpop.f32.mrb[0].mxu0
        %3039 = vdwg.mxu0
        %v3040 = vadd.f32 %v2982, %v3034
        %v3041 = vadd.f32 %v2983, %v3037
        %v3042 = vld [vmem:[%s1117] sm:$0xf]
        %v3043 = vld [vmem:[%s1117 + $0x4] sm:$0xf]
        %s3044 = scalar_lea.vmem %s14, 58
        %v3045 = vld [vmem:[%s3044] sm:$0x3]
        %v3048 = vunpack.c.l.b16 %v3042
        %v3049 = vunpack.c.l.b16 %v3043
        %v3050 = vpack.c.b16 %v3049, %v3048
        %v3052 = vsel %vm1185, %v3050, 0
        %v3055 = vand.u32 %v3045, %v1192
        %3057 = vmatprep.subr.bf16.mxu0 0
        %3058 = vmatpush1.bf16.msra.mxu0 %v3055
        %3059 = vmatprep.subr.bf16.mxu0 0
        %3060 = vmatpush1.bf16.msra.mxu0 0
        %3061 = vmatprep.subr.bf16.mxu0 0
        %3062 = vmatpush1.bf16.msra.mxu0 0
        %3063 = vmatprep.subr.bf16.mxu0 0
        %3064 = vmatpush1.bf16.msra.mxu0 0
        %3065 = vmatprep.subr.bf16.mxu0 0
        %3066 = vmatpush1.bf16.msra.mxu0 0
        %3067 = vmatprep.subr.bf16.mxu0 0
        %3068 = vmatpush1.bf16.msra.mxu0 0
        %3069 = vmatprep.subr.bf16.mxu0 0
        %3070 = vmatpush1.bf16.msra.mxu0 0
        %3071 = vmatprep.subr.bf16.mxu0 0
        %3072 = vmatpush1.bf16.msra.mxu0 0
        %3073 = vmatprep.subr.bf16.mxu0 0
        %3074 = vmatpush1.bf16.msra.mxu0 0
        %3075 = vmatprep.subr.bf16.mxu0 0
        %3076 = vmatpush1.bf16.msra.mxu0 0
        %3077 = vmatprep.subr.bf16.mxu0 0
        %3078 = vmatpush1.bf16.msra.mxu0 0
        %3079 = vmatprep.subr.bf16.mxu0 0
        %3080 = vmatpush1.bf16.msra.mxu0 0
        %3081 = vmatprep.subr.bf16.mxu0 0
        %3082 = vmatpush1.bf16.msra.mxu0 0
        %3083 = vmatprep.subr.bf16.mxu0 0
        %3084 = vmatpush1.bf16.msra.mxu0 0
        %3085 = vmatprep.subr.bf16.mxu0 0
        %3086 = vmatpush1.bf16.msra.mxu0 0
        %3087 = vmatprep.subr.bf16.mxu0 0
        %3088 = vmatpush1.bf16.msra.mxu0 0
        %3089 = vmatprep.mubr.bf16.mxu0 0
        %3090 = vmatmul.mubr.bf16.gmra.mrb[0].mxu0 %v3052
        %v3091 = vpop.f32.mrb[0].mxu0
        %v3092 = vadd.f32 0.0, %v3091
        %v3093 = vpop.f32.mrb[0].mxu0
        %v3094 = vpop.f32.mrb[0].mxu0
        %v3095 = vadd.f32 0.0, %v3094
        %v3096 = vpop.f32.mrb[0].mxu0
        %3097 = vdwg.mxu0
        %v3098 = vadd.f32 %v3040, %v3092
        %v3099 = vadd.f32 %v3041, %v3095
        %v3100 = vld [vmem:[%s1104] sm:$0xf]
        %v3101 = vld [vmem:[%s1104 + $0x4] sm:$0xf]
        %v3102 = vld [vmem:[%s1104 + $0x8] sm:$0x1]
        %s3103 = scalar_lea.vmem %s14, 60
        %v3104 = vld [vmem:[%s3103] sm:$0x3]
        %v3108 = vunpack.c.l.b16 %v3100
        %v3109 = vunpack.c.l.b16 %v3101
        %v3110 = vunpack.c.l.b16 %v3102
        %v3111 = vpack.c.b16 %v3109, %v3108
        %v3112 = vpack.c.b16 %v3110, %v3110
        %v3114 = vshrl.u32 %v3111, 16
        %v3116 = vshll.u32 %v3111, 16
        %v3118 = vrot.slane %v3116, 1
        %v3119 = vor.u32 %v3114, %v3118
        %v3121 = vshll.u32 %v3112, 16
        %v3123 = vrot.slane %v3121, 1
        %v3124 = vsel %vm1302, %v3119, %v3123
        %v3126 = vsel %vm1185, %v3124, 0
        %v3129 = vand.u32 %v3104, %v1192
        %3131 = vmatprep.subr.bf16.mxu0 0
        %3132 = vmatpush1.bf16.msra.mxu0 %v3129
        %3133 = vmatprep.subr.bf16.mxu0 0
        %3134 = vmatpush1.bf16.msra.mxu0 0
        %3135 = vmatprep.subr.bf16.mxu0 0
        %3136 = vmatpush1.bf16.msra.mxu0 0
        %3137 = vmatprep.subr.bf16.mxu0 0
        %3138 = vmatpush1.bf16.msra.mxu0 0
        %3139 = vmatprep.subr.bf16.mxu0 0
        %3140 = vmatpush1.bf16.msra.mxu0 0
        %3141 = vmatprep.subr.bf16.mxu0 0
        %3142 = vmatpush1.bf16.msra.mxu0 0
        %3143 = vmatprep.subr.bf16.mxu0 0
        %3144 = vmatpush1.bf16.msra.mxu0 0
        %3145 = vmatprep.subr.bf16.mxu0 0
        %3146 = vmatpush1.bf16.msra.mxu0 0
        %3147 = vmatprep.subr.bf16.mxu0 0
        %3148 = vmatpush1.bf16.msra.mxu0 0
        %3149 = vmatprep.subr.bf16.mxu0 0
        %3150 = vmatpush1.bf16.msra.mxu0 0
        %3151 = vmatprep.subr.bf16.mxu0 0
        %3152 = vmatpush1.bf16.msra.mxu0 0
        %3153 = vmatprep.subr.bf16.mxu0 0
        %3154 = vmatpush1.bf16.msra.mxu0 0
        %3155 = vmatprep.subr.bf16.mxu0 0
        %3156 = vmatpush1.bf16.msra.mxu0 0
        %3157 = vmatprep.subr.bf16.mxu0 0
        %3158 = vmatpush1.bf16.msra.mxu0 0
        %3159 = vmatprep.subr.bf16.mxu0 0
        %3160 = vmatpush1.bf16.msra.mxu0 0
        %3161 = vmatprep.subr.bf16.mxu0 0
        %3162 = vmatpush1.bf16.msra.mxu0 0
        %3163 = vmatprep.mubr.bf16.mxu0 0
        %3164 = vmatmul.mubr.bf16.gmra.mrb[0].mxu0 %v3126
        %v3165 = vpop.f32.mrb[0].mxu0
        %v3166 = vadd.f32 0.0, %v3165
        %v3167 = vpop.f32.mrb[0].mxu0
        %v3168 = vpop.f32.mrb[0].mxu0
        %v3169 = vadd.f32 0.0, %v3168
        %v3170 = vpop.f32.mrb[0].mxu0
        %3171 = vdwg.mxu0
        %v3172 = vadd.f32 %v3098, %v3166
        %v3173 = vadd.f32 %v3099, %v3169
        %v3174 = vld [vmem:[%s1117] sm:$0xf]
        %v3175 = vld [vmem:[%s1117 + $0x4] sm:$0xf]
        %v3176 = vld [vmem:[%s1117 + $0x8] sm:$0x1]
        %s3177 = scalar_lea.vmem %s14, 62
        %v3178 = vld [vmem:[%s3177] sm:$0x3]
        %v3182 = vunpack.c.l.b16 %v3174
        %v3183 = vunpack.c.l.b16 %v3175
        %v3184 = vunpack.c.l.b16 %v3176
        %v3185 = vpack.c.b16 %v3183, %v3182
        %v3186 = vpack.c.b16 %v3184, %v3184
        %v3188 = vshrl.u32 %v3185, 16
        %v3190 = vshll.u32 %v3185, 16
        %v3192 = vrot.slane %v3190, 1
        %v3193 = vor.u32 %v3188, %v3192
        %v3195 = vshll.u32 %v3186, 16
        %v3197 = vrot.slane %v3195, 1
        %v3198 = vsel %vm1302, %v3193, %v3197
        %v3200 = vsel %vm1185, %v3198, 0
        %v3203 = vand.u32 %v3178, %v1192
        %3205 = vmatprep.subr.bf16.mxu0 0
        %3206 = vmatpush1.bf16.msra.mxu0 %v3203
        %3207 = vmatprep.subr.bf16.mxu0 0
        %3208 = vmatpush1.bf16.msra.mxu0 0
        %3209 = vmatprep.subr.bf16.mxu0 0
        %3210 = vmatpush1.bf16.msra.mxu0 0
        %3211 = vmatprep.subr.bf16.mxu0 0
        %3212 = vmatpush1.bf16.msra.mxu0 0
        %3213 = vmatprep.subr.bf16.mxu0 0
        %3214 = vmatpush1.bf16.msra.mxu0 0
        %3215 = vmatprep.subr.bf16.mxu0 0
        %3216 = vmatpush1.bf16.msra.mxu0 0
        %3217 = vmatprep.subr.bf16.mxu0 0
        %3218 = vmatpush1.bf16.msra.mxu0 0
        %3219 = vmatprep.subr.bf16.mxu0 0
        %3220 = vmatpush1.bf16.msra.mxu0 0
        %3221 = vmatprep.subr.bf16.mxu0 0
        %3222 = vmatpush1.bf16.msra.mxu0 0
        %3223 = vmatprep.subr.bf16.mxu0 0
        %3224 = vmatpush1.bf16.msra.mxu0 0
        %3225 = vmatprep.subr.bf16.mxu0 0
        %3226 = vmatpush1.bf16.msra.mxu0 0
        %3227 = vmatprep.subr.bf16.mxu0 0
        %3228 = vmatpush1.bf16.msra.mxu0 0
        %3229 = vmatprep.subr.bf16.mxu0 0
        %3230 = vmatpush1.bf16.msra.mxu0 0
        %3231 = vmatprep.subr.bf16.mxu0 0
        %3232 = vmatpush1.bf16.msra.mxu0 0
        %3233 = vmatprep.subr.bf16.mxu0 0
        %3234 = vmatpush1.bf16.msra.mxu0 0
        %3235 = vmatprep.subr.bf16.mxu0 0
        %3236 = vmatpush1.bf16.msra.mxu0 0
        %3237 = vmatprep.mubr.bf16.mxu0 0
        %3238 = vmatmul.mubr.bf16.gmra.mrb[0].mxu0 %v3200
        %v3239 = vpop.f32.mrb[0].mxu0
        %v3240 = vadd.f32 0.0, %v3239
        %v3241 = vpop.f32.mrb[0].mxu0
        %v3242 = vpop.f32.mrb[0].mxu0
        %v3243 = vadd.f32 0.0, %v3242
        %v3244 = vpop.f32.mrb[0].mxu0
        %3245 = vdwg.mxu0
        %v3246 = vadd.f32 %v3172, %v3240
        %v3247 = vadd.f32 %v3173, %v3243
        %v3248 = vld [vmem:[%s1104] sm:$0xe]
        %s3249 = scalar_lea.vmem %s14, 64
        %v3250 = vld [vmem:[%s3249] sm:$0x3]
        %v3252 = vunpack.c.l.b16 %v3248
        %v3253 = vpack.c.b16 %v3109, %v3252
        %v3254 = vrot.slane %v3253, 1
        %v3255 = vrot.slane %v3112, 1
        %v3256 = vsel %vm1444, %v3254, %v3255
        %v3258 = vsel %vm1185, %v3256, 0
        %v3261 = vand.u32 %v3250, %v1192
        %3263 = vmatprep.subr.bf16.mxu0 0
        %3264 = vmatpush1.bf16.msra.mxu0 %v3261
        %3265 = vmatprep.subr.bf16.mxu0 0
        %3266 = vmatpush1.bf16.msra.mxu0 0
        %3267 = vmatprep.subr.bf16.mxu0 0
        %3268 = vmatpush1.bf16.msra.mxu0 0
        %3269 = vmatprep.subr.bf16.mxu0 0
        %3270 = vmatpush1.bf16.msra.mxu0 0
        %3271 = vmatprep.subr.bf16.mxu0 0
        %3272 = vmatpush1.bf16.msra.mxu0 0
        %3273 = vmatprep.subr.bf16.mxu0 0
        %3274 = vmatpush1.bf16.msra.mxu0 0
        %3275 = vmatprep.subr.bf16.mxu0 0
        %3276 = vmatpush1.bf16.msra.mxu0 0
        %3277 = vmatprep.subr.bf16.mxu0 0
        %3278 = vmatpush1.bf16.msra.mxu0 0
        %3279 = vmatprep.subr.bf16.mxu0 0
        %3280 = vmatpush1.bf16.msra.mxu0 0
        %3281 = vmatprep.subr.bf16.mxu0 0
        %3282 = vmatpush1.bf16.msra.mxu0 0
        %3283 = vmatprep.subr.bf16.mxu0 0
        %3284 = vmatpush1.bf16.msra.mxu0 0
        %3285 = vmatprep.subr.bf16.mxu0 0
        %3286 = vmatpush1.bf16.msra.mxu0 0
        %3287 = vmatprep.subr.bf16.mxu0 0
        %3288 = vmatpush1.bf16.msra.mxu0 0
        %3289 = vmatprep.subr.bf16.mxu0 0
        %3290 = vmatpush1.bf16.msra.mxu0 0
        %3291 = vmatprep.subr.bf16.mxu0 0
        %3292 = vmatpush1.bf16.msra.mxu0 0
        %3293 = vmatprep.subr.bf16.mxu0 0
        %3294 = vmatpush1.bf16.msra.mxu0 0
        %3295 = vmatprep.mubr.bf16.mxu0 0
        %3296 = vmatmul.mubr.bf16.gmra.mrb[0].mxu0 %v3258
        %v3297 = vpop.f32.mrb[0].mxu0
        %v3298 = vadd.f32 0.0, %v3297
        %v3299 = vpop.f32.mrb[0].mxu0
        %v3300 = vpop.f32.mrb[0].mxu0
        %v3301 = vadd.f32 0.0, %v3300
        %v3302 = vpop.f32.mrb[0].mxu0
        %3303 = vdwg.mxu0
        %v3304 = vadd.f32 %v3246, %v3298
        %v3305 = vadd.f32 %v3247, %v3301
        %v3306 = vld [vmem:[%s1117] sm:$0xe]
        %s3307 = scalar_lea.vmem %s14, 66
        %v3308 = vld [vmem:[%s3307] sm:$0x3]
        %v3310 = vunpack.c.l.b16 %v3306
        %v3311 = vpack.c.b16 %v3183, %v3310
        %v3312 = vrot.slane %v3311, 1
        %v3313 = vrot.slane %v3186, 1
        %v3314 = vsel %vm1444, %v3312, %v3313
        %v3316 = vsel %vm1185, %v3314, 0
        %v3319 = vand.u32 %v3308, %v1192
        %3321 = vmatprep.subr.bf16.mxu0 0
        %3322 = vmatpush1.bf16.msra.mxu0 %v3319
        %3323 = vmatprep.subr.bf16.mxu0 0
        %3324 = vmatpush1.bf16.msra.mxu0 0
        %3325 = vmatprep.subr.bf16.mxu0 0
        %3326 = vmatpush1.bf16.msra.mxu0 0
        %3327 = vmatprep.subr.bf16.mxu0 0
        %3328 = vmatpush1.bf16.msra.mxu0 0
        %3329 = vmatprep.subr.bf16.mxu0 0
        %3330 = vmatpush1.bf16.msra.mxu0 0
        %3331 = vmatprep.subr.bf16.mxu0 0
        %3332 = vmatpush1.bf16.msra.mxu0 0
        %3333 = vmatprep.subr.bf16.mxu0 0
        %3334 = vmatpush1.bf16.msra.mxu0 0
        %3335 = vmatprep.subr.bf16.mxu0 0
        %3336 = vmatpush1.bf16.msra.mxu0 0
        %3337 = vmatprep.subr.bf16.mxu0 0
        %3338 = vmatpush1.bf16.msra.mxu0 0
        %3339 = vmatprep.subr.bf16.mxu0 0
        %3340 = vmatpush1.bf16.msra.mxu0 0
        %3341 = vmatprep.subr.bf16.mxu0 0
        %3342 = vmatpush1.bf16.msra.mxu0 0
        %3343 = vmatprep.subr.bf16.mxu0 0
        %3344 = vmatpush1.bf16.msra.mxu0 0
        %3345 = vmatprep.subr.bf16.mxu0 0
        %3346 = vmatpush1.bf16.msra.mxu0 0
        %3347 = vmatprep.subr.bf16.mxu0 0
        %3348 = vmatpush1.bf16.msra.mxu0 0
        %3349 = vmatprep.subr.bf16.mxu0 0
        %3350 = vmatpush1.bf16.msra.mxu0 0
        %3351 = vmatprep.subr.bf16.mxu0 0
        %3352 = vmatpush1.bf16.msra.mxu0 0
        %3353 = vmatprep.mubr.bf16.mxu0 0
        %3354 = vmatmul.mubr.bf16.gmra.mrb[0].mxu0 %v3316
        %v3355 = vpop.f32.mrb[0].mxu0
        %v3356 = vadd.f32 0.0, %v3355
        %v3357 = vpop.f32.mrb[0].mxu0
        %v3358 = vpop.f32.mrb[0].mxu0
        %v3359 = vadd.f32 0.0, %v3358
        %v3360 = vpop.f32.mrb[0].mxu0
        %3361 = vdwg.mxu0
        %v3362 = vadd.f32 %v3304, %v3356
        %v3363 = vadd.f32 %v3305, %v3359
        %v3364 = vld [vmem:[%s1104 + $0x8] sm:$0x3]
        %s3365 = scalar_lea.vmem %s14, 68
        %v3366 = vld [vmem:[%s3365] sm:$0x3]
        %v3368 = vunpack.c.l.b16 %v3364
        %v3369 = vpack.c.b16 %v3368, %v3368
        %v3371 = vshrl.u32 %v3253, 16
        %v3373 = vrot.slane %v3371, 1
        %v3374 = vshll.u32 %v3253, 16
        %v3376 = vrot.slane %v3374, 2
        %v3377 = vor.u32 %v3373, %v3376
        %v3379 = vshrl.u32 %v3369, 16
        %v3381 = vrot.slane %v3379, 1
        %v3382 = vshll.u32 %v3369, 16
        %v3384 = vrot.slane %v3382, 2
        %v3385 = vor.u32 %v3381, %v3384
        %v3386 = vsel %vm1561, %v3377, %v3385
        %v3388 = vsel %vm1185, %v3386, 0
        %v3391 = vand.u32 %v3366, %v1192
        %3393 = vmatprep.subr.bf16.mxu0 0
        %3394 = vmatpush1.bf16.msra.mxu0 %v3391
        %3395 = vmatprep.subr.bf16.mxu0 0
        %3396 = vmatpush1.bf16.msra.mxu0 0
        %3397 = vmatprep.subr.bf16.mxu0 0
        %3398 = vmatpush1.bf16.msra.mxu0 0
        %3399 = vmatprep.subr.bf16.mxu0 0
        %3400 = vmatpush1.bf16.msra.mxu0 0
        %3401 = vmatprep.subr.bf16.mxu0 0
        %3402 = vmatpush1.bf16.msra.mxu0 0
        %3403 = vmatprep.subr.bf16.mxu0 0
        %3404 = vmatpush1.bf16.msra.mxu0 0
        %3405 = vmatprep.subr.bf16.mxu0 0
        %3406 = vmatpush1.bf16.msra.mxu0 0
        %3407 = vmatprep.subr.bf16.mxu0 0
        %3408 = vmatpush1.bf16.msra.mxu0 0
        %3409 = vmatprep.subr.bf16.mxu0 0
        %3410 = vmatpush1.bf16.msra.mxu0 0
        %3411 = vmatprep.subr.bf16.mxu0 0
        %3412 = vmatpush1.bf16.msra.mxu0 0
        %3413 = vmatprep.subr.bf16.mxu0 0
        %3414 = vmatpush1.bf16.msra.mxu0 0
        %3415 = vmatprep.subr.bf16.mxu0 0
        %3416 = vmatpush1.bf16.msra.mxu0 0
        %3417 = vmatprep.subr.bf16.mxu0 0
        %3418 = vmatpush1.bf16.msra.mxu0 0
        %3419 = vmatprep.subr.bf16.mxu0 0
        %3420 = vmatpush1.bf16.msra.mxu0 0
        %3421 = vmatprep.subr.bf16.mxu0 0
        %3422 = vmatpush1.bf16.msra.mxu0 0
        %3423 = vmatprep.subr.bf16.mxu0 0
        %3424 = vmatpush1.bf16.msra.mxu0 0
        %3425 = vmatprep.mubr.bf16.mxu0 0
        %3426 = vmatmul.mubr.bf16.gmra.mrb[0].mxu0 %v3388
        %v3427 = vpop.f32.mrb[0].mxu0
        %v3428 = vadd.f32 0.0, %v3427
        %v3429 = vpop.f32.mrb[0].mxu0
        %v3430 = vpop.f32.mrb[0].mxu0
        %v3431 = vadd.f32 0.0, %v3430
        %v3432 = vpop.f32.mrb[0].mxu0
        %3433 = vdwg.mxu0
        %v3434 = vadd.f32 %v3362, %v3428
        %v3435 = vadd.f32 %v3363, %v3431
        %v3436 = vld [vmem:[%s1130] sm:$0xf]
        %v3437 = vld [vmem:[%s1130 + $0x4] sm:$0xf]
        %s3438 = scalar_lea.vmem %s14, 70
        %v3439 = vld [vmem:[%s3438] sm:$0x3]
        %v3442 = vunpack.c.l.b16 %v3436
        %v3443 = vunpack.c.l.b16 %v3437
        %v3444 = vpack.c.b16 %v3443, %v3442
        %v3446 = vsel %vm1185, %v3444, 0
        %v3449 = vand.u32 %v3439, %v1192
        %3451 = vmatprep.subr.bf16.mxu0 0
        %3452 = vmatpush1.bf16.msra.mxu0 %v3449
        %3453 = vmatprep.subr.bf16.mxu0 0
        %3454 = vmatpush1.bf16.msra.mxu0 0
        %3455 = vmatprep.subr.bf16.mxu0 0
        %3456 = vmatpush1.bf16.msra.mxu0 0
        %3457 = vmatprep.subr.bf16.mxu0 0
        %3458 = vmatpush1.bf16.msra.mxu0 0
        %3459 = vmatprep.subr.bf16.mxu0 0
        %3460 = vmatpush1.bf16.msra.mxu0 0
        %3461 = vmatprep.subr.bf16.mxu0 0
        %3462 = vmatpush1.bf16.msra.mxu0 0
        %3463 = vmatprep.subr.bf16.mxu0 0
        %3464 = vmatpush1.bf16.msra.mxu0 0
        %3465 = vmatprep.subr.bf16.mxu0 0
        %3466 = vmatpush1.bf16.msra.mxu0 0
        %3467 = vmatprep.subr.bf16.mxu0 0
        %3468 = vmatpush1.bf16.msra.mxu0 0
        %3469 = vmatprep.subr.bf16.mxu0 0
        %3470 = vmatpush1.bf16.msra.mxu0 0
        %3471 = vmatprep.subr.bf16.mxu0 0
        %3472 = vmatpush1.bf16.msra.mxu0 0
        %3473 = vmatprep.subr.bf16.mxu0 0
        %3474 = vmatpush1.bf16.msra.mxu0 0
        %3475 = vmatprep.subr.bf16.mxu0 0
        %3476 = vmatpush1.bf16.msra.mxu0 0
        %3477 = vmatprep.subr.bf16.mxu0 0
        %3478 = vmatpush1.bf16.msra.mxu0 0
        %3479 = vmatprep.subr.bf16.mxu0 0
        %3480 = vmatpush1.bf16.msra.mxu0 0
        %3481 = vmatprep.subr.bf16.mxu0 0
        %3482 = vmatpush1.bf16.msra.mxu0 0
        %3483 = vmatprep.mubr.bf16.mxu0 0
        %3484 = vmatmul.mubr.bf16.gmra.mrb[0].mxu0 %v3446
        %v3485 = vpop.f32.mrb[0].mxu0
        %v3486 = vadd.f32 0.0, %v3485
        %v3487 = vpop.f32.mrb[0].mxu0
        %v3488 = vpop.f32.mrb[0].mxu0
        %v3489 = vadd.f32 0.0, %v3488
        %v3490 = vpop.f32.mrb[0].mxu0
        %3491 = vdwg.mxu0
        %v3492 = vadd.f32 %v3434, %v3486
        %v3493 = vadd.f32 %v3435, %v3489
        %v3494 = vld [vmem:[%s1143] sm:$0xf]
        %v3495 = vld [vmem:[%s1143 + $0x4] sm:$0xf]
        %s3496 = scalar_lea.vmem %s14, 72
        %v3497 = vld [vmem:[%s3496] sm:$0x3]
        %v3500 = vunpack.c.l.b16 %v3494
        %v3501 = vunpack.c.l.b16 %v3495
        %v3502 = vpack.c.b16 %v3501, %v3500
        %v3504 = vsel %vm1185, %v3502, 0
        %v3507 = vand.u32 %v3497, %v1192
        %3509 = vmatprep.subr.bf16.mxu0 0
        %3510 = vmatpush1.bf16.msra.mxu0 %v3507
        %3511 = vmatprep.subr.bf16.mxu0 0
        %3512 = vmatpush1.bf16.msra.mxu0 0
        %3513 = vmatprep.subr.bf16.mxu0 0
        %3514 = vmatpush1.bf16.msra.mxu0 0
        %3515 = vmatprep.subr.bf16.mxu0 0
        %3516 = vmatpush1.bf16.msra.mxu0 0
        %3517 = vmatprep.subr.bf16.mxu0 0
        %3518 = vmatpush1.bf16.msra.mxu0 0
        %3519 = vmatprep.subr.bf16.mxu0 0
        %3520 = vmatpush1.bf16.msra.mxu0 0
        %3521 = vmatprep.subr.bf16.mxu0 0
        %3522 = vmatpush1.bf16.msra.mxu0 0
        %3523 = vmatprep.subr.bf16.mxu0 0
        %3524 = vmatpush1.bf16.msra.mxu0 0
        %3525 = vmatprep.subr.bf16.mxu0 0
        %3526 = vmatpush1.bf16.msra.mxu0 0
        %3527 = vmatprep.subr.bf16.mxu0 0
        %3528 = vmatpush1.bf16.msra.mxu0 0
        %3529 = vmatprep.subr.bf16.mxu0 0
        %3530 = vmatpush1.bf16.msra.mxu0 0
        %3531 = vmatprep.subr.bf16.mxu0 0
        %3532 = vmatpush1.bf16.msra.mxu0 0
        %3533 = vmatprep.subr.bf16.mxu0 0
        %3534 = vmatpush1.bf16.msra.mxu0 0
        %3535 = vmatprep.subr.bf16.mxu0 0
        %3536 = vmatpush1.bf16.msra.mxu0 0
        %3537 = vmatprep.subr.bf16.mxu0 0
        %3538 = vmatpush1.bf16.msra.mxu0 0
        %3539 = vmatprep.subr.bf16.mxu0 0
        %3540 = vmatpush1.bf16.msra.mxu0 0
        %3541 = vmatprep.mubr.bf16.mxu0 0
        %3542 = vmatmul.mubr.bf16.gmra.mrb[0].mxu0 %v3504
        %v3543 = vpop.f32.mrb[0].mxu0
        %v3544 = vadd.f32 0.0, %v3543
        %v3545 = vpop.f32.mrb[0].mxu0
        %v3546 = vpop.f32.mrb[0].mxu0
        %v3547 = vadd.f32 0.0, %v3546
        %v3548 = vpop.f32.mrb[0].mxu0
        %3549 = vdwg.mxu0
        %v3550 = vadd.f32 %v3492, %v3544
        %v3551 = vadd.f32 %v3493, %v3547
        %v3552 = vld [vmem:[%s1130] sm:$0xf]
        %v3553 = vld [vmem:[%s1130 + $0x4] sm:$0xf]
        %v3554 = vld [vmem:[%s1130 + $0x8] sm:$0x1]
        %s3555 = scalar_lea.vmem %s14, 74
        %v3556 = vld [vmem:[%s3555] sm:$0x3]
        %v3560 = vunpack.c.l.b16 %v3552
        %v3561 = vunpack.c.l.b16 %v3553
        %v3562 = vunpack.c.l.b16 %v3554
        %v3563 = vpack.c.b16 %v3561, %v3560
        %v3564 = vpack.c.b16 %v3562, %v3562
        %v3566 = vshrl.u32 %v3563, 16
        %v3568 = vshll.u32 %v3563, 16
        %v3570 = vrot.slane %v3568, 1
        %v3571 = vor.u32 %v3566, %v3570
        %v3573 = vshll.u32 %v3564, 16
        %v3575 = vrot.slane %v3573, 1
        %v3576 = vsel %vm1302, %v3571, %v3575
        %v3578 = vsel %vm1185, %v3576, 0
        %v3581 = vand.u32 %v3556, %v1192
        %3583 = vmatprep.subr.bf16.mxu0 0
        %3584 = vmatpush1.bf16.msra.mxu0 %v3581
        %3585 = vmatprep.subr.bf16.mxu0 0
        %3586 = vmatpush1.bf16.msra.mxu0 0
        %3587 = vmatprep.subr.bf16.mxu0 0
        %3588 = vmatpush1.bf16.msra.mxu0 0
        %3589 = vmatprep.subr.bf16.mxu0 0
        %3590 = vmatpush1.bf16.msra.mxu0 0
        %3591 = vmatprep.subr.bf16.mxu0 0
        %3592 = vmatpush1.bf16.msra.mxu0 0
        %3593 = vmatprep.subr.bf16.mxu0 0
        %3594 = vmatpush1.bf16.msra.mxu0 0
        %3595 = vmatprep.subr.bf16.mxu0 0
        %3596 = vmatpush1.bf16.msra.mxu0 0
        %3597 = vmatprep.subr.bf16.mxu0 0
        %3598 = vmatpush1.bf16.msra.mxu0 0
        %3599 = vmatprep.subr.bf16.mxu0 0
        %3600 = vmatpush1.bf16.msra.mxu0 0
        %3601 = vmatprep.subr.bf16.mxu0 0
        %3602 = vmatpush1.bf16.msra.mxu0 0
        %3603 = vmatprep.subr.bf16.mxu0 0
        %3604 = vmatpush1.bf16.msra.mxu0 0
        %3605 = vmatprep.subr.bf16.mxu0 0
        %3606 = vmatpush1.bf16.msra.mxu0 0
        %3607 = vmatprep.subr.bf16.mxu0 0
        %3608 = vmatpush1.bf16.msra.mxu0 0
        %3609 = vmatprep.subr.bf16.mxu0 0
        %3610 = vmatpush1.bf16.msra.mxu0 0
        %3611 = vmatprep.subr.bf16.mxu0 0
        %3612 = vmatpush1.bf16.msra.mxu0 0
        %3613 = vmatprep.subr.bf16.mxu0 0
        %3614 = vmatpush1.bf16.msra.mxu0 0
        %3615 = vmatprep.mubr.bf16.mxu0 0
        %3616 = vmatmul.mubr.bf16.gmra.mrb[0].mxu0 %v3578
        %v3617 = vpop.f32.mrb[0].mxu0
        %v3618 = vadd.f32 0.0, %v3617
        %v3619 = vpop.f32.mrb[0].mxu0
        %v3620 = vpop.f32.mrb[0].mxu0
        %v3621 = vadd.f32 0.0, %v3620
        %v3622 = vpop.f32.mrb[0].mxu0
        %3623 = vdwg.mxu0
        %v3624 = vadd.f32 %v3550, %v3618
        %v3625 = vadd.f32 %v3551, %v3621
        %v3626 = vld [vmem:[%s1143] sm:$0xf]
        %v3627 = vld [vmem:[%s1143 + $0x4] sm:$0xf]
        %v3628 = vld [vmem:[%s1143 + $0x8] sm:$0x1]
        %s3629 = scalar_lea.vmem %s14, 76
        %v3630 = vld [vmem:[%s3629] sm:$0x3]
        %v3634 = vunpack.c.l.b16 %v3626
        %v3635 = vunpack.c.l.b16 %v3627
        %v3636 = vunpack.c.l.b16 %v3628
        %v3637 = vpack.c.b16 %v3635, %v3634
        %v3638 = vpack.c.b16 %v3636, %v3636
        %v3640 = vshrl.u32 %v3637, 16
        %v3642 = vshll.u32 %v3637, 16
        %v3644 = vrot.slane %v3642, 1
        %v3645 = vor.u32 %v3640, %v3644
        %v3647 = vshll.u32 %v3638, 16
        %v3649 = vrot.slane %v3647, 1
        %v3650 = vsel %vm1302, %v3645, %v3649
        %v3652 = vsel %vm1185, %v3650, 0
        %v3655 = vand.u32 %v3630, %v1192
        %3657 = vmatprep.subr.bf16.mxu0 0
        %3658 = vmatpush1.bf16.msra.mxu0 %v3655
        %3659 = vmatprep.subr.bf16.mxu0 0
        %3660 = vmatpush1.bf16.msra.mxu0 0
        %3661 = vmatprep.subr.bf16.mxu0 0
        %3662 = vmatpush1.bf16.msra.mxu0 0
        %3663 = vmatprep.subr.bf16.mxu0 0
        %3664 = vmatpush1.bf16.msra.mxu0 0
        %3665 = vmatprep.subr.bf16.mxu0 0
        %3666 = vmatpush1.bf16.msra.mxu0 0
        %3667 = vmatprep.subr.bf16.mxu0 0
        %3668 = vmatpush1.bf16.msra.mxu0 0
        %3669 = vmatprep.subr.bf16.mxu0 0
        %3670 = vmatpush1.bf16.msra.mxu0 0
        %3671 = vmatprep.subr.bf16.mxu0 0
        %3672 = vmatpush1.bf16.msra.mxu0 0
        %3673 = vmatprep.subr.bf16.mxu0 0
        %3674 = vmatpush1.bf16.msra.mxu0 0
        %3675 = vmatprep.subr.bf16.mxu0 0
        %3676 = vmatpush1.bf16.msra.mxu0 0
        %3677 = vmatprep.subr.bf16.mxu0 0
        %3678 = vmatpush1.bf16.msra.mxu0 0
        %3679 = vmatprep.subr.bf16.mxu0 0
        %3680 = vmatpush1.bf16.msra.mxu0 0
        %3681 = vmatprep.subr.bf16.mxu0 0
        %3682 = vmatpush1.bf16.msra.mxu0 0
        %3683 = vmatprep.subr.bf16.mxu0 0
        %3684 = vmatpush1.bf16.msra.mxu0 0
        %3685 = vmatprep.subr.bf16.mxu0 0
        %3686 = vmatpush1.bf16.msra.mxu0 0
        %3687 = vmatprep.subr.bf16.mxu0 0
        %3688 = vmatpush1.bf16.msra.mxu0 0
        %3689 = vmatprep.mubr.bf16.mxu0 0
        %3690 = vmatmul.mubr.bf16.gmra.mrb[0].mxu0 %v3652
        %v3691 = vpop.f32.mrb[0].mxu0
        %v3692 = vadd.f32 0.0, %v3691
        %v3693 = vpop.f32.mrb[0].mxu0
        %v3694 = vpop.f32.mrb[0].mxu0
        %v3695 = vadd.f32 0.0, %v3694
        %v3696 = vpop.f32.mrb[0].mxu0
        %3697 = vdwg.mxu0
        %v3698 = vadd.f32 %v3624, %v3692
        %v3699 = vadd.f32 %v3625, %v3695
        %v3700 = vld [vmem:[%s1130] sm:$0xe]
        %s3701 = scalar_lea.vmem %s14, 78
        %v3702 = vld [vmem:[%s3701] sm:$0x3]
        %v3704 = vunpack.c.l.b16 %v3700
        %v3705 = vpack.c.b16 %v3561, %v3704
        %v3706 = vrot.slane %v3705, 1
        %v3707 = vrot.slane %v3564, 1
        %v3708 = vsel %vm1444, %v3706, %v3707
        %v3710 = vsel %vm1185, %v3708, 0
        %v3713 = vand.u32 %v3702, %v1192
        %3715 = vmatprep.subr.bf16.mxu0 0
        %3716 = vmatpush1.bf16.msra.mxu0 %v3713
        %3717 = vmatprep.subr.bf16.mxu0 0
        %3718 = vmatpush1.bf16.msra.mxu0 0
        %3719 = vmatprep.subr.bf16.mxu0 0
        %3720 = vmatpush1.bf16.msra.mxu0 0
        %3721 = vmatprep.subr.bf16.mxu0 0
        %3722 = vmatpush1.bf16.msra.mxu0 0
        %3723 = vmatprep.subr.bf16.mxu0 0
        %3724 = vmatpush1.bf16.msra.mxu0 0
        %3725 = vmatprep.subr.bf16.mxu0 0
        %3726 = vmatpush1.bf16.msra.mxu0 0
        %3727 = vmatprep.subr.bf16.mxu0 0
        %3728 = vmatpush1.bf16.msra.mxu0 0
        %3729 = vmatprep.subr.bf16.mxu0 0
        %3730 = vmatpush1.bf16.msra.mxu0 0
        %3731 = vmatprep.subr.bf16.mxu0 0
        %3732 = vmatpush1.bf16.msra.mxu0 0
        %3733 = vmatprep.subr.bf16.mxu0 0
        %3734 = vmatpush1.bf16.msra.mxu0 0
        %3735 = vmatprep.subr.bf16.mxu0 0
        %3736 = vmatpush1.bf16.msra.mxu0 0
        %3737 = vmatprep.subr.bf16.mxu0 0
        %3738 = vmatpush1.bf16.msra.mxu0 0
        %3739 = vmatprep.subr.bf16.mxu0 0
        %3740 = vmatpush1.bf16.msra.mxu0 0
        %3741 = vmatprep.subr.bf16.mxu0 0
        %3742 = vmatpush1.bf16.msra.mxu0 0
        %3743 = vmatprep.subr.bf16.mxu0 0
        %3744 = vmatpush1.bf16.msra.mxu0 0
        %3745 = vmatprep.subr.bf16.mxu0 0
        %3746 = vmatpush1.bf16.msra.mxu0 0
        %3747 = vmatprep.mubr.bf16.mxu0 0
        %3748 = vmatmul.mubr.bf16.gmra.mrb[0].mxu0 %v3710
        %v3749 = vpop.f32.mrb[0].mxu0
        %v3750 = vadd.f32 0.0, %v3749
        %v3751 = vpop.f32.mrb[0].mxu0
        %v3752 = vpop.f32.mrb[0].mxu0
        %v3753 = vadd.f32 0.0, %v3752
        %v3754 = vpop.f32.mrb[0].mxu0
        %3755 = vdwg.mxu0
        %v3756 = vadd.f32 %v3698, %v3750
        %v3757 = vadd.f32 %v3699, %v3753
        %v3758 = vld [vmem:[%s1143] sm:$0xe]
        %s3759 = scalar_lea.vmem %s14, 80
        %v3760 = vld [vmem:[%s3759] sm:$0x3]
        %v3762 = vunpack.c.l.b16 %v3758
        %v3763 = vpack.c.b16 %v3635, %v3762
        %v3764 = vrot.slane %v3763, 1
        %v3765 = vrot.slane %v3638, 1
        %v3766 = vsel %vm1444, %v3764, %v3765
        %v3768 = vsel %vm1185, %v3766, 0
        %v3771 = vand.u32 %v3760, %v1192
        %3773 = vmatprep.subr.bf16.mxu0 0
        %3774 = vmatpush1.bf16.msra.mxu0 %v3771
        %3775 = vmatprep.subr.bf16.mxu0 0
        %3776 = vmatpush1.bf16.msra.mxu0 0
        %3777 = vmatprep.subr.bf16.mxu0 0
        %3778 = vmatpush1.bf16.msra.mxu0 0
        %3779 = vmatprep.subr.bf16.mxu0 0
        %3780 = vmatpush1.bf16.msra.mxu0 0
        %3781 = vmatprep.subr.bf16.mxu0 0
        %3782 = vmatpush1.bf16.msra.mxu0 0
        %3783 = vmatprep.subr.bf16.mxu0 0
        %3784 = vmatpush1.bf16.msra.mxu0 0
        %3785 = vmatprep.subr.bf16.mxu0 0
        %3786 = vmatpush1.bf16.msra.mxu0 0
        %3787 = vmatprep.subr.bf16.mxu0 0
        %3788 = vmatpush1.bf16.msra.mxu0 0
        %3789 = vmatprep.subr.bf16.mxu0 0
        %3790 = vmatpush1.bf16.msra.mxu0 0
        %3791 = vmatprep.subr.bf16.mxu0 0
        %3792 = vmatpush1.bf16.msra.mxu0 0
        %3793 = vmatprep.subr.bf16.mxu0 0
        %3794 = vmatpush1.bf16.msra.mxu0 0
        %3795 = vmatprep.subr.bf16.mxu0 0
        %3796 = vmatpush1.bf16.msra.mxu0 0
        %3797 = vmatprep.subr.bf16.mxu0 0
        %3798 = vmatpush1.bf16.msra.mxu0 0
        %3799 = vmatprep.subr.bf16.mxu0 0
        %3800 = vmatpush1.bf16.msra.mxu0 0
        %3801 = vmatprep.subr.bf16.mxu0 0
        %3802 = vmatpush1.bf16.msra.mxu0 0
        %3803 = vmatprep.subr.bf16.mxu0 0
        %3804 = vmatpush1.bf16.msra.mxu0 0
        %3805 = vmatprep.mubr.bf16.mxu0 0
        %3806 = vmatmul.mubr.bf16.gmra.mrb[0].mxu0 %v3768
        %v3807 = vpop.f32.mrb[0].mxu0
        %v3808 = vadd.f32 0.0, %v3807
        %v3809 = vpop.f32.mrb[0].mxu0
        %v3810 = vpop.f32.mrb[0].mxu0
        %v3811 = vadd.f32 0.0, %v3810
        %v3812 = vpop.f32.mrb[0].mxu0
        %3813 = vdwg.mxu0
        %v3814 = vadd.f32 %v3756, %v3808
        %v3815 = vadd.f32 %v3757, %v3811
        %v3816 = vld [vmem:[%s1130 + $0x8] sm:$0x3]
        %s3817 = scalar_lea.vmem %s14, 82
        %v3818 = vld [vmem:[%s3817] sm:$0x3]
        %v3820 = vunpack.c.l.b16 %v3816
        %v3821 = vpack.c.b16 %v3820, %v3820
        %v3823 = vshrl.u32 %v3705, 16
        %v3825 = vrot.slane %v3823, 1
        %v3826 = vshll.u32 %v3705, 16
        %v3828 = vrot.slane %v3826, 2
        %v3829 = vor.u32 %v3825, %v3828
        %v3831 = vshrl.u32 %v3821, 16
        %v3833 = vrot.slane %v3831, 1
        %v3834 = vshll.u32 %v3821, 16
        %v3836 = vrot.slane %v3834, 2
        %v3837 = vor.u32 %v3833, %v3836
        %v3838 = vsel %vm1561, %v3829, %v3837
        %v3840 = vsel %vm1185, %v3838, 0
        %v3843 = vand.u32 %v3818, %v1192
        %3845 = vmatprep.subr.bf16.mxu0 0
        %3846 = vmatpush1.bf16.msra.mxu0 %v3843
        %3847 = vmatprep.subr.bf16.mxu0 0
        %3848 = vmatpush1.bf16.msra.mxu0 0
        %3849 = vmatprep.subr.bf16.mxu0 0
        %3850 = vmatpush1.bf16.msra.mxu0 0
        %3851 = vmatprep.subr.bf16.mxu0 0
        %3852 = vmatpush1.bf16.msra.mxu0 0
        %3853 = vmatprep.subr.bf16.mxu0 0
        %3854 = vmatpush1.bf16.msra.mxu0 0
        %3855 = vmatprep.subr.bf16.mxu0 0
        %3856 = vmatpush1.bf16.msra.mxu0 0
        %3857 = vmatprep.subr.bf16.mxu0 0
        %3858 = vmatpush1.bf16.msra.mxu0 0
        %3859 = vmatprep.subr.bf16.mxu0 0
        %3860 = vmatpush1.bf16.msra.mxu0 0
        %3861 = vmatprep.subr.bf16.mxu0 0
        %3862 = vmatpush1.bf16.msra.mxu0 0
        %3863 = vmatprep.subr.bf16.mxu0 0
        %3864 = vmatpush1.bf16.msra.mxu0 0
        %3865 = vmatprep.subr.bf16.mxu0 0
        %3866 = vmatpush1.bf16.msra.mxu0 0
        %3867 = vmatprep.subr.bf16.mxu0 0
        %3868 = vmatpush1.bf16.msra.mxu0 0
        %3869 = vmatprep.subr.bf16.mxu0 0
        %3870 = vmatpush1.bf16.msra.mxu0 0
        %3871 = vmatprep.subr.bf16.mxu0 0
        %3872 = vmatpush1.bf16.msra.mxu0 0
        %3873 = vmatprep.subr.bf16.mxu0 0
        %3874 = vmatpush1.bf16.msra.mxu0 0
        %3875 = vmatprep.subr.bf16.mxu0 0
        %3876 = vmatpush1.bf16.msra.mxu0 0
        %3877 = vmatprep.mubr.bf16.mxu0 0
        %3878 = vmatmul.mubr.bf16.gmra.mrb[0].mxu0 %v3840
        %v3879 = vpop.f32.mrb[0].mxu0
        %v3880 = vadd.f32 0.0, %v3879
        %v3881 = vpop.f32.mrb[0].mxu0
        %v3882 = vpop.f32.mrb[0].mxu0
        %v3883 = vadd.f32 0.0, %v3882
        %v3884 = vpop.f32.mrb[0].mxu0
        %3885 = vdwg.mxu0
        %v3886 = vadd.f32 %v3814, %v3880
        %v3887 = vadd.f32 %v3815, %v3883
        %v3888 = vld [vmem:[%s1156] sm:$0xf]
        %v3889 = vld [vmem:[%s1156 + $0x4] sm:$0xf]
        %s3890 = scalar_lea.vmem %s14, 84
        %v3891 = vld [vmem:[%s3890] sm:$0x3]
        %v3894 = vunpack.c.l.b16 %v3888
        %v3895 = vunpack.c.l.b16 %v3889
        %v3896 = vpack.c.b16 %v3895, %v3894
        %v3898 = vsel %vm1185, %v3896, 0
        %v3901 = vand.u32 %v3891, %v1192
        %3903 = vmatprep.subr.bf16.mxu0 0
        %3904 = vmatpush1.bf16.msra.mxu0 %v3901
        %3905 = vmatprep.subr.bf16.mxu0 0
        %3906 = vmatpush1.bf16.msra.mxu0 0
        %3907 = vmatprep.subr.bf16.mxu0 0
        %3908 = vmatpush1.bf16.msra.mxu0 0
        %3909 = vmatprep.subr.bf16.mxu0 0
        %3910 = vmatpush1.bf16.msra.mxu0 0
        %3911 = vmatprep.subr.bf16.mxu0 0
        %3912 = vmatpush1.bf16.msra.mxu0 0
        %3913 = vmatprep.subr.bf16.mxu0 0
        %3914 = vmatpush1.bf16.msra.mxu0 0
        %3915 = vmatprep.subr.bf16.mxu0 0
        %3916 = vmatpush1.bf16.msra.mxu0 0
        %3917 = vmatprep.subr.bf16.mxu0 0
        %3918 = vmatpush1.bf16.msra.mxu0 0
        %3919 = vmatprep.subr.bf16.mxu0 0
        %3920 = vmatpush1.bf16.msra.mxu0 0
        %3921 = vmatprep.subr.bf16.mxu0 0
        %3922 = vmatpush1.bf16.msra.mxu0 0
        %3923 = vmatprep.subr.bf16.mxu0 0
        %3924 = vmatpush1.bf16.msra.mxu0 0
        %3925 = vmatprep.subr.bf16.mxu0 0
        %3926 = vmatpush1.bf16.msra.mxu0 0
        %3927 = vmatprep.subr.bf16.mxu0 0
        %3928 = vmatpush1.bf16.msra.mxu0 0
        %3929 = vmatprep.subr.bf16.mxu0 0
        %3930 = vmatpush1.bf16.msra.mxu0 0
        %3931 = vmatprep.subr.bf16.mxu0 0
        %3932 = vmatpush1.bf16.msra.mxu0 0
        %3933 = vmatprep.subr.bf16.mxu0 0
        %3934 = vmatpush1.bf16.msra.mxu0 0
        %3935 = vmatprep.mubr.bf16.mxu0 0
        %3936 = vmatmul.mubr.bf16.gmra.mrb[0].mxu0 %v3898
        %v3937 = vpop.f32.mrb[0].mxu0
        %v3938 = vadd.f32 0.0, %v3937
        %v3939 = vpop.f32.mrb[0].mxu0
        %v3940 = vpop.f32.mrb[0].mxu0
        %v3941 = vadd.f32 0.0, %v3940
        %v3942 = vpop.f32.mrb[0].mxu0
        %3943 = vdwg.mxu0
        %v3944 = vadd.f32 %v3886, %v3938
        %v3945 = vadd.f32 %v3887, %v3941
        %v3946 = vld [vmem:[%s1169] sm:$0xf]
        %v3947 = vld [vmem:[%s1169 + $0x4] sm:$0xf]
        %s3948 = scalar_lea.vmem %s14, 86
        %v3949 = vld [vmem:[%s3948] sm:$0x3]
        %v3952 = vunpack.c.l.b16 %v3946
        %v3953 = vunpack.c.l.b16 %v3947
        %v3954 = vpack.c.b16 %v3953, %v3952
        %v3956 = vsel %vm1185, %v3954, 0
        %v3959 = vand.u32 %v3949, %v1192
        %3961 = vmatprep.subr.bf16.mxu0 0
        %3962 = vmatpush1.bf16.msra.mxu0 %v3959
        %3963 = vmatprep.subr.bf16.mxu0 0
        %3964 = vmatpush1.bf16.msra.mxu0 0
        %3965 = vmatprep.subr.bf16.mxu0 0
        %3966 = vmatpush1.bf16.msra.mxu0 0
        %3967 = vmatprep.subr.bf16.mxu0 0
        %3968 = vmatpush1.bf16.msra.mxu0 0
        %3969 = vmatprep.subr.bf16.mxu0 0
        %3970 = vmatpush1.bf16.msra.mxu0 0
        %3971 = vmatprep.subr.bf16.mxu0 0
        %3972 = vmatpush1.bf16.msra.mxu0 0
        %3973 = vmatprep.subr.bf16.mxu0 0
        %3974 = vmatpush1.bf16.msra.mxu0 0
        %3975 = vmatprep.subr.bf16.mxu0 0
        %3976 = vmatpush1.bf16.msra.mxu0 0
        %3977 = vmatprep.subr.bf16.mxu0 0
        %3978 = vmatpush1.bf16.msra.mxu0 0
        %3979 = vmatprep.subr.bf16.mxu0 0
        %3980 = vmatpush1.bf16.msra.mxu0 0
        %3981 = vmatprep.subr.bf16.mxu0 0
        %3982 = vmatpush1.bf16.msra.mxu0 0
        %3983 = vmatprep.subr.bf16.mxu0 0
        %3984 = vmatpush1.bf16.msra.mxu0 0
        %3985 = vmatprep.subr.bf16.mxu0 0
        %3986 = vmatpush1.bf16.msra.mxu0 0
        %3987 = vmatprep.subr.bf16.mxu0 0
        %3988 = vmatpush1.bf16.msra.mxu0 0
        %3989 = vmatprep.subr.bf16.mxu0 0
        %3990 = vmatpush1.bf16.msra.mxu0 0
        %3991 = vmatprep.subr.bf16.mxu0 0
        %3992 = vmatpush1.bf16.msra.mxu0 0
        %3993 = vmatprep.mubr.bf16.mxu0 0
        %3994 = vmatmul.mubr.bf16.gmra.mrb[0].mxu0 %v3956
        %v3995 = vpop.f32.mrb[0].mxu0
        %v3996 = vadd.f32 0.0, %v3995
        %v3997 = vpop.f32.mrb[0].mxu0
        %v3998 = vpop.f32.mrb[0].mxu0
        %v3999 = vadd.f32 0.0, %v3998
        %v4000 = vpop.f32.mrb[0].mxu0
        %4001 = vdwg.mxu0
        %v4002 = vadd.f32 %v3944, %v3996
        %v4003 = vadd.f32 %v3945, %v3999
        %v4004 = vld [vmem:[%s1156] sm:$0xf]
        %v4005 = vld [vmem:[%s1156 + $0x4] sm:$0xf]
        %v4006 = vld [vmem:[%s1156 + $0x8] sm:$0x1]
        %s4007 = scalar_lea.vmem %s14, 88
        %v4008 = vld [vmem:[%s4007] sm:$0x3]
        %v4012 = vunpack.c.l.b16 %v4004
        %v4013 = vunpack.c.l.b16 %v4005
        %v4014 = vunpack.c.l.b16 %v4006
        %v4015 = vpack.c.b16 %v4013, %v4012
        %v4016 = vpack.c.b16 %v4014, %v4014
        %v4018 = vshrl.u32 %v4015, 16
        %v4020 = vshll.u32 %v4015, 16
        %v4022 = vrot.slane %v4020, 1
        %v4023 = vor.u32 %v4018, %v4022
        %v4025 = vshll.u32 %v4016, 16
        %v4027 = vrot.slane %v4025, 1
        %v4028 = vsel %vm1302, %v4023, %v4027
        %v4030 = vsel %vm1185, %v4028, 0
        %v4033 = vand.u32 %v4008, %v1192
        %4035 = vmatprep.subr.bf16.mxu0 0
        %4036 = vmatpush1.bf16.msra.mxu0 %v4033
        %4037 = vmatprep.subr.bf16.mxu0 0
        %4038 = vmatpush1.bf16.msra.mxu0 0
        %4039 = vmatprep.subr.bf16.mxu0 0
        %4040 = vmatpush1.bf16.msra.mxu0 0
        %4041 = vmatprep.subr.bf16.mxu0 0
        %4042 = vmatpush1.bf16.msra.mxu0 0
        %4043 = vmatprep.subr.bf16.mxu0 0
        %4044 = vmatpush1.bf16.msra.mxu0 0
        %4045 = vmatprep.subr.bf16.mxu0 0
        %4046 = vmatpush1.bf16.msra.mxu0 0
        %4047 = vmatprep.subr.bf16.mxu0 0
        %4048 = vmatpush1.bf16.msra.mxu0 0
        %4049 = vmatprep.subr.bf16.mxu0 0
        %4050 = vmatpush1.bf16.msra.mxu0 0
        %4051 = vmatprep.subr.bf16.mxu0 0
        %4052 = vmatpush1.bf16.msra.mxu0 0
        %4053 = vmatprep.subr.bf16.mxu0 0
        %4054 = vmatpush1.bf16.msra.mxu0 0
        %4055 = vmatprep.subr.bf16.mxu0 0
        %4056 = vmatpush1.bf16.msra.mxu0 0
        %4057 = vmatprep.subr.bf16.mxu0 0
        %4058 = vmatpush1.bf16.msra.mxu0 0
        %4059 = vmatprep.subr.bf16.mxu0 0
        %4060 = vmatpush1.bf16.msra.mxu0 0
        %4061 = vmatprep.subr.bf16.mxu0 0
        %4062 = vmatpush1.bf16.msra.mxu0 0
        %4063 = vmatprep.subr.bf16.mxu0 0
        %4064 = vmatpush1.bf16.msra.mxu0 0
        %4065 = vmatprep.subr.bf16.mxu0 0
        %4066 = vmatpush1.bf16.msra.mxu0 0
        %4067 = vmatprep.mubr.bf16.mxu0 0
        %4068 = vmatmul.mubr.bf16.gmra.mrb[0].mxu0 %v4030
        %v4069 = vpop.f32.mrb[0].mxu0
        %v4070 = vadd.f32 0.0, %v4069
        %v4071 = vpop.f32.mrb[0].mxu0
        %v4072 = vpop.f32.mrb[0].mxu0
        %v4073 = vadd.f32 0.0, %v4072
        %v4074 = vpop.f32.mrb[0].mxu0
        %4075 = vdwg.mxu0
        %v4076 = vadd.f32 %v4002, %v4070
        %v4077 = vadd.f32 %v4003, %v4073
        %v4078 = vld [vmem:[%s1169] sm:$0xf]
        %v4079 = vld [vmem:[%s1169 + $0x4] sm:$0xf]
        %v4080 = vld [vmem:[%s1169 + $0x8] sm:$0x1]
        %s4081 = scalar_lea.vmem %s14, 90
        %v4082 = vld [vmem:[%s4081] sm:$0x3]
        %v4086 = vunpack.c.l.b16 %v4078
        %v4087 = vunpack.c.l.b16 %v4079
        %v4088 = vunpack.c.l.b16 %v4080
        %v4089 = vpack.c.b16 %v4087, %v4086
        %v4090 = vpack.c.b16 %v4088, %v4088
        %v4092 = vshrl.u32 %v4089, 16
        %v4094 = vshll.u32 %v4089, 16
        %v4096 = vrot.slane %v4094, 1
        %v4097 = vor.u32 %v4092, %v4096
        %v4099 = vshll.u32 %v4090, 16
        %v4101 = vrot.slane %v4099, 1
        %v4102 = vsel %vm1302, %v4097, %v4101
        %v4104 = vsel %vm1185, %v4102, 0
        %v4107 = vand.u32 %v4082, %v1192
        %4109 = vmatprep.subr.bf16.mxu0 0
        %4110 = vmatpush1.bf16.msra.mxu0 %v4107
        %4111 = vmatprep.subr.bf16.mxu0 0
        %4112 = vmatpush1.bf16.msra.mxu0 0
        %4113 = vmatprep.subr.bf16.mxu0 0
        %4114 = vmatpush1.bf16.msra.mxu0 0
        %4115 = vmatprep.subr.bf16.mxu0 0
        %4116 = vmatpush1.bf16.msra.mxu0 0
        %4117 = vmatprep.subr.bf16.mxu0 0
        %4118 = vmatpush1.bf16.msra.mxu0 0
        %4119 = vmatprep.subr.bf16.mxu0 0
        %4120 = vmatpush1.bf16.msra.mxu0 0
        %4121 = vmatprep.subr.bf16.mxu0 0
        %4122 = vmatpush1.bf16.msra.mxu0 0
        %4123 = vmatprep.subr.bf16.mxu0 0
        %4124 = vmatpush1.bf16.msra.mxu0 0
        %4125 = vmatprep.subr.bf16.mxu0 0
        %4126 = vmatpush1.bf16.msra.mxu0 0
        %4127 = vmatprep.subr.bf16.mxu0 0
        %4128 = vmatpush1.bf16.msra.mxu0 0
        %4129 = vmatprep.subr.bf16.mxu0 0
        %4130 = vmatpush1.bf16.msra.mxu0 0
        %4131 = vmatprep.subr.bf16.mxu0 0
        %4132 = vmatpush1.bf16.msra.mxu0 0
        %4133 = vmatprep.subr.bf16.mxu0 0
        %4134 = vmatpush1.bf16.msra.mxu0 0
        %4135 = vmatprep.subr.bf16.mxu0 0
        %4136 = vmatpush1.bf16.msra.mxu0 0
        %4137 = vmatprep.subr.bf16.mxu0 0
        %4138 = vmatpush1.bf16.msra.mxu0 0
        %4139 = vmatprep.subr.bf16.mxu0 0
        %4140 = vmatpush1.bf16.msra.mxu0 0
        %4141 = vmatprep.mubr.bf16.mxu0 0
        %4142 = vmatmul.mubr.bf16.gmra.mrb[0].mxu0 %v4104
        %v4143 = vpop.f32.mrb[0].mxu0
        %v4144 = vadd.f32 0.0, %v4143
        %v4145 = vpop.f32.mrb[0].mxu0
        %v4146 = vpop.f32.mrb[0].mxu0
        %v4147 = vadd.f32 0.0, %v4146
        %v4148 = vpop.f32.mrb[0].mxu0
        %4149 = vdwg.mxu0
        %v4150 = vadd.f32 %v4076, %v4144
        %v4151 = vadd.f32 %v4077, %v4147
        %v4152 = vld [vmem:[%s1156] sm:$0xe]
        %s4153 = scalar_lea.vmem %s14, 92
        %v4154 = vld [vmem:[%s4153] sm:$0x3]
        %v4156 = vunpack.c.l.b16 %v4152
        %v4157 = vpack.c.b16 %v4013, %v4156
        %v4158 = vrot.slane %v4157, 1
        %v4159 = vrot.slane %v4016, 1
        %v4160 = vsel %vm1444, %v4158, %v4159
        %v4162 = vsel %vm1185, %v4160, 0
        %v4165 = vand.u32 %v4154, %v1192
        %4167 = vmatprep.subr.bf16.mxu0 0
        %4168 = vmatpush1.bf16.msra.mxu0 %v4165
        %4169 = vmatprep.subr.bf16.mxu0 0
        %4170 = vmatpush1.bf16.msra.mxu0 0
        %4171 = vmatprep.subr.bf16.mxu0 0
        %4172 = vmatpush1.bf16.msra.mxu0 0
        %4173 = vmatprep.subr.bf16.mxu0 0
        %4174 = vmatpush1.bf16.msra.mxu0 0
        %4175 = vmatprep.subr.bf16.mxu0 0
        %4176 = vmatpush1.bf16.msra.mxu0 0
        %4177 = vmatprep.subr.bf16.mxu0 0
        %4178 = vmatpush1.bf16.msra.mxu0 0
        %4179 = vmatprep.subr.bf16.mxu0 0
        %4180 = vmatpush1.bf16.msra.mxu0 0
        %4181 = vmatprep.subr.bf16.mxu0 0
        %4182 = vmatpush1.bf16.msra.mxu0 0
        %4183 = vmatprep.subr.bf16.mxu0 0
        %4184 = vmatpush1.bf16.msra.mxu0 0
        %4185 = vmatprep.subr.bf16.mxu0 0
        %4186 = vmatpush1.bf16.msra.mxu0 0
        %4187 = vmatprep.subr.bf16.mxu0 0
        %4188 = vmatpush1.bf16.msra.mxu0 0
        %4189 = vmatprep.subr.bf16.mxu0 0
        %4190 = vmatpush1.bf16.msra.mxu0 0
        %4191 = vmatprep.subr.bf16.mxu0 0
        %4192 = vmatpush1.bf16.msra.mxu0 0
        %4193 = vmatprep.subr.bf16.mxu0 0
        %4194 = vmatpush1.bf16.msra.mxu0 0
        %4195 = vmatprep.subr.bf16.mxu0 0
        %4196 = vmatpush1.bf16.msra.mxu0 0
        %4197 = vmatprep.subr.bf16.mxu0 0
        %4198 = vmatpush1.bf16.msra.mxu0 0
        %4199 = vmatprep.mubr.bf16.mxu0 0
        %4200 = vmatmul.mubr.bf16.gmra.mrb[0].mxu0 %v4162
        %v4201 = vpop.f32.mrb[0].mxu0
        %v4202 = vadd.f32 0.0, %v4201
        %v4203 = vpop.f32.mrb[0].mxu0
        %v4204 = vpop.f32.mrb[0].mxu0
        %v4205 = vadd.f32 0.0, %v4204
        %v4206 = vpop.f32.mrb[0].mxu0
        %4207 = vdwg.mxu0
        %v4208 = vadd.f32 %v4150, %v4202
        %v4209 = vadd.f32 %v4151, %v4205
        %v4210 = vld [vmem:[%s1169] sm:$0xe]
        %s4211 = scalar_lea.vmem %s14, 94
        %v4212 = vld [vmem:[%s4211] sm:$0x3]
        %v4214 = vunpack.c.l.b16 %v4210
        %v4215 = vpack.c.b16 %v4087, %v4214
        %v4216 = vrot.slane %v4215, 1
        %v4217 = vrot.slane %v4090, 1
        %v4218 = vsel %vm1444, %v4216, %v4217
        %v4220 = vsel %vm1185, %v4218, 0
        %v4223 = vand.u32 %v4212, %v1192
        %4225 = vmatprep.subr.bf16.mxu0 0
        %4226 = vmatpush1.bf16.msra.mxu0 %v4223
        %4227 = vmatprep.subr.bf16.mxu0 0
        %4228 = vmatpush1.bf16.msra.mxu0 0
        %4229 = vmatprep.subr.bf16.mxu0 0
        %4230 = vmatpush1.bf16.msra.mxu0 0
        %4231 = vmatprep.subr.bf16.mxu0 0
        %4232 = vmatpush1.bf16.msra.mxu0 0
        %4233 = vmatprep.subr.bf16.mxu0 0
        %4234 = vmatpush1.bf16.msra.mxu0 0
        %4235 = vmatprep.subr.bf16.mxu0 0
        %4236 = vmatpush1.bf16.msra.mxu0 0
        %4237 = vmatprep.subr.bf16.mxu0 0
        %4238 = vmatpush1.bf16.msra.mxu0 0
        %4239 = vmatprep.subr.bf16.mxu0 0
        %4240 = vmatpush1.bf16.msra.mxu0 0
        %4241 = vmatprep.subr.bf16.mxu0 0
        %4242 = vmatpush1.bf16.msra.mxu0 0
        %4243 = vmatprep.subr.bf16.mxu0 0
        %4244 = vmatpush1.bf16.msra.mxu0 0
        %4245 = vmatprep.subr.bf16.mxu0 0
        %4246 = vmatpush1.bf16.msra.mxu0 0
        %4247 = vmatprep.subr.bf16.mxu0 0
        %4248 = vmatpush1.bf16.msra.mxu0 0
        %4249 = vmatprep.subr.bf16.mxu0 0
        %4250 = vmatpush1.bf16.msra.mxu0 0
        %4251 = vmatprep.subr.bf16.mxu0 0
        %4252 = vmatpush1.bf16.msra.mxu0 0
        %4253 = vmatprep.subr.bf16.mxu0 0
        %4254 = vmatpush1.bf16.msra.mxu0 0
        %4255 = vmatprep.subr.bf16.mxu0 0
        %4256 = vmatpush1.bf16.msra.mxu0 0
        %4257 = vmatprep.mubr.bf16.mxu0 0
        %4258 = vmatmul.mubr.bf16.gmra.mrb[0].mxu0 %v4220
        %v4259 = vpop.f32.mrb[0].mxu0
        %v4260 = vadd.f32 0.0, %v4259
        %v4261 = vpop.f32.mrb[0].mxu0
        %v4262 = vpop.f32.mrb[0].mxu0
        %v4263 = vadd.f32 0.0, %v4262
        %v4264 = vpop.f32.mrb[0].mxu0
        %4265 = vdwg.mxu0
        %v4266 = vadd.f32 %v4208, %v4260
        %v4267 = vadd.f32 %v4209, %v4263
        %v4268 = vld [vmem:[%s1156 + $0x8] sm:$0x3]
        %s4269 = scalar_lea.vmem %s14, 96
        %v4270 = vld [vmem:[%s4269] sm:$0x3]
        %v4272 = vunpack.c.l.b16 %v4268
        %v4273 = vpack.c.b16 %v4272, %v4272
        %v4275 = vshrl.u32 %v4157, 16
        %v4277 = vrot.slane %v4275, 1
        %v4278 = vshll.u32 %v4157, 16
        %v4280 = vrot.slane %v4278, 2
        %v4281 = vor.u32 %v4277, %v4280
        %v4283 = vshrl.u32 %v4273, 16
        %v4285 = vrot.slane %v4283, 1
        %v4286 = vshll.u32 %v4273, 16
        %v4288 = vrot.slane %v4286, 2
        %v4289 = vor.u32 %v4285, %v4288
        %v4290 = vsel %vm1561, %v4281, %v4289
        %v4292 = vsel %vm1185, %v4290, 0
        %v4295 = vand.u32 %v4270, %v1192
        %4297 = vmatprep.subr.bf16.mxu0 0
        %4298 = vmatpush1.bf16.msra.mxu0 %v4295
        %4299 = vmatprep.subr.bf16.mxu0 0
        %4300 = vmatpush1.bf16.msra.mxu0 0
        %4301 = vmatprep.subr.bf16.mxu0 0
        %4302 = vmatpush1.bf16.msra.mxu0 0
        %4303 = vmatprep.subr.bf16.mxu0 0
        %4304 = vmatpush1.bf16.msra.mxu0 0
        %4305 = vmatprep.subr.bf16.mxu0 0
        %4306 = vmatpush1.bf16.msra.mxu0 0
        %4307 = vmatprep.subr.bf16.mxu0 0
        %4308 = vmatpush1.bf16.msra.mxu0 0
        %4309 = vmatprep.subr.bf16.mxu0 0
        %4310 = vmatpush1.bf16.msra.mxu0 0
        %4311 = vmatprep.subr.bf16.mxu0 0
        %4312 = vmatpush1.bf16.msra.mxu0 0
        %4313 = vmatprep.subr.bf16.mxu0 0
        %4314 = vmatpush1.bf16.msra.mxu0 0
        %4315 = vmatprep.subr.bf16.mxu0 0
        %4316 = vmatpush1.bf16.msra.mxu0 0
        %4317 = vmatprep.subr.bf16.mxu0 0
        %4318 = vmatpush1.bf16.msra.mxu0 0
        %4319 = vmatprep.subr.bf16.mxu0 0
        %4320 = vmatpush1.bf16.msra.mxu0 0
        %4321 = vmatprep.subr.bf16.mxu0 0
        %4322 = vmatpush1.bf16.msra.mxu0 0
        %4323 = vmatprep.subr.bf16.mxu0 0
        %4324 = vmatpush1.bf16.msra.mxu0 0
        %4325 = vmatprep.subr.bf16.mxu0 0
        %4326 = vmatpush1.bf16.msra.mxu0 0
        %4327 = vmatprep.subr.bf16.mxu0 0
        %4328 = vmatpush1.bf16.msra.mxu0 0
        %4329 = vmatprep.mubr.bf16.mxu0 0
        %4330 = vmatmul.mubr.bf16.gmra.mrb[0].mxu0 %v4292
        %v4331 = vpop.f32.mrb[0].mxu0
        %v4332 = vadd.f32 0.0, %v4331
        %v4333 = vpop.f32.mrb[0].mxu0
        %v4334 = vpop.f32.mrb[0].mxu0
        %v4335 = vadd.f32 0.0, %v4334
        %v4336 = vpop.f32.mrb[0].mxu0
        %4337 = vdwg.mxu0
        %v4338 = vadd.f32 %v4266, %v4332
        %v4339 = vadd.f32 %v4267, %v4335
        %v4340 = vld [vmem:[%s15] sm:$0x1]
        %v4342 = vlaneseq
        %v4343 = vshrl.u32 %v4342, 7
        %v4344 = vsub.s32 0, %v4343
        %v4345 = vrot.slane %v4340, %v4344
        %v4347 = vadd.f32 %v4338, %v4345
        %v4348 = vadd.f32 %v4339, %v4345
        %v4349 = vmax.f32 %v4347, 0.0
        %v4350 = vmax.f32 %v4348, 0.0
        %v4351 = vpack.c.bf16 %v4350, %v4349
        %v4353 = vunpack.c.l.b16 %v4351
        %v4354 = vunpack.c.h.b16 %v4351
        %v4355 = vpack.c.b16 %v4353, %v4353
        %v4356 = vpack.c.b16 %v4354, %v4354
        %vm4359 = vcmask 519168
        %4360 = vst.msk [vmem:[%s993] sm:$0xf] %vm4359, %v4355
        %4361 = vst.msk [vmem:[%s993 + $0x4] sm:$0xf] %vm4359, %v4356
        %s4362 = sand.u32 %s538, 1
        %s4363 = scalar_lea.sflag [#allocation3], %s4362
        %s4364 = sand.u32 %s538, 1
        %s4365 = smul.addr %s4364, 8
        %s4366 = scalar_lea.vmem [#allocation2], %s4365
        // Predicated region
        $region85: #{tpu_custom_call.1} parent=83 // pred_check
          %p4367 = pneg %p548
        $region86: #{tpu_custom_call.1} parent=83 // pred_check_branch
          %4369 = sbr.rel (%p4367) target = $region88
        $region87: #{tpu_custom_call.1} parent=83 // pred_region
          %s4371 = ssub.s32 128, 128
          %4372 = vsyncadd %s4363, %s4371
          %s4373 = smul.addr %s35, 2
          %s4374 = smul.addr %s34, 32
          %s4375 = sadd.s32 %s4373, %s4374
          %s4376 = smul.addr %s4375, 64
          %s4377 = scalar_lea.hbm %s16, %s4376
          %s4378 = sshll.u32 %s4366, 4
          %s4379 = int_to_ptr.vmem [resolvable:$true] %s4378
          %4384 = dma.vmem_to_hbm [thread:$0]  %s4379, 128, %s4377, %s4363, 64, 64, 4
        $region88: #{tpu_custom_call.1} parent=83 // pred_fallthru
          _
      $region84: #{tpu_custom_call.1} parent=5 // pred_fallthru
        _
      %p4385 = scmp.le.s32.totalorder 2, %s25
      // Predicated region
      $region89: #{tpu_custom_call.1} parent=5 // pred_check
        %p4386 = pneg %p4385
      $region90: #{tpu_custom_call.1} parent=5 // pred_check_branch
        %4388 = sbr.rel (%p4386) target = $region92
      $region91: #{tpu_custom_call.1} parent=5 // pred_region
        %s4389 = ssub.s32 %s25, 2
        // Predicated region
        $region93: #{tpu_custom_call.1} parent=91 // pred_check
          %p4390 = pneg %p554
        $region94: #{tpu_custom_call.1} parent=91 // pred_check_branch
          %4392 = sbr.rel (%p4390) target = $region96
        $region95: #{tpu_custom_call.1} parent=91 // pred_region
          %s4393 = sand.u32 %s539, 1
          %s4394 = scalar_lea.sflag [#allocation3], %s4393
          %s4395 = sand.u32 %s539, 1
          %s4396 = smul.addr %s4395, 8
          %s4397 = scalar_lea.vmem [#allocation2], %s4396
          %4398 = dma.done %s4394, 128
        $region96: #{tpu_custom_call.1} parent=91 // pred_fallthru
          _
      $region92: #{tpu_custom_call.1} parent=5 // pred_fallthru
        _
    $region6: #{tpu_custom_call.1} parent=1 // loop_footer
      %s29 = sadd.s32 1, %s25
    $region7: #{tpu_custom_call.1} parent=1 // loop_footer_branch
      %24 = sbr.rel target = $region3
    $region8: #{tpu_custom_call.1} parent=1 // loop_exit
      _
    %4399 = vsyncpa [#allocation3], 1
    %s4400 = scalar_lea.sflag [#allocation3], 1
    %4401 = vsyncpa %s4400, 1

</llo_original>
